<compile_context>
chip_gen: v5e
topology: v5e:2x2
jax: 0.10.0
libtpu: 0.0.40
codegen_flags: <defaults>
</compile_context>

<pallas_src>
import functools
import math

import jax
import jax.numpy as jnp
from jax.experimental import pallas as pl
from jax.experimental.pallas import tpu as pltpu

# MXU input dtype (f32 accumulation is always used).  bfloat16 halves weight
# HBM/VMEM traffic and doubles MXU rate on v6e/v7x; flip to jnp.float32 for
# bit-level parity with the f32 PyTorch reference.
MXU_DTYPE = jnp.bfloat16


# ---------------------------------------------------------------------------
# Fused decoder-layer kernel (one grid step = one (batch-block, layer) pair)
# ---------------------------------------------------------------------------

def _fused_decoder_kernel(
    x_ref, pos_ref, enc_ref,
    wqkv_s_ref, bqkv_s_ref, wo_s_ref, bo_s_ref,
    wq_c_ref, bq_c_ref, wkv_c_ref, bkv_c_ref, wo_c_ref, bo_c_ref,
    w1_ref, b1_ref, w2_ref, b2_ref,
    ln1g_ref, ln1b_ref, ln2g_ref, ln2b_ref, ln3g_ref, ln3b_ref,
    out_ref,
    *, num_heads, d_k, eps,
):
    D = num_heads * d_k
    scale = 1.0 / math.sqrt(d_k)

    # Layer 0: seed the VMEM-resident activation with x + positional embedding.
    @pl.when(pl.program_id(1) == 0)
    def _init():
        out_ref[...] = x_ref[...] + pos_ref[...]

    x = out_ref[...]  # [S, D] f32, resident in VMEM across all layer steps.

    def mm(a, w, b):
        # bf16 (or f32) MXU inputs, f32 accumulation, f32 bias epilogue.
        return jnp.dot(a.astype(w.dtype), w,
                       preferred_element_type=jnp.float32) + b

    def ln(h, g, b):
        # Fused residual already applied by caller; f32 LayerNorm.
        mu = jnp.mean(h, axis=-1, keepdims=True)
        var = jnp.mean((h - mu) ** 2, axis=-1, keepdims=True)
        return (h - mu) * jax.lax.rsqrt(var + eps) * g + b

    def mha(q2d, k2d, v2d):
        # All heads of this batch element computed in-VMEM; head split/merge is
        # done with lane slices + concat (no HBM traffic, no wrapper transposes).
        # TODO(synk): no tgt/src mask applied (forward defaults mask=None).
        heads = []
        for h in range(num_heads):
            sl = slice(h * d_k, (h + 1) * d_k)
            qh = q2d[:, sl].astype(MXU_DTYPE)
            kh = k2d[:, sl].astype(MXU_DTYPE)
            vh = v2d[:, sl].astype(MXU_DTYPE)
            s = jax.lax.dot_general(
                qh, kh, (((1,), (1,)), ((), ())),
                preferred_element_type=jnp.float32) * scale
            m = jnp.max(s, axis=-1, keepdims=True)
            e = jnp.exp(s - m)
            p = e * pl.reciprocal(jnp.sum(e, axis=-1, keepdims=True), approx=True)
            heads.append(jnp.dot(p.astype(MXU_DTYPE), vh,
                                 preferred_element_type=jnp.float32))
        return jnp.concatenate(heads, axis=-1)  # [S, D]

    # ---- self-attention (fused QKV projection) + residual + LN1 ----
    qkv = mm(x, wqkv_s_ref[0], bqkv_s_ref[0])            # [S, 3D]
    sa = mha(qkv[:, :D], qkv[:, D:2 * D], qkv[:, 2 * D:])
    sa = mm(sa, wo_s_ref[0], bo_s_ref[0])
    x = ln(x + sa, ln1g_ref[0], ln1b_ref[0])

    # ---- cross-attention (fused KV projection of encoder output) + LN2 ----
    enc = enc_ref[...]                                   # [Se, D] (VMEM resident)
    q = mm(x, wq_c_ref[0], bq_c_ref[0])
    kv = mm(enc, wkv_c_ref[0], bkv_c_ref[0])             # [Se, 2D]
    ca = mha(q, kv[:, :D], kv[:, D:])
    ca = mm(ca, wo_c_ref[0], bo_c_ref[0])
    x = ln(x + ca, ln2g_ref[0], ln2b_ref[0])

    # ---- feed-forward (dropout = identity in eval) + residual + LN3 ----
    hmid = jnp.maximum(mm(x, w1_ref[0], b1_ref[0]), 0.0)
    ff = mm(hmid, w2_ref[0], b2_ref[0])
    x = ln(x + ff, ln3g_ref[0], ln3b_ref[0])

    out_ref[...] = x


# ---------------------------------------------------------------------------
# Forward wrapper (only free reshapes / parameter plumbing outside the kernel)
# ---------------------------------------------------------------------------

def cached_transformer_decoder_forward(params, x, enc_output, num_heads):
    B, S, D = x.shape
    Se = enc_output.shape[1]
    L, _, Dff = params["w_ff1"].shape
    d_k = D // num_heads

    x2d = x.reshape(B * S, D)                 # free (contiguous) reshape
    enc2d = enc_output.reshape(B * Se, D)     # free (contiguous) reshape
    pos_s = params["pos_emb"][:S]             # [S, D]

    kern = functools.partial(
        _fused_decoder_kernel, num_heads=num_heads, d_k=d_k, eps=1e-5)

    def wspec(shape):
        return pl.BlockSpec(shape, lambda b, l: (l, 0, 0))

    out2d = pl.pallas_call(
        kern,
        out_shape=jax.ShapeDtypeStruct((B * S, D), jnp.float32),
        grid=(B, L),
        in_specs=[
            pl.BlockSpec((S, D), lambda b, l: (b, 0)),     # x (per-batch block)
            pl.BlockSpec((S, D), lambda b, l: (0, 0)),     # pos embedding
            pl.BlockSpec((Se, D), lambda b, l: (b, 0)),    # encoder output
            wspec((1, D, 3 * D)),                          # w_qkv_self
            wspec((1, 1, 3 * D)),                          # b_qkv_self
            wspec((1, D, D)),                              # w_o_self
            wspec((1, 1, D)),                              # b_o_self
            wspec((1, D, D)),                              # w_q_cross
            wspec((1, 1, D)),                              # b_q_cross
            wspec((1, D, 2 * D)),                          # w_kv_cross
            wspec((1, 1, 2 * D)),                          # b_kv_cross
            wspec((1, D, D)),                              # w_o_cross
            wspec((1, 1, D)),                              # b_o_cross
            wspec((1, D, Dff)),                            # w_ff1
            wspec((1, 1, Dff)),                            # b_ff1
            wspec((1, Dff, D)),                            # w_ff2
            wspec((1, 1, D)),                              # b_ff2
        ] + [wspec((1, 1, D)) for _ in range(6)],          # ln{1,2,3}_{g,b}
        out_specs=pl.BlockSpec((S, D), lambda b, l: (b, 0)),
        compiler_params=pltpu.CompilerParams(
            dimension_semantics=("parallel", "arbitrary")),
    )(
        x2d, pos_s, enc2d,
        params["w_qkv_self"], params["b_qkv_self"],
        params["w_o_self"], params["b_o_self"],
        params["w_q_cross"], params["b_q_cross"],
        params["w_kv_cross"], params["b_kv_cross"],
        params["w_o_cross"], params["b_o_cross"],
        params["w_ff1"], params["b_ff1"],
        params["w_ff2"], params["b_ff2"],
        params["ln1_g"], params["ln1_b"],
        params["ln2_g"], params["ln2_b"],
        params["ln3_g"], params["ln3_b"],
    )
    return out2d.reshape(B, S, D)


# ---------------------------------------------------------------------------
# Deterministic parameter init (mirrors nn.Linear / nn.Embedding), stacked
# across layers with fused QKV / fused cross-KV weight layouts.
# ---------------------------------------------------------------------------

def _init_linear(key, fan_in, fan_out):
    kw, kb = jax.random.split(key)
    bound = 1.0 / math.sqrt(fan_in)
    w = jax.random.uniform(kw, (fan_in, fan_out), jnp.float32, -bound, bound)
    b = jax.random.uniform(kb, (fan_out,), jnp.float32, -bound, bound)
    return w, b


def init_stacked_params(key, d_model, d_ff, num_layers, max_len):
    keys = jax.random.split(key, 1 + num_layers)
    pos_emb = jax.random.normal(keys[0], (max_len, d_model), jnp.float32)

    acc = {name: [] for name in (
        "w_qkv_self", "b_qkv_self", "w_o_self", "b_o_self",
        "w_q_cross", "b_q_cross", "w_kv_cross", "b_kv_cross",
        "w_o_cross", "b_o_cross",
        "w_ff1", "b_ff1", "w_ff2", "b_ff2",
        "ln1_g", "ln1_b", "ln2_g", "ln2_b", "ln3_g", "ln3_b")}

    for li in range(num_layers):
        lk = jax.random.split(keys[1 + li], 10)
        # self-attention
        wq, bq = _init_linear(lk[0], d_model, d_model)
        wk, bk = _init_linear(lk[1], d_model, d_model)
        wv, bv = _init_linear(lk[2], d_model, d_model)
        wo_s, bo_s = _init_linear(lk[3], d_model, d_model)
        # cross-attention
        cwq, cbq = _init_linear(lk[4], d_model, d_model)
        cwk, cbk = _init_linear(lk[5], d_model, d_model)
        cwv, cbv = _init_linear(lk[6], d_model, d_model)
        wo_c, bo_c = _init_linear(lk[7], d_model, d_model)
        # feed-forward
        w1, b1 = _init_linear(lk[8], d_model, d_ff)
        w2, b2 = _init_linear(lk[9], d_ff, d_model)

        acc["w_qkv_self"].append(jnp.concatenate([wq, wk, wv], axis=1))
        acc["b_qkv_self"].append(jnp.concatenate([bq, bk, bv])[None, :])
        acc["w_o_self"].append(wo_s)
        acc["b_o_self"].append(bo_s[None, :])
        acc["w_q_cross"].append(cwq)
        acc["b_q_cross"].append(cbq[None, :])
        acc["w_kv_cross"].append(jnp.concatenate([cwk, cwv], axis=1))
        acc["b_kv_cross"].append(jnp.concatenate([cbk, cbv])[None, :])
        acc["w_o_cross"].append(wo_c)
        acc["b_o_cross"].append(bo_c[None, :])
        acc["w_ff1"].append(w1)
        acc["b_ff1"].append(b1[None, :])
        acc["w_ff2"].append(w2)
        acc["b_ff2"].append(b2[None, :])
        for name in ("ln1", "ln2", "ln3"):
            acc[f"{name}_g"].append(jnp.ones((1, d_model), jnp.float32))
            acc[f"{name}_b"].append(jnp.zeros((1, d_model), jnp.float32))

    params = {k: jnp.stack(v, axis=0) for k, v in acc.items()}
    # MXU operands in bf16 (halves weight traffic); biases / LN params stay f32.
    for k in ("w_qkv_self", "w_o_self", "w_q_cross", "w_kv_cross",
              "w_o_cross", "w_ff1", "w_ff2"):
        params[k] = params[k].astype(MXU_DTYPE)
    params["pos_emb"] = pos_emb
    return params


# ---------------------------------------------------------------------------
if __name__ == "__main__":
    B, S, D, H, DFF, L, MAX_LEN = 2, 8, 32, 4, 64, 2, 64

    key = jax.random.PRNGKey(0)
    k_params, k_x, k_enc = jax.random.split(key, 3)
    params = init_stacked_params(k_params, D, DFF, L, MAX_LEN)
    x = jax.random.normal(k_x, (B, S, D), jnp.float32)
    enc_output = jax.random.normal(k_enc, (B, S, D), jnp.float32)

    fwd = jax.jit(functools.partial(cached_transformer_decoder_forward,
                                    num_heads=H))
    out = fwd(params, x, enc_output)
    out = jax.block_until_ready(out)

    assert out.shape == (B, S, D), out.shape
    assert bool(jnp.all(jnp.isfinite(out)))
    # TODO(synk): KV-cache update path (use_cache=True) is stateful Python-side
    # cache mutation; the default use_cache=False forward has no cache effect.
    print("KERNEL_OK")
</pallas_src>

<mosaic_0001>
module attributes {stable_mosaic.version = 11 : i64} {
  func.func @_fused_decoder_kernel(%arg0: i32, %arg1: i32, %arg2: memref<8x32xf32, #tpu.memory_space<vmem>>, %arg3: memref<8x32xf32, #tpu.memory_space<vmem>>, %arg4: memref<8x32xf32, #tpu.memory_space<vmem>>, %arg5: memref<1x32x96xbf16, #tpu.memory_space<vmem>>, %arg6: memref<1x1x96xf32, #tpu.memory_space<vmem>>, %arg7: memref<1x32x32xbf16, #tpu.memory_space<vmem>>, %arg8: memref<1x1x32xf32, #tpu.memory_space<vmem>>, %arg9: memref<1x32x32xbf16, #tpu.memory_space<vmem>>, %arg10: memref<1x1x32xf32, #tpu.memory_space<vmem>>, %arg11: memref<1x32x64xbf16, #tpu.memory_space<vmem>>, %arg12: memref<1x1x64xf32, #tpu.memory_space<vmem>>, %arg13: memref<1x32x32xbf16, #tpu.memory_space<vmem>>, %arg14: memref<1x1x32xf32, #tpu.memory_space<vmem>>, %arg15: memref<1x32x64xbf16, #tpu.memory_space<vmem>>, %arg16: memref<1x1x64xf32, #tpu.memory_space<vmem>>, %arg17: memref<1x64x32xbf16, #tpu.memory_space<vmem>>, %arg18: memref<1x1x32xf32, #tpu.memory_space<vmem>>, %arg19: memref<1x1x32xf32, #tpu.memory_space<vmem>>, %arg20: memref<1x1x32xf32, #tpu.memory_space<vmem>>, %arg21: memref<1x1x32xf32, #tpu.memory_space<vmem>>, %arg22: memref<1x1x32xf32, #tpu.memory_space<vmem>>, %arg23: memref<1x1x32xf32, #tpu.memory_space<vmem>>, %arg24: memref<1x1x32xf32, #tpu.memory_space<vmem>>, %arg25: memref<8x32xf32, #tpu.memory_space<vmem>>) attributes {dimension_semantics = [#tpu.dimension_semantics<parallel>, #tpu.dimension_semantics<arbitrary>], iteration_bounds = array<i64: 2, 2>, scalar_prefetch = 0 : i64, scratch_operands = 0 : i64, tpu.core_type = #tpu.core_type<tc>, window_params = [{transform_indices = @transform_0, window_bounds = array<i64: 8, 32>}, {pipeline_mode = #tpu.pipeline_mode<synchronous>, transform_indices = @transform_1, window_bounds = array<i64: 8, 32>}, {transform_indices = @transform_2, window_bounds = array<i64: 8, 32>}, {transform_indices = @transform_3, window_bounds = array<i64: 1, 32, 96>}, {transform_indices = @transform_4, window_bounds = array<i64: 1, 1, 96>}, {transform_indices = @transform_5, window_bounds = array<i64: 1, 32, 32>}, {transform_indices = @transform_6, window_bounds = array<i64: 1, 1, 32>}, {transform_indices = @transform_7, window_bounds = array<i64: 1, 32, 32>}, {transform_indices = @transform_8, window_bounds = array<i64: 1, 1, 32>}, {transform_indices = @transform_9, window_bounds = array<i64: 1, 32, 64>}, {transform_indices = @transform_10, window_bounds = array<i64: 1, 1, 64>}, {transform_indices = @transform_11, window_bounds = array<i64: 1, 32, 32>}, {transform_indices = @transform_12, window_bounds = array<i64: 1, 1, 32>}, {transform_indices = @transform_13, window_bounds = array<i64: 1, 32, 64>}, {transform_indices = @transform_14, window_bounds = array<i64: 1, 1, 64>}, {transform_indices = @transform_15, window_bounds = array<i64: 1, 64, 32>}, {transform_indices = @transform_16, window_bounds = array<i64: 1, 1, 32>}, {transform_indices = @transform_17, window_bounds = array<i64: 1, 1, 32>}, {transform_indices = @transform_18, window_bounds = array<i64: 1, 1, 32>}, {transform_indices = @transform_19, window_bounds = array<i64: 1, 1, 32>}, {transform_indices = @transform_20, window_bounds = array<i64: 1, 1, 32>}, {transform_indices = @transform_21, window_bounds = array<i64: 1, 1, 32>}, {transform_indices = @transform_22, window_bounds = array<i64: 1, 1, 32>}, {transform_indices = @transform_23, window_bounds = array<i64: 8, 32>}]} {
    %c0_i32 = arith.constant 0 : i32
    %0 = arith.cmpi eq, %arg1, %c0_i32 : i32
    %1 = arith.extui %0 : i1 to i32
    %c0_i32_0 = arith.constant 0 : i32
    %2 = arith.cmpi ne, %1, %c0_i32_0 : i32
    scf.if %2 {
      %c0_128 = arith.constant 0 : index
      %c0_129 = arith.constant 0 : index
      %320 = vector.load %arg2[%c0_128, %c0_129] : memref<8x32xf32, #tpu.memory_space<vmem>>, vector<8x32xf32>
      %c0_130 = arith.constant 0 : index
      %c0_131 = arith.constant 0 : index
      %321 = vector.load %arg3[%c0_130, %c0_131] : memref<8x32xf32, #tpu.memory_space<vmem>>, vector<8x32xf32>
      %322 = arith.addf %320, %321 : vector<8x32xf32>
      %c0_132 = arith.constant 0 : index
      %c0_133 = arith.constant 0 : index
      %323 = vector.load %arg25[%c0_132, %c0_133] : memref<8x32xf32, #tpu.memory_space<vmem>>, vector<8x32xf32>
      tpu.vector_store %arg25[%c0_132, %c0_133], %322 {strides = array<i32>} : memref<8x32xf32, #tpu.memory_space<vmem>>, vector<8x32xf32>,
    } else {
    }
    %c0 = arith.constant 0 : index
    %c0_1 = arith.constant 0 : index
    %3 = vector.load %arg25[%c0, %c0_1] : memref<8x32xf32, #tpu.memory_space<vmem>>, vector<8x32xf32>
    %c0_2 = arith.constant 0 : index
    %c0_3 = arith.constant 0 : index
    %c0_4 = arith.constant 0 : index
    %4 = vector.load %arg5[%c0_2, %c0_3, %c0_4] : memref<1x32x96xbf16, #tpu.memory_space<vmem>>, vector<1x32x96xbf16>
    %5 = vector.shape_cast %4 : vector<1x32x96xbf16> to vector<32x96xbf16>
    %c0_5 = arith.constant 0 : index
    %c0_6 = arith.constant 0 : index
    %c0_7 = arith.constant 0 : index
    %6 = vector.load %arg6[%c0_5, %c0_6, %c0_7] : memref<1x1x96xf32, #tpu.memory_space<vmem>>, vector<1x1x96xf32>
    %7 = vector.shape_cast %6 : vector<1x1x96xf32> to vector<1x96xf32>
    %8 = arith.truncf %3 : vector<8x32xf32> to vector<8x32xbf16>
    %cst = arith.constant dense<0.000000e+00> : vector<8x96xf32>
    %9 = tpu.matmul %8, %5, %cst {dimension_numbers = #tpu.dot_dimension_numbers<[1], [0], [0], [1], [0, 0, 1, 1], [], []>} : vector<8x32xbf16>, vector<32x96xbf16>, vector<8x96xf32> -> vector<8x96xf32>
    %10 = vector.broadcast %7 : vector<1x96xf32> to vector<8x96xf32>
    %11 = arith.addf %9, %10 : vector<8x96xf32>
    %12 = vector.extract_strided_slice %11 {offsets = [0, 0], sizes = [8, 32], strides = [1, 1]} : vector<8x96xf32> to vector<8x32xf32>
    %13 = vector.extract_strided_slice %11 {offsets = [0, 32], sizes = [8, 32], strides = [1, 1]} : vector<8x96xf32> to vector<8x32xf32>
    %14 = vector.extract_strided_slice %11 {offsets = [0, 64], sizes = [8, 32], strides = [1, 1]} : vector<8x96xf32> to vector<8x32xf32>
    %15 = vector.extract_strided_slice %12 {offsets = [0, 0], sizes = [8, 8], strides = [1, 1]} : vector<8x32xf32> to vector<8x8xf32>
    %16 = arith.truncf %15 : vector<8x8xf32> to vector<8x8xbf16>
    %17 = vector.extract_strided_slice %13 {offsets = [0, 0], sizes = [8, 8], strides = [1, 1]} : vector<8x32xf32> to vector<8x8xf32>
    %18 = arith.truncf %17 : vector<8x8xf32> to vector<8x8xbf16>
    %19 = vector.extract_strided_slice %14 {offsets = [0, 0], sizes = [8, 8], strides = [1, 1]} : vector<8x32xf32> to vector<8x8xf32>
    %20 = arith.truncf %19 : vector<8x8xf32> to vector<8x8xbf16>
    %cst_8 = arith.constant dense<0.000000e+00> : vector<8x8xf32>
    %21 = tpu.matmul %16, %18, %cst_8 {dimension_numbers = #tpu.dot_dimension_numbers<[1], [1], [0], [0], [0, 0, 1, 0], [], []>} : vector<8x8xbf16>, vector<8x8xbf16>, vector<8x8xf32> -> vector<8x8xf32>
    %cst_9 = arith.constant 0.353553385 : f32
    %22 = vector.broadcast %cst_9 : f32 to vector<8x8xf32>
    %23 = arith.mulf %21, %22 : vector<8x8xf32>
    %cst_10 = arith.constant dense<0xFF800000> : vector<8xf32>
    %24 = vector.multi_reduction <maximumf>, %23, %cst_10 [1] : vector<8x8xf32> to vector<8xf32>
    %25 = vector.shape_cast %24 : vector<8xf32> to vector<8x1xf32>
    %26 = vector.broadcast %25 : vector<8x1xf32> to vector<8x8xf32>
    %27 = arith.subf %23, %26 : vector<8x8xf32>
    %28 = math.exp %27 : vector<8x8xf32>
    %cst_11 = arith.constant dense<0.000000e+00> : vector<8xf32>
    %29 = vector.multi_reduction <add>, %28, %cst_11 [1] : vector<8x8xf32> to vector<8xf32>
    %30 = vector.shape_cast %29 : vector<8xf32> to vector<8x1xf32>
    %31 = tpu.reciprocal %30 {approx = true} : vector<8x1xf32> -> vector<8x1xf32>
    %32 = vector.broadcast %31 : vector<8x1xf32> to vector<8x8xf32>
    %33 = arith.mulf %28, %32 : vector<8x8xf32>
    %34 = arith.truncf %33 : vector<8x8xf32> to vector<8x8xbf16>
    %cst_12 = arith.constant dense<0.000000e+00> : vector<8x8xf32>
    %35 = tpu.matmul %34, %20, %cst_12 {dimension_numbers = #tpu.dot_dimension_numbers<[1], [0], [0], [1], [0, 0, 1, 1], [], []>} : vector<8x8xbf16>, vector<8x8xbf16>, vector<8x8xf32> -> vector<8x8xf32>
    %36 = vector.extract_strided_slice %12 {offsets = [0, 8], sizes = [8, 8], strides = [1, 1]} : vector<8x32xf32> to vector<8x8xf32>
    %37 = arith.truncf %36 : vector<8x8xf32> to vector<8x8xbf16>
    %38 = vector.extract_strided_slice %13 {offsets = [0, 8], sizes = [8, 8], strides = [1, 1]} : vector<8x32xf32> to vector<8x8xf32>
    %39 = arith.truncf %38 : vector<8x8xf32> to vector<8x8xbf16>
    %40 = vector.extract_strided_slice %14 {offsets = [0, 8], sizes = [8, 8], strides = [1, 1]} : vector<8x32xf32> to vector<8x8xf32>
    %41 = arith.truncf %40 : vector<8x8xf32> to vector<8x8xbf16>
    %cst_13 = arith.constant dense<0.000000e+00> : vector<8x8xf32>
    %42 = tpu.matmul %37, %39, %cst_13 {dimension_numbers = #tpu.dot_dimension_numbers<[1], [1], [0], [0], [0, 0, 1, 0], [], []>} : vector<8x8xbf16>, vector<8x8xbf16>, vector<8x8xf32> -> vector<8x8xf32>
    %cst_14 = arith.constant 0.353553385 : f32
    %43 = vector.broadcast %cst_14 : f32 to vector<8x8xf32>
    %44 = arith.mulf %42, %43 : vector<8x8xf32>
    %cst_15 = arith.constant dense<0xFF800000> : vector<8xf32>
    %45 = vector.multi_reduction <maximumf>, %44, %cst_15 [1] : vector<8x8xf32> to vector<8xf32>
    %46 = vector.shape_cast %45 : vector<8xf32> to vector<8x1xf32>
    %47 = vector.broadcast %46 : vector<8x1xf32> to vector<8x8xf32>
    %48 = arith.subf %44, %47 : vector<8x8xf32>
    %49 = math.exp %48 : vector<8x8xf32>
    %cst_16 = arith.constant dense<0.000000e+00> : vector<8xf32>
    %50 = vector.multi_reduction <add>, %49, %cst_16 [1] : vector<8x8xf32> to vector<8xf32>
    %51 = vector.shape_cast %50 : vector<8xf32> to vector<8x1xf32>
    %52 = tpu.reciprocal %51 {approx = true} : vector<8x1xf32> -> vector<8x1xf32>
    %53 = vector.broadcast %52 : vector<8x1xf32> to vector<8x8xf32>
    %54 = arith.mulf %49, %53 : vector<8x8xf32>
    %55 = arith.truncf %54 : vector<8x8xf32> to vector<8x8xbf16>
    %cst_17 = arith.constant dense<0.000000e+00> : vector<8x8xf32>
    %56 = tpu.matmul %55, %41, %cst_17 {dimension_numbers = #tpu.dot_dimension_numbers<[1], [0], [0], [1], [0, 0, 1, 1], [], []>} : vector<8x8xbf16>, vector<8x8xbf16>, vector<8x8xf32> -> vector<8x8xf32>
    %57 = vector.extract_strided_slice %12 {offsets = [0, 16], sizes = [8, 8], strides = [1, 1]} : vector<8x32xf32> to vector<8x8xf32>
    %58 = arith.truncf %57 : vector<8x8xf32> to vector<8x8xbf16>
    %59 = vector.extract_strided_slice %13 {offsets = [0, 16], sizes = [8, 8], strides = [1, 1]} : vector<8x32xf32> to vector<8x8xf32>
    %60 = arith.truncf %59 : vector<8x8xf32> to vector<8x8xbf16>
    %61 = vector.extract_strided_slice %14 {offsets = [0, 16], sizes = [8, 8], strides = [1, 1]} : vector<8x32xf32> to vector<8x8xf32>
    %62 = arith.truncf %61 : vector<8x8xf32> to vector<8x8xbf16>
    %cst_18 = arith.constant dense<0.000000e+00> : vector<8x8xf32>
    %63 = tpu.matmul %58, %60, %cst_18 {dimension_numbers = #tpu.dot_dimension_numbers<[1], [1], [0], [0], [0, 0, 1, 0], [], []>} : vector<8x8xbf16>, vector<8x8xbf16>, vector<8x8xf32> -> vector<8x8xf32>
    %cst_19 = arith.constant 0.353553385 : f32
    %64 = vector.broadcast %cst_19 : f32 to vector<8x8xf32>
    %65 = arith.mulf %63, %64 : vector<8x8xf32>
    %cst_20 = arith.constant dense<0xFF800000> : vector<8xf32>
    %66 = vector.multi_reduction <maximumf>, %65, %cst_20 [1] : vector<8x8xf32> to vector<8xf32>
    %67 = vector.shape_cast %66 : vector<8xf32> to vector<8x1xf32>
    %68 = vector.broadcast %67 : vector<8x1xf32> to vector<8x8xf32>
    %69 = arith.subf %65, %68 : vector<8x8xf32>
    %70 = math.exp %69 : vector<8x8xf32>
    %cst_21 = arith.constant dense<0.000000e+00> : vector<8xf32>
    %71 = vector.multi_reduction <add>, %70, %cst_21 [1] : vector<8x8xf32> to vector<8xf32>
    %72 = vector.shape_cast %71 : vector<8xf32> to vector<8x1xf32>
    %73 = tpu.reciprocal %72 {approx = true} : vector<8x1xf32> -> vector<8x1xf32>
    %74 = vector.broadcast %73 : vector<8x1xf32> to vector<8x8xf32>
    %75 = arith.mulf %70, %74 : vector<8x8xf32>
    %76 = arith.truncf %75 : vector<8x8xf32> to vector<8x8xbf16>
    %cst_22 = arith.constant dense<0.000000e+00> : vector<8x8xf32>
    %77 = tpu.matmul %76, %62, %cst_22 {dimension_numbers = #tpu.dot_dimension_numbers<[1], [0], [0], [1], [0, 0, 1, 1], [], []>} : vector<8x8xbf16>, vector<8x8xbf16>, vector<8x8xf32> -> vector<8x8xf32>
    %78 = vector.extract_strided_slice %12 {offsets = [0, 24], sizes = [8, 8], strides = [1, 1]} : vector<8x32xf32> to vector<8x8xf32>
    %79 = arith.truncf %78 : vector<8x8xf32> to vector<8x8xbf16>
    %80 = vector.extract_strided_slice %13 {offsets = [0, 24], sizes = [8, 8], strides = [1, 1]} : vector<8x32xf32> to vector<8x8xf32>
    %81 = arith.truncf %80 : vector<8x8xf32> to vector<8x8xbf16>
    %82 = vector.extract_strided_slice %14 {offsets = [0, 24], sizes = [8, 8], strides = [1, 1]} : vector<8x32xf32> to vector<8x8xf32>
    %83 = arith.truncf %82 : vector<8x8xf32> to vector<8x8xbf16>
    %cst_23 = arith.constant dense<0.000000e+00> : vector<8x8xf32>
    %84 = tpu.matmul %79, %81, %cst_23 {dimension_numbers = #tpu.dot_dimension_numbers<[1], [1], [0], [0], [0, 0, 1, 0], [], []>} : vector<8x8xbf16>, vector<8x8xbf16>, vector<8x8xf32> -> vector<8x8xf32>
    %cst_24 = arith.constant 0.353553385 : f32
    %85 = vector.broadcast %cst_24 : f32 to vector<8x8xf32>
    %86 = arith.mulf %84, %85 : vector<8x8xf32>
    %cst_25 = arith.constant dense<0xFF800000> : vector<8xf32>
    %87 = vector.multi_reduction <maximumf>, %86, %cst_25 [1] : vector<8x8xf32> to vector<8xf32>
    %88 = vector.shape_cast %87 : vector<8xf32> to vector<8x1xf32>
    %89 = vector.broadcast %88 : vector<8x1xf32> to vector<8x8xf32>
    %90 = arith.subf %86, %89 : vector<8x8xf32>
    %91 = math.exp %90 : vector<8x8xf32>
    %cst_26 = arith.constant dense<0.000000e+00> : vector<8xf32>
    %92 = vector.multi_reduction <add>, %91, %cst_26 [1] : vector<8x8xf32> to vector<8xf32>
    %93 = vector.shape_cast %92 : vector<8xf32> to vector<8x1xf32>
    %94 = tpu.reciprocal %93 {approx = true} : vector<8x1xf32> -> vector<8x1xf32>
    %95 = vector.broadcast %94 : vector<8x1xf32> to vector<8x8xf32>
    %96 = arith.mulf %91, %95 : vector<8x8xf32>
    %97 = arith.truncf %96 : vector<8x8xf32> to vector<8x8xbf16>
    %cst_27 = arith.constant dense<0.000000e+00> : vector<8x8xf32>
    %98 = tpu.matmul %97, %83, %cst_27 {dimension_numbers = #tpu.dot_dimension_numbers<[1], [0], [0], [1], [0, 0, 1, 1], [], []>} : vector<8x8xbf16>, vector<8x8xbf16>, vector<8x8xf32> -> vector<8x8xf32>
    %99 = tpu.concatenate %35, %56, %77, %98 in 1 : vector<8x8xf32>, vector<8x8xf32>, vector<8x8xf32>, vector<8x8xf32> -> vector<8x32xf32>
    %c0_28 = arith.constant 0 : index
    %c0_29 = arith.constant 0 : index
    %c0_30 = arith.constant 0 : index
    %100 = vector.load %arg7[%c0_28, %c0_29, %c0_30] : memref<1x32x32xbf16, #tpu.memory_space<vmem>>, vector<1x32x32xbf16>
    %101 = vector.shape_cast %100 : vector<1x32x32xbf16> to vector<32x32xbf16>
    %c0_31 = arith.constant 0 : index
    %c0_32 = arith.constant 0 : index
    %c0_33 = arith.constant 0 : index
    %102 = vector.load %arg8[%c0_31, %c0_32, %c0_33] : memref<1x1x32xf32, #tpu.memory_space<vmem>>, vector<1x1x32xf32>
    %103 = vector.shape_cast %102 : vector<1x1x32xf32> to vector<1x32xf32>
    %104 = arith.truncf %99 : vector<8x32xf32> to vector<8x32xbf16>
    %cst_34 = arith.constant dense<0.000000e+00> : vector<8x32xf32>
    %105 = tpu.matmul %104, %101, %cst_34 {dimension_numbers = #tpu.dot_dimension_numbers<[1], [0], [0], [1], [0, 0, 1, 1], [], []>} : vector<8x32xbf16>, vector<32x32xbf16>, vector<8x32xf32> -> vector<8x32xf32>
    %106 = vector.broadcast %103 : vector<1x32xf32> to vector<8x32xf32>
    %107 = arith.addf %105, %106 : vector<8x32xf32>
    %108 = arith.addf %3, %107 : vector<8x32xf32>
    %c0_35 = arith.constant 0 : index
    %c0_36 = arith.constant 0 : index
    %c0_37 = arith.constant 0 : index
    %109 = vector.load %arg19[%c0_35, %c0_36, %c0_37] : memref<1x1x32xf32, #tpu.memory_space<vmem>>, vector<1x1x32xf32>
    %110 = vector.shape_cast %109 : vector<1x1x32xf32> to vector<1x32xf32>
    %c0_38 = arith.constant 0 : index
    %c0_39 = arith.constant 0 : index
    %c0_40 = arith.constant 0 : index
    %111 = vector.load %arg20[%c0_38, %c0_39, %c0_40] : memref<1x1x32xf32, #tpu.memory_space<vmem>>, vector<1x1x32xf32>
    %112 = vector.shape_cast %111 : vector<1x1x32xf32> to vector<1x32xf32>
    %cst_41 = arith.constant dense<0.000000e+00> : vector<8xf32>
    %113 = vector.multi_reduction <add>, %108, %cst_41 [1] : vector<8x32xf32> to vector<8xf32>
    %114 = vector.shape_cast %113 : vector<8xf32> to vector<8x1xf32>
    %cst_42 = arith.constant 3.200000e+01 : f32
    %115 = vector.broadcast %cst_42 : f32 to vector<8x1xf32>
    %116 = arith.divf %114, %115 : vector<8x1xf32>
    %117 = vector.broadcast %116 : vector<8x1xf32> to vector<8x32xf32>
    %118 = arith.subf %108, %117 : vector<8x32xf32>
    %119 = arith.mulf %118, %118 : vector<8x32xf32>
    %cst_43 = arith.constant dense<0.000000e+00> : vector<8xf32>
    %120 = vector.multi_reduction <add>, %119, %cst_43 [1] : vector<8x32xf32> to vector<8xf32>
    %121 = vector.shape_cast %120 : vector<8xf32> to vector<8x1xf32>
    %cst_44 = arith.constant 3.200000e+01 : f32
    %122 = vector.broadcast %cst_44 : f32 to vector<8x1xf32>
    %123 = arith.divf %121, %122 : vector<8x1xf32>
    %124 = vector.broadcast %116 : vector<8x1xf32> to vector<8x32xf32>
    %125 = arith.subf %108, %124 : vector<8x32xf32>
    %cst_45 = arith.constant 9.99999974E-6 : f32
    %126 = vector.broadcast %cst_45 : f32 to vector<8x1xf32>
    %127 = arith.addf %123, %126 : vector<8x1xf32>
    %128 = math.rsqrt %127 : vector<8x1xf32>
    %129 = vector.broadcast %128 : vector<8x1xf32> to vector<8x32xf32>
    %130 = arith.mulf %125, %129 : vector<8x32xf32>
    %131 = vector.broadcast %110 : vector<1x32xf32> to vector<8x32xf32>
    %132 = arith.mulf %130, %131 : vector<8x32xf32>
    %133 = vector.broadcast %112 : vector<1x32xf32> to vector<8x32xf32>
    %134 = arith.addf %132, %133 : vector<8x32xf32>
    %c0_46 = arith.constant 0 : index
    %c0_47 = arith.constant 0 : index
    %135 = vector.load %arg4[%c0_46, %c0_47] : memref<8x32xf32, #tpu.memory_space<vmem>>, vector<8x32xf32>
    %c0_48 = arith.constant 0 : index
    %c0_49 = arith.constant 0 : index
    %c0_50 = arith.constant 0 : index
    %136 = vector.load %arg9[%c0_48, %c0_49, %c0_50] : memref<1x32x32xbf16, #tpu.memory_space<vmem>>, vector<1x32x32xbf16>
    %137 = vector.shape_cast %136 : vector<1x32x32xbf16> to vector<32x32xbf16>
    %c0_51 = arith.constant 0 : index
    %c0_52 = arith.constant 0 : index
    %c0_53 = arith.constant 0 : index
    %138 = vector.load %arg10[%c0_51, %c0_52, %c0_53] : memref<1x1x32xf32, #tpu.memory_space<vmem>>, vector<1x1x32xf32>
    %139 = vector.shape_cast %138 : vector<1x1x32xf32> to vector<1x32xf32>
    %140 = arith.truncf %134 : vector<8x32xf32> to vector<8x32xbf16>
    %cst_54 = arith.constant dense<0.000000e+00> : vector<8x32xf32>
    %141 = tpu.matmul %140, %137, %cst_54 {dimension_numbers = #tpu.dot_dimension_numbers<[1], [0], [0], [1], [0, 0, 1, 1], [], []>} : vector<8x32xbf16>, vector<32x32xbf16>, vector<8x32xf32> -> vector<8x32xf32>
    %142 = vector.broadcast %139 : vector<1x32xf32> to vector<8x32xf32>
    %143 = arith.addf %141, %142 : vector<8x32xf32>
    %c0_55 = arith.constant 0 : index
    %c0_56 = arith.constant 0 : index
    %c0_57 = arith.constant 0 : index
    %144 = vector.load %arg11[%c0_55, %c0_56, %c0_57] : memref<1x32x64xbf16, #tpu.memory_space<vmem>>, vector<1x32x64xbf16>
    %145 = vector.shape_cast %144 : vector<1x32x64xbf16> to vector<32x64xbf16>
    %c0_58 = arith.constant 0 : index
    %c0_59 = arith.constant 0 : index
    %c0_60 = arith.constant 0 : index
    %146 = vector.load %arg12[%c0_58, %c0_59, %c0_60] : memref<1x1x64xf32, #tpu.memory_space<vmem>>, vector<1x1x64xf32>
    %147 = vector.shape_cast %146 : vector<1x1x64xf32> to vector<1x64xf32>
    %148 = arith.truncf %135 : vector<8x32xf32> to vector<8x32xbf16>
    %cst_61 = arith.constant dense<0.000000e+00> : vector<8x64xf32>
    %149 = tpu.matmul %148, %145, %cst_61 {dimension_numbers = #tpu.dot_dimension_numbers<[1], [0], [0], [1], [0, 0, 1, 1], [], []>} : vector<8x32xbf16>, vector<32x64xbf16>, vector<8x64xf32> -> vector<8x64xf32>
    %150 = vector.broadcast %147 : vector<1x64xf32> to vector<8x64xf32>
    %151 = arith.addf %149, %150 : vector<8x64xf32>
    %152 = vector.extract_strided_slice %151 {offsets = [0, 0], sizes = [8, 32], strides = [1, 1]} : vector<8x64xf32> to vector<8x32xf32>
    %153 = vector.extract_strided_slice %151 {offsets = [0, 32], sizes = [8, 32], strides = [1, 1]} : vector<8x64xf32> to vector<8x32xf32>
    %154 = vector.extract_strided_slice %143 {offsets = [0, 0], sizes = [8, 8], strides = [1, 1]} : vector<8x32xf32> to vector<8x8xf32>
    %155 = arith.truncf %154 : vector<8x8xf32> to vector<8x8xbf16>
    %156 = vector.extract_strided_slice %152 {offsets = [0, 0], sizes = [8, 8], strides = [1, 1]} : vector<8x32xf32> to vector<8x8xf32>
    %157 = arith.truncf %156 : vector<8x8xf32> to vector<8x8xbf16>
    %158 = vector.extract_strided_slice %153 {offsets = [0, 0], sizes = [8, 8], strides = [1, 1]} : vector<8x32xf32> to vector<8x8xf32>
    %159 = arith.truncf %158 : vector<8x8xf32> to vector<8x8xbf16>
    %cst_62 = arith.constant dense<0.000000e+00> : vector<8x8xf32>
    %160 = tpu.matmul %155, %157, %cst_62 {dimension_numbers = #tpu.dot_dimension_numbers<[1], [1], [0], [0], [0, 0, 1, 0], [], []>} : vector<8x8xbf16>, vector<8x8xbf16>, vector<8x8xf32> -> vector<8x8xf32>
    %cst_63 = arith.constant 0.353553385 : f32
    %161 = vector.broadcast %cst_63 : f32 to vector<8x8xf32>
    %162 = arith.mulf %160, %161 : vector<8x8xf32>
    %cst_64 = arith.constant dense<0xFF800000> : vector<8xf32>
    %163 = vector.multi_reduction <maximumf>, %162, %cst_64 [1] : vector<8x8xf32> to vector<8xf32>
    %164 = vector.shape_cast %163 : vector<8xf32> to vector<8x1xf32>
    %165 = vector.broadcast %164 : vector<8x1xf32> to vector<8x8xf32>
    %166 = arith.subf %162, %165 : vector<8x8xf32>
    %167 = math.exp %166 : vector<8x8xf32>
    %cst_65 = arith.constant dense<0.000000e+00> : vector<8xf32>
    %168 = vector.multi_reduction <add>, %167, %cst_65 [1] : vector<8x8xf32> to vector<8xf32>
    %169 = vector.shape_cast %168 : vector<8xf32> to vector<8x1xf32>
    %170 = tpu.reciprocal %169 {approx = true} : vector<8x1xf32> -> vector<8x1xf32>
    %171 = vector.broadcast %170 : vector<8x1xf32> to vector<8x8xf32>
    %172 = arith.mulf %167, %171 : vector<8x8xf32>
    %173 = arith.truncf %172 : vector<8x8xf32> to vector<8x8xbf16>
    %cst_66 = arith.constant dense<0.000000e+00> : vector<8x8xf32>
    %174 = tpu.matmul %173, %159, %cst_66 {dimension_numbers = #tpu.dot_dimension_numbers<[1], [0], [0], [1], [0, 0, 1, 1], [], []>} : vector<8x8xbf16>, vector<8x8xbf16>, vector<8x8xf32> -> vector<8x8xf32>
    %175 = vector.extract_strided_slice %143 {offsets = [0, 8], sizes = [8, 8], strides = [1, 1]} : vector<8x32xf32> to vector<8x8xf32>
    %176 = arith.truncf %175 : vector<8x8xf32> to vector<8x8xbf16>
    %177 = vector.extract_strided_slice %152 {offsets = [0, 8], sizes = [8, 8], strides = [1, 1]} : vector<8x32xf32> to vector<8x8xf32>
    %178 = arith.truncf %177 : vector<8x8xf32> to vector<8x8xbf16>
    %179 = vector.extract_strided_slice %153 {offsets = [0, 8], sizes = [8, 8], strides = [1, 1]} : vector<8x32xf32> to vector<8x8xf32>
    %180 = arith.truncf %179 : vector<8x8xf32> to vector<8x8xbf16>
    %cst_67 = arith.constant dense<0.000000e+00> : vector<8x8xf32>
    %181 = tpu.matmul %176, %178, %cst_67 {dimension_numbers = #tpu.dot_dimension_numbers<[1], [1], [0], [0], [0, 0, 1, 0], [], []>} : vector<8x8xbf16>, vector<8x8xbf16>, vector<8x8xf32> -> vector<8x8xf32>
    %cst_68 = arith.constant 0.353553385 : f32
    %182 = vector.broadcast %cst_68 : f32 to vector<8x8xf32>
    %183 = arith.mulf %181, %182 : vector<8x8xf32>
    %cst_69 = arith.constant dense<0xFF800000> : vector<8xf32>
    %184 = vector.multi_reduction <maximumf>, %183, %cst_69 [1] : vector<8x8xf32> to vector<8xf32>
    %185 = vector.shape_cast %184 : vector<8xf32> to vector<8x1xf32>
    %186 = vector.broadcast %185 : vector<8x1xf32> to vector<8x8xf32>
    %187 = arith.subf %183, %186 : vector<8x8xf32>
    %188 = math.exp %187 : vector<8x8xf32>
    %cst_70 = arith.constant dense<0.000000e+00> : vector<8xf32>
    %189 = vector.multi_reduction <add>, %188, %cst_70 [1] : vector<8x8xf32> to vector<8xf32>
    %190 = vector.shape_cast %189 : vector<8xf32> to vector<8x1xf32>
    %191 = tpu.reciprocal %190 {approx = true} : vector<8x1xf32> -> vector<8x1xf32>
    %192 = vector.broadcast %191 : vector<8x1xf32> to vector<8x8xf32>
    %193 = arith.mulf %188, %192 : vector<8x8xf32>
    %194 = arith.truncf %193 : vector<8x8xf32> to vector<8x8xbf16>
    %cst_71 = arith.constant dense<0.000000e+00> : vector<8x8xf32>
    %195 = tpu.matmul %194, %180, %cst_71 {dimension_numbers = #tpu.dot_dimension_numbers<[1], [0], [0], [1], [0, 0, 1, 1], [], []>} : vector<8x8xbf16>, vector<8x8xbf16>, vector<8x8xf32> -> vector<8x8xf32>
    %196 = vector.extract_strided_slice %143 {offsets = [0, 16], sizes = [8, 8], strides = [1, 1]} : vector<8x32xf32> to vector<8x8xf32>
    %197 = arith.truncf %196 : vector<8x8xf32> to vector<8x8xbf16>
    %198 = vector.extract_strided_slice %152 {offsets = [0, 16], sizes = [8, 8], strides = [1, 1]} : vector<8x32xf32> to vector<8x8xf32>
    %199 = arith.truncf %198 : vector<8x8xf32> to vector<8x8xbf16>
    %200 = vector.extract_strided_slice %153 {offsets = [0, 16], sizes = [8, 8], strides = [1, 1]} : vector<8x32xf32> to vector<8x8xf32>
    %201 = arith.truncf %200 : vector<8x8xf32> to vector<8x8xbf16>
    %cst_72 = arith.constant dense<0.000000e+00> : vector<8x8xf32>
    %202 = tpu.matmul %197, %199, %cst_72 {dimension_numbers = #tpu.dot_dimension_numbers<[1], [1], [0], [0], [0, 0, 1, 0], [], []>} : vector<8x8xbf16>, vector<8x8xbf16>, vector<8x8xf32> -> vector<8x8xf32>
    %cst_73 = arith.constant 0.353553385 : f32
    %203 = vector.broadcast %cst_73 : f32 to vector<8x8xf32>
    %204 = arith.mulf %202, %203 : vector<8x8xf32>
    %cst_74 = arith.constant dense<0xFF800000> : vector<8xf32>
    %205 = vector.multi_reduction <maximumf>, %204, %cst_74 [1] : vector<8x8xf32> to vector<8xf32>
    %206 = vector.shape_cast %205 : vector<8xf32> to vector<8x1xf32>
    %207 = vector.broadcast %206 : vector<8x1xf32> to vector<8x8xf32>
    %208 = arith.subf %204, %207 : vector<8x8xf32>
    %209 = math.exp %208 : vector<8x8xf32>
    %cst_75 = arith.constant dense<0.000000e+00> : vector<8xf32>
    %210 = vector.multi_reduction <add>, %209, %cst_75 [1] : vector<8x8xf32> to vector<8xf32>
    %211 = vector.shape_cast %210 : vector<8xf32> to vector<8x1xf32>
    %212 = tpu.reciprocal %211 {approx = true} : vector<8x1xf32> -> vector<8x1xf32>
    %213 = vector.broadcast %212 : vector<8x1xf32> to vector<8x8xf32>
    %214 = arith.mulf %209, %213 : vector<8x8xf32>
    %215 = arith.truncf %214 : vector<8x8xf32> to vector<8x8xbf16>
    %cst_76 = arith.constant dense<0.000000e+00> : vector<8x8xf32>
    %216 = tpu.matmul %215, %201, %cst_76 {dimension_numbers = #tpu.dot_dimension_numbers<[1], [0], [0], [1], [0, 0, 1, 1], [], []>} : vector<8x8xbf16>, vector<8x8xbf16>, vector<8x8xf32> -> vector<8x8xf32>
    %217 = vector.extract_strided_slice %143 {offsets = [0, 24], sizes = [8, 8], strides = [1, 1]} : vector<8x32xf32> to vector<8x8xf32>
    %218 = arith.truncf %217 : vector<8x8xf32> to vector<8x8xbf16>
    %219 = vector.extract_strided_slice %152 {offsets = [0, 24], sizes = [8, 8], strides = [1, 1]} : vector<8x32xf32> to vector<8x8xf32>
    %220 = arith.truncf %219 : vector<8x8xf32> to vector<8x8xbf16>
    %221 = vector.extract_strided_slice %153 {offsets = [0, 24], sizes = [8, 8], strides = [1, 1]} : vector<8x32xf32> to vector<8x8xf32>
    %222 = arith.truncf %221 : vector<8x8xf32> to vector<8x8xbf16>
    %cst_77 = arith.constant dense<0.000000e+00> : vector<8x8xf32>
    %223 = tpu.matmul %218, %220, %cst_77 {dimension_numbers = #tpu.dot_dimension_numbers<[1], [1], [0], [0], [0, 0, 1, 0], [], []>} : vector<8x8xbf16>, vector<8x8xbf16>, vector<8x8xf32> -> vector<8x8xf32>
    %cst_78 = arith.constant 0.353553385 : f32
    %224 = vector.broadcast %cst_78 : f32 to vector<8x8xf32>
    %225 = arith.mulf %223, %224 : vector<8x8xf32>
    %cst_79 = arith.constant dense<0xFF800000> : vector<8xf32>
    %226 = vector.multi_reduction <maximumf>, %225, %cst_79 [1] : vector<8x8xf32> to vector<8xf32>
    %227 = vector.shape_cast %226 : vector<8xf32> to vector<8x1xf32>
    %228 = vector.broadcast %227 : vector<8x1xf32> to vector<8x8xf32>
    %229 = arith.subf %225, %228 : vector<8x8xf32>
    %230 = math.exp %229 : vector<8x8xf32>
    %cst_80 = arith.constant dense<0.000000e+00> : vector<8xf32>
    %231 = vector.multi_reduction <add>, %230, %cst_80 [1] : vector<8x8xf32> to vector<8xf32>
    %232 = vector.shape_cast %231 : vector<8xf32> to vector<8x1xf32>
    %233 = tpu.reciprocal %232 {approx = true} : vector<8x1xf32> -> vector<8x1xf32>
    %234 = vector.broadcast %233 : vector<8x1xf32> to vector<8x8xf32>
    %235 = arith.mulf %230, %234 : vector<8x8xf32>
    %236 = arith.truncf %235 : vector<8x8xf32> to vector<8x8xbf16>
    %cst_81 = arith.constant dense<0.000000e+00> : vector<8x8xf32>
    %237 = tpu.matmul %236, %222, %cst_81 {dimension_numbers = #tpu.dot_dimension_numbers<[1], [0], [0], [1], [0, 0, 1, 1], [], []>} : vector<8x8xbf16>, vector<8x8xbf16>, vector<8x8xf32> -> vector<8x8xf32>
    %238 = tpu.concatenate %174, %195, %216, %237 in 1 : vector<8x8xf32>, vector<8x8xf32>, vector<8x8xf32>, vector<8x8xf32> -> vector<8x32xf32>
    %c0_82 = arith.constant 0 : index
    %c0_83 = arith.constant 0 : index
    %c0_84 = arith.constant 0 : index
    %239 = vector.load %arg13[%c0_82, %c0_83, %c0_84] : memref<1x32x32xbf16, #tpu.memory_space<vmem>>, vector<1x32x32xbf16>
    %240 = vector.shape_cast %239 : vector<1x32x32xbf16> to vector<32x32xbf16>
    %c0_85 = arith.constant 0 : index
    %c0_86 = arith.constant 0 : index
    %c0_87 = arith.constant 0 : index
    %241 = vector.load %arg14[%c0_85, %c0_86, %c0_87] : memref<1x1x32xf32, #tpu.memory_space<vmem>>, vector<1x1x32xf32>
    %242 = vector.shape_cast %241 : vector<1x1x32xf32> to vector<1x32xf32>
    %243 = arith.truncf %238 : vector<8x32xf32> to vector<8x32xbf16>
    %cst_88 = arith.constant dense<0.000000e+00> : vector<8x32xf32>
    %244 = tpu.matmul %243, %240, %cst_88 {dimension_numbers = #tpu.dot_dimension_numbers<[1], [0], [0], [1], [0, 0, 1, 1], [], []>} : vector<8x32xbf16>, vector<32x32xbf16>, vector<8x32xf32> -> vector<8x32xf32>
    %245 = vector.broadcast %242 : vector<1x32xf32> to vector<8x32xf32>
    %246 = arith.addf %244, %245 : vector<8x32xf32>
    %247 = arith.addf %134, %246 : vector<8x32xf32>
    %c0_89 = arith.constant 0 : index
    %c0_90 = arith.constant 0 : index
    %c0_91 = arith.constant 0 : index
    %248 = vector.load %arg21[%c0_89, %c0_90, %c0_91] : memref<1x1x32xf32, #tpu.memory_space<vmem>>, vector<1x1x32xf32>
    %249 = vector.shape_cast %248 : vector<1x1x32xf32> to vector<1x32xf32>
    %c0_92 = arith.constant 0 : index
    %c0_93 = arith.constant 0 : index
    %c0_94 = arith.constant 0 : index
    %250 = vector.load %arg22[%c0_92, %c0_93, %c0_94] : memref<1x1x32xf32, #tpu.memory_space<vmem>>, vector<1x1x32xf32>
    %251 = vector.shape_cast %250 : vector<1x1x32xf32> to vector<1x32xf32>
    %cst_95 = arith.constant dense<0.000000e+00> : vector<8xf32>
    %252 = vector.multi_reduction <add>, %247, %cst_95 [1] : vector<8x32xf32> to vector<8xf32>
    %253 = vector.shape_cast %252 : vector<8xf32> to vector<8x1xf32>
    %cst_96 = arith.constant 3.200000e+01 : f32
    %254 = vector.broadcast %cst_96 : f32 to vector<8x1xf32>
    %255 = arith.divf %253, %254 : vector<8x1xf32>
    %256 = vector.broadcast %255 : vector<8x1xf32> to vector<8x32xf32>
    %257 = arith.subf %247, %256 : vector<8x32xf32>
    %258 = arith.mulf %257, %257 : vector<8x32xf32>
    %cst_97 = arith.constant dense<0.000000e+00> : vector<8xf32>
    %259 = vector.multi_reduction <add>, %258, %cst_97 [1] : vector<8x32xf32> to vector<8xf32>
    %260 = vector.shape_cast %259 : vector<8xf32> to vector<8x1xf32>
    %cst_98 = arith.constant 3.200000e+01 : f32
    %261 = vector.broadcast %cst_98 : f32 to vector<8x1xf32>
    %262 = arith.divf %260, %261 : vector<8x1xf32>
    %263 = vector.broadcast %255 : vector<8x1xf32> to vector<8x32xf32>
    %264 = arith.subf %247, %263 : vector<8x32xf32>
    %cst_99 = arith.constant 9.99999974E-6 : f32
    %265 = vector.broadcast %cst_99 : f32 to vector<8x1xf32>
    %266 = arith.addf %262, %265 : vector<8x1xf32>
    %267 = math.rsqrt %266 : vector<8x1xf32>
    %268 = vector.broadcast %267 : vector<8x1xf32> to vector<8x32xf32>
    %269 = arith.mulf %264, %268 : vector<8x32xf32>
    %270 = vector.broadcast %249 : vector<1x32xf32> to vector<8x32xf32>
    %271 = arith.mulf %269, %270 : vector<8x32xf32>
    %272 = vector.broadcast %251 : vector<1x32xf32> to vector<8x32xf32>
    %273 = arith.addf %271, %272 : vector<8x32xf32>
    %c0_100 = arith.constant 0 : index
    %c0_101 = arith.constant 0 : index
    %c0_102 = arith.constant 0 : index
    %274 = vector.load %arg15[%c0_100, %c0_101, %c0_102] : memref<1x32x64xbf16, #tpu.memory_space<vmem>>, vector<1x32x64xbf16>
    %275 = vector.shape_cast %274 : vector<1x32x64xbf16> to vector<32x64xbf16>
    %c0_103 = arith.constant 0 : index
    %c0_104 = arith.constant 0 : index
    %c0_105 = arith.constant 0 : index
    %276 = vector.load %arg16[%c0_103, %c0_104, %c0_105] : memref<1x1x64xf32, #tpu.memory_space<vmem>>, vector<1x1x64xf32>
    %277 = vector.shape_cast %276 : vector<1x1x64xf32> to vector<1x64xf32>
    %278 = arith.truncf %273 : vector<8x32xf32> to vector<8x32xbf16>
    %cst_106 = arith.constant dense<0.000000e+00> : vector<8x64xf32>
    %279 = tpu.matmul %278, %275, %cst_106 {dimension_numbers = #tpu.dot_dimension_numbers<[1], [0], [0], [1], [0, 0, 1, 1], [], []>} : vector<8x32xbf16>, vector<32x64xbf16>, vector<8x64xf32> -> vector<8x64xf32>
    %280 = vector.broadcast %277 : vector<1x64xf32> to vector<8x64xf32>
    %281 = arith.addf %279, %280 : vector<8x64xf32>
    %cst_107 = arith.constant 0.000000e+00 : f32
    %282 = vector.broadcast %cst_107 : f32 to vector<8x64xf32>
    %283 = arith.maximumf %281, %282 : vector<8x64xf32>
    %c0_108 = arith.constant 0 : index
    %c0_109 = arith.constant 0 : index
    %c0_110 = arith.constant 0 : index
    %284 = vector.load %arg17[%c0_108, %c0_109, %c0_110] : memref<1x64x32xbf16, #tpu.memory_space<vmem>>, vector<1x64x32xbf16>
    %285 = vector.shape_cast %284 : vector<1x64x32xbf16> to vector<64x32xbf16>
    %c0_111 = arith.constant 0 : index
    %c0_112 = arith.constant 0 : index
    %c0_113 = arith.constant 0 : index
    %286 = vector.load %arg18[%c0_111, %c0_112, %c0_113] : memref<1x1x32xf32, #tpu.memory_space<vmem>>, vector<1x1x32xf32>
    %287 = vector.shape_cast %286 : vector<1x1x32xf32> to vector<1x32xf32>
    %288 = arith.truncf %283 : vector<8x64xf32> to vector<8x64xbf16>
    %cst_114 = arith.constant dense<0.000000e+00> : vector<8x32xf32>
    %289 = tpu.matmul %288, %285, %cst_114 {dimension_numbers = #tpu.dot_dimension_numbers<[1], [0], [0], [1], [0, 0, 1, 1], [], []>} : vector<8x64xbf16>, vector<64x32xbf16>, vector<8x32xf32> -> vector<8x32xf32>
    %290 = vector.broadcast %287 : vector<1x32xf32> to vector<8x32xf32>
    %291 = arith.addf %289, %290 : vector<8x32xf32>
    %292 = arith.addf %273, %291 : vector<8x32xf32>
    %c0_115 = arith.constant 0 : index
    %c0_116 = arith.constant 0 : index
    %c0_117 = arith.constant 0 : index
    %293 = vector.load %arg23[%c0_115, %c0_116, %c0_117] : memref<1x1x32xf32, #tpu.memory_space<vmem>>, vector<1x1x32xf32>
    %294 = vector.shape_cast %293 : vector<1x1x32xf32> to vector<1x32xf32>
    %c0_118 = arith.constant 0 : index
    %c0_119 = arith.constant 0 : index
    %c0_120 = arith.constant 0 : index
    %295 = vector.load %arg24[%c0_118, %c0_119, %c0_120] : memref<1x1x32xf32, #tpu.memory_space<vmem>>, vector<1x1x32xf32>
    %296 = vector.shape_cast %295 : vector<1x1x32xf32> to vector<1x32xf32>
    %cst_121 = arith.constant dense<0.000000e+00> : vector<8xf32>
    %297 = vector.multi_reduction <add>, %292, %cst_121 [1] : vector<8x32xf32> to vector<8xf32>
    %298 = vector.shape_cast %297 : vector<8xf32> to vector<8x1xf32>
    %cst_122 = arith.constant 3.200000e+01 : f32
    %299 = vector.broadcast %cst_122 : f32 to vector<8x1xf32>
    %300 = arith.divf %298, %299 : vector<8x1xf32>
    %301 = vector.broadcast %300 : vector<8x1xf32> to vector<8x32xf32>
    %302 = arith.subf %292, %301 : vector<8x32xf32>
    %303 = arith.mulf %302, %302 : vector<8x32xf32>
    %cst_123 = arith.constant dense<0.000000e+00> : vector<8xf32>
    %304 = vector.multi_reduction <add>, %303, %cst_123 [1] : vector<8x32xf32> to vector<8xf32>
    %305 = vector.shape_cast %304 : vector<8xf32> to vector<8x1xf32>
    %cst_124 = arith.constant 3.200000e+01 : f32
    %306 = vector.broadcast %cst_124 : f32 to vector<8x1xf32>
    %307 = arith.divf %305, %306 : vector<8x1xf32>
    %308 = vector.broadcast %300 : vector<8x1xf32> to vector<8x32xf32>
    %309 = arith.subf %292, %308 : vector<8x32xf32>
    %cst_125 = arith.constant 9.99999974E-6 : f32
    %310 = vector.broadcast %cst_125 : f32 to vector<8x1xf32>
    %311 = arith.addf %307, %310 : vector<8x1xf32>
    %312 = math.rsqrt %311 : vector<8x1xf32>
    %313 = vector.broadcast %312 : vector<8x1xf32> to vector<8x32xf32>
    %314 = arith.mulf %309, %313 : vector<8x32xf32>
    %315 = vector.broadcast %294 : vector<1x32xf32> to vector<8x32xf32>
    %316 = arith.mulf %314, %315 : vector<8x32xf32>
    %317 = vector.broadcast %296 : vector<1x32xf32> to vector<8x32xf32>
    %318 = arith.addf %316, %317 : vector<8x32xf32>
    %c0_126 = arith.constant 0 : index
    %c0_127 = arith.constant 0 : index
    %319 = vector.load %arg25[%c0_126, %c0_127] : memref<8x32xf32, #tpu.memory_space<vmem>>, vector<8x32xf32>
    tpu.vector_store %arg25[%c0_126, %c0_127], %318 {strides = array<i32>} : memref<8x32xf32, #tpu.memory_space<vmem>>, vector<8x32xf32>,
    return
  }
  func.func @transform_0(%arg0: i32, %arg1: i32) -> (i32, i32) {
    %c0_i32 = arith.constant 0 : i32
    %c0_i32_0 = arith.constant 0 : i32
    return %arg0, %c0_i32 : i32, i32
  }
  func.func @transform_1(%arg0: i32, %arg1: i32) -> (i32, i32) {
    %c0_i32 = arith.constant 0 : i32
    %c0_i32_0 = arith.constant 0 : i32
    %c0_i32_1 = arith.constant 0 : i32
    return %c0_i32, %c0_i32_0 : i32, i32
  }
  func.func @transform_2(%arg0: i32, %arg1: i32) -> (i32, i32) {
    %c0_i32 = arith.constant 0 : i32
    %c0_i32_0 = arith.constant 0 : i32
    return %arg0, %c0_i32 : i32, i32
  }
  func.func @transform_3(%arg0: i32, %arg1: i32) -> (i32, i32, i32) {
    %c0_i32 = arith.constant 0 : i32
    %c0_i32_0 = arith.constant 0 : i32
    %c0_i32_1 = arith.constant 0 : i32
    return %arg1, %c0_i32, %c0_i32_0 : i32, i32, i32
  }
  func.func @transform_4(%arg0: i32, %arg1: i32) -> (i32, i32, i32) {
    %c0_i32 = arith.constant 0 : i32
    %c0_i32_0 = arith.constant 0 : i32
    %c0_i32_1 = arith.constant 0 : i32
    return %arg1, %c0_i32, %c0_i32_0 : i32, i32, i32
  }
  func.func @transform_5(%arg0: i32, %arg1: i32) -> (i32, i32, i32) {
    %c0_i32 = arith.constant 0 : i32
    %c0_i32_0 = arith.constant 0 : i32
    %c0_i32_1 = arith.constant 0 : i32
    return %arg1, %c0_i32, %c0_i32_0 : i32, i32, i32
  }
  func.func @transform_6(%arg0: i32, %arg1: i32) -> (i32, i32, i32) {
    %c0_i32 = arith.constant 0 : i32
    %c0_i32_0 = arith.constant 0 : i32
    %c0_i32_1 = arith.constant 0 : i32
    return %arg1, %c0_i32, %c0_i32_0 : i32, i32, i32
  }
  func.func @transform_7(%arg0: i32, %arg1: i32) -> (i32, i32, i32) {
    %c0_i32 = arith.constant 0 : i32
    %c0_i32_0 = arith.constant 0 : i32
    %c0_i32_1 = arith.constant 0 : i32
    return %arg1, %c0_i32, %c0_i32_0 : i32, i32, i32
  }
  func.func @transform_8(%arg0: i32, %arg1: i32) -> (i32, i32, i32) {
    %c0_i32 = arith.constant 0 : i32
    %c0_i32_0 = arith.constant 0 : i32
    %c0_i32_1 = arith.constant 0 : i32
    return %arg1, %c0_i32, %c0_i32_0 : i32, i32, i32
  }
  func.func @transform_9(%arg0: i32, %arg1: i32) -> (i32, i32, i32) {
    %c0_i32 = arith.constant 0 : i32
    %c0_i32_0 = arith.constant 0 : i32
    %c0_i32_1 = arith.constant 0 : i32
    return %arg1, %c0_i32, %c0_i32_0 : i32, i32, i32
  }
  func.func @transform_10(%arg0: i32, %arg1: i32) -> (i32, i32, i32) {
    %c0_i32 = arith.constant 0 : i32
    %c0_i32_0 = arith.constant 0 : i32
    %c0_i32_1 = arith.constant 0 : i32
    return %arg1, %c0_i32, %c0_i32_0 : i32, i32, i32
  }
  func.func @transform_11(%arg0: i32, %arg1: i32) -> (i32, i32, i32) {
    %c0_i32 = arith.constant 0 : i32
    %c0_i32_0 = arith.constant 0 : i32
    %c0_i32_1 = arith.constant 0 : i32
    return %arg1, %c0_i32, %c0_i32_0 : i32, i32, i32
  }
  func.func @transform_12(%arg0: i32, %arg1: i32) -> (i32, i32, i32) {
    %c0_i32 = arith.constant 0 : i32
    %c0_i32_0 = arith.constant 0 : i32
    %c0_i32_1 = arith.constant 0 : i32
    return %arg1, %c0_i32, %c0_i32_0 : i32, i32, i32
  }
  func.func @transform_13(%arg0: i32, %arg1: i32) -> (i32, i32, i32) {
    %c0_i32 = arith.constant 0 : i32
    %c0_i32_0 = arith.constant 0 : i32
    %c0_i32_1 = arith.constant 0 : i32
    return %arg1, %c0_i32, %c0_i32_0 : i32, i32, i32
  }
  func.func @transform_14(%arg0: i32, %arg1: i32) -> (i32, i32, i32) {
    %c0_i32 = arith.constant 0 : i32
    %c0_i32_0 = arith.constant 0 : i32
    %c0_i32_1 = arith.constant 0 : i32
    return %arg1, %c0_i32, %c0_i32_0 : i32, i32, i32
  }
  func.func @transform_15(%arg0: i32, %arg1: i32) -> (i32, i32, i32) {
    %c0_i32 = arith.constant 0 : i32
    %c0_i32_0 = arith.constant 0 : i32
    %c0_i32_1 = arith.constant 0 : i32
    return %arg1, %c0_i32, %c0_i32_0 : i32, i32, i32
  }
  func.func @transform_16(%arg0: i32, %arg1: i32) -> (i32, i32, i32) {
    %c0_i32 = arith.constant 0 : i32
    %c0_i32_0 = arith.constant 0 : i32
    %c0_i32_1 = arith.constant 0 : i32
    return %arg1, %c0_i32, %c0_i32_0 : i32, i32, i32
  }
  func.func @transform_17(%arg0: i32, %arg1: i32) -> (i32, i32, i32) {
    %c0_i32 = arith.constant 0 : i32
    %c0_i32_0 = arith.constant 0 : i32
    %c0_i32_1 = arith.constant 0 : i32
    return %arg1, %c0_i32, %c0_i32_0 : i32, i32, i32
  }
  func.func @transform_18(%arg0: i32, %arg1: i32) -> (i32, i32, i32) {
    %c0_i32 = arith.constant 0 : i32
    %c0_i32_0 = arith.constant 0 : i32
    %c0_i32_1 = arith.constant 0 : i32
    return %arg1, %c0_i32, %c0_i32_0 : i32, i32, i32
  }
  func.func @transform_19(%arg0: i32, %arg1: i32) -> (i32, i32, i32) {
    %c0_i32 = arith.constant 0 : i32
    %c0_i32_0 = arith.constant 0 : i32
    %c0_i32_1 = arith.constant 0 : i32
    return %arg1, %c0_i32, %c0_i32_0 : i32, i32, i32
  }
  func.func @transform_20(%arg0: i32, %arg1: i32) -> (i32, i32, i32) {
    %c0_i32 = arith.constant 0 : i32
    %c0_i32_0 = arith.constant 0 : i32
    %c0_i32_1 = arith.constant 0 : i32
    return %arg1, %c0_i32, %c0_i32_0 : i32, i32, i32
  }
  func.func @transform_21(%arg0: i32, %arg1: i32) -> (i32, i32, i32) {
    %c0_i32 = arith.constant 0 : i32
    %c0_i32_0 = arith.constant 0 : i32
    %c0_i32_1 = arith.constant 0 : i32
    return %arg1, %c0_i32, %c0_i32_0 : i32, i32, i32
  }
  func.func @transform_22(%arg0: i32, %arg1: i32) -> (i32, i32, i32) {
    %c0_i32 = arith.constant 0 : i32
    %c0_i32_0 = arith.constant 0 : i32
    %c0_i32_1 = arith.constant 0 : i32
    return %arg1, %c0_i32, %c0_i32_0 : i32, i32, i32
  }
  func.func @transform_23(%arg0: i32, %arg1: i32) -> (i32, i32) {
    %c0_i32 = arith.constant 0 : i32
    %c0_i32_0 = arith.constant 0 : i32
    return %arg0, %c0_i32 : i32, i32
  }
}

</mosaic_0001>

<llo_original>
// kernel: cached_transformer_decoder_forward.1
$region0: #{cached_transformer_decoder_forward.1}
  #allocation0 [shape = 'u32[]', space=smem, size = 0x4, offset = 0x4, fixed_abs, tag = 'smem constant byte address 0x4 - core index']
  #allocation1 [shape = 'u32[72,128]{1,0:T(1,128)}', space=vmem, size = 0x9000, scoped, tag = 'internal scratch']
  %s0 = inlined_call_operand.vmem [shape: f32[16,32], index: 0, kind: input, shape index: {}]
  %s1 = inlined_call_operand.vmem [shape: f32[8,32], index: 1, kind: input, shape index: {}]
  %s2 = inlined_call_operand.hbm [shape: f32[16,32], index: 2, kind: input, shape index: {}]
  %s3 = inlined_call_operand.vmem [shape: bf16[2,32,96], index: 3, kind: input, shape index: {}]
  %s4 = inlined_call_operand.vmem [shape: f32[2,1,96], index: 4, kind: input, shape index: {}]
  %s5 = inlined_call_operand.vmem [shape: bf16[2,32,32], index: 5, kind: input, shape index: {}]
  %s6 = inlined_call_operand.vmem [shape: f32[2,1,32], index: 6, kind: input, shape index: {}]
  %s7 = inlined_call_operand.vmem [shape: bf16[2,32,32], index: 7, kind: input, shape index: {}]
  %s8 = inlined_call_operand.vmem [shape: f32[2,1,32], index: 8, kind: input, shape index: {}]
  %s9 = inlined_call_operand.hbm [shape: bf16[2,32,64], index: 9, kind: input, shape index: {}]
  %s10 = inlined_call_operand.vmem [shape: f32[2,1,64], index: 10, kind: input, shape index: {}]
  %s11 = inlined_call_operand.hbm [shape: bf16[2,32,32], index: 11, kind: input, shape index: {}]
  %s12 = inlined_call_operand.hbm [shape: f32[2,1,32], index: 12, kind: input, shape index: {}]
  %s13 = inlined_call_operand.hbm [shape: bf16[2,32,64], index: 13, kind: input, shape index: {}]
  %s14 = inlined_call_operand.hbm [shape: f32[2,1,64], index: 14, kind: input, shape index: {}]
  %s15 = inlined_call_operand.vmem [shape: bf16[2,64,32], index: 15, kind: input, shape index: {}]
  %s16 = inlined_call_operand.hbm [shape: f32[2,1,32], index: 16, kind: input, shape index: {}]
  %s17 = inlined_call_operand.hbm [shape: f32[2,1,32], index: 17, kind: input, shape index: {}]
  %s18 = inlined_call_operand.hbm [shape: f32[2,1,32], index: 18, kind: input, shape index: {}]
  %s19 = inlined_call_operand.hbm [shape: f32[2,1,32], index: 19, kind: input, shape index: {}]
  %s20 = inlined_call_operand.hbm [shape: f32[2,1,32], index: 20, kind: input, shape index: {}]
  %s21 = inlined_call_operand.hbm [shape: f32[2,1,32], index: 21, kind: input, shape index: {}]
  %s22 = inlined_call_operand.hbm [shape: f32[2,1,32], index: 22, kind: input, shape index: {}]
  %s23 = inlined_call_operand.hbm [shape: f32[16,32], index: 23, kind: output, shape index: {}]
  %s24 = sld [smem:[#allocation0]]
  $region181: #{cached_transformer_decoder_forward.1} parent=0
    _
  %s26 = ssub.s32 1, %s24
  %s27 = scalar_select 0, %s26, %s24
  $region1: #{cached_transformer_decoder_forward.1} parent=0
    #allocation2 [shape = 'u8[8192]{0}', space=vmem, size = 0x2000, scoped, tag = 'input window, operand 2']
    #allocation3 [shape = 's32[2]{0}', space=sflag, size = 0x8, scoped, tag = 'scoped memory for cached_transformer_decoder_forward.1']
    #allocation4 [shape = 's32[2]{0}', space=sflag, size = 0x8, scoped, tag = 'scoped memory for cached_transformer_decoder_forward.1']
    #allocation5 [shape = 'u8[16384]{0}', space=vmem, size = 0x4000, scoped, tag = 'input window, operand 9']
    #allocation6 [shape = 's32[2]{0}', space=sflag, size = 0x8, scoped, tag = 'scoped memory for cached_transformer_decoder_forward.1']
    #allocation7 [shape = 'u8[16384]{0}', space=vmem, size = 0x4000, scoped, tag = 'input window, operand 11']
    #allocation8 [shape = 'u8[1024]{0}', space=vmem, size = 0x400, scoped, tag = 'input window, operand 12']
    #allocation9 [shape = 's32[2]{0}', space=sflag, size = 0x8, scoped, tag = 'scoped memory for cached_transformer_decoder_forward.1']
    #allocation10 [shape = 'u8[16384]{0}', space=vmem, size = 0x4000, scoped, tag = 'input window, operand 13']
    #allocation11 [shape = 'u8[1024]{0}', space=vmem, size = 0x400, scoped, tag = 'input window, operand 14']
    #allocation12 [shape = 's32[2]{0}', space=sflag, size = 0x8, scoped, tag = 'scoped memory for cached_transformer_decoder_forward.1']
    #allocation13 [shape = 'u8[1024]{0}', space=vmem, size = 0x400, scoped, tag = 'input window, operand 16']
    #allocation14 [shape = 'u8[1024]{0}', space=vmem, size = 0x400, scoped, tag = 'input window, operand 17']
    #allocation15 [shape = 's32[2]{0}', space=sflag, size = 0x8, scoped, tag = 'scoped memory for cached_transformer_decoder_forward.1']
    #allocation16 [shape = 'u8[1024]{0}', space=vmem, size = 0x400, scoped, tag = 'input window, operand 18']
    #allocation17 [shape = 'u8[1024]{0}', space=vmem, size = 0x400, scoped, tag = 'input window, operand 19']
    #allocation18 [shape = 's32[2]{0}', space=sflag, size = 0x8, scoped, tag = 'scoped memory for cached_transformer_decoder_forward.1']
    #allocation19 [shape = 'u8[1024]{0}', space=vmem, size = 0x400, scoped, tag = 'input window, operand 20']
    #allocation20 [shape = 'u8[1024]{0}', space=vmem, size = 0x400, scoped, tag = 'input window, operand 21']
    #allocation21 [shape = 's32[2]{0}', space=sflag, size = 0x8, scoped, tag = 'scoped memory for cached_transformer_decoder_forward.1']
    #allocation22 [shape = 'u8[1024]{0}', space=vmem, size = 0x400, scoped, tag = 'input window, operand 22']
    #allocation23 [shape = 'u8[8192]{0}', space=vmem, size = 0x2000, scoped, tag = 'output window, operand 0']
    %28 = vsyncpa [#allocation3], 0
    %s29 = scalar_lea.sflag [#allocation3], 1
    %30 = vsyncpa %s29, 0
    %31 = vsyncpa [#allocation6], 0
    %s32 = scalar_lea.sflag [#allocation6], 1
    %33 = vsyncpa %s32, 0
    %34 = vsyncpa [#allocation9], 0
    %s35 = scalar_lea.sflag [#allocation9], 1
    %36 = vsyncpa %s35, 0
    %37 = vsyncpa [#allocation12], 0
    %s38 = scalar_lea.sflag [#allocation12], 1
    %39 = vsyncpa %s38, 0
    %40 = vsyncpa [#allocation15], 0
    %s41 = scalar_lea.sflag [#allocation15], 1
    %42 = vsyncpa %s41, 0
    %43 = vsyncpa [#allocation18], 0
    %s44 = scalar_lea.sflag [#allocation18], 1
    %45 = vsyncpa %s44, 0
    %46 = vsyncpa [#allocation21], 0
    %s47 = scalar_lea.sflag [#allocation21], 1
    %48 = vsyncpa %s47, 0
    %49 = vsyncpa [#allocation4], 0
    %s50 = scalar_lea.sflag [#allocation4], 1
    %51 = vsyncpa %s50, 0
    loop: start=0, step=1, limit=6
    $region2: #{cached_transformer_decoder_forward.1} parent=1 // loop_pre_header
      _
    $region3: #{cached_transformer_decoder_forward.1} parent=1 // loop_header
      %s53 = sphi 0, %s57
      %p54 = scmp.ge.s32.totalorder %s53, 6
      %s60 = sphi 0, %s72
      %s61 = sphi 0, %s68
      %s62 = sphi 0, %s60
      %s63 = sphi 0, %s61
      %s64 = sphi 0, %s62
      %s65 = sphi 0, %s63
      %s75 = sphi 0, %s77
      %s78 = sphi 0, %s75
      %s79 = sphi 0, %s78
      %s95 = sphi 0, %s79
      %s99 = sphi 0, %s99
      %s101 = sphi 0, %s99
      %s102 = sphi 0, %s101
      %s116 = sphi 0, %s102
      %s122 = sphi 0, %s124
      %s125 = sphi 0, %s122
      %s126 = sphi 0, %s125
      %s142 = sphi 0, %s126
      %s148 = sphi 0, %s150
      %s151 = sphi 0, %s148
      %s152 = sphi 0, %s151
      %s168 = sphi 0, %s152
      %s174 = sphi 0, %s176
      %s177 = sphi 0, %s174
      %s178 = sphi 0, %s177
      %s194 = sphi 0, %s178
      %s200 = sphi 0, %s202
      %s203 = sphi 0, %s200
      %s204 = sphi 0, %s203
      %s220 = sphi 0, %s204
      %s226 = sphi 0, %s228
      %s229 = sphi 0, %s226
      %s230 = sphi 0, %s229
      %s246 = sphi 0, %s230
      %s252 = sphi 0, %s254
      %s255 = sphi 0, %s252
      %s256 = sphi 0, %s255
      %s272 = sphi 0, %s256
      %s278 = sphi 0, %s280
      %s281 = sphi 0, %s278
      %s282 = sphi 0, %s281
      %s298 = sphi 0, %s282
      %s304 = sphi 0, %s306
      %s307 = sphi 0, %s304
      %s308 = sphi 0, %s307
      %s324 = sphi 0, %s308
      %s330 = sphi 0, %s332
      %s333 = sphi 0, %s330
      %s334 = sphi 0, %s333
      %s350 = sphi 0, %s334
      %s356 = sphi 0, %s358
      %s359 = sphi 0, %s356
      %s360 = sphi 0, %s359
      %s376 = sphi 0, %s360
      %s382 = sphi 0, %s384
      %s385 = sphi 0, %s382
      %s386 = sphi 0, %s385
      %s402 = sphi 0, %s386
      %s408 = sphi 0, %s410
      %s411 = sphi 0, %s408
      %s412 = sphi 0, %s411
      %s428 = sphi 0, %s412
      %s434 = sphi 0, %s436
      %s437 = sphi 0, %s434
      %s438 = sphi 0, %s437
      %s454 = sphi 0, %s438
      %s460 = sphi 0, %s462
      %s463 = sphi 0, %s460
      %s464 = sphi 0, %s463
      %s480 = sphi 0, %s464
      %s486 = sphi 0, %s488
      %s489 = sphi 0, %s486
      %s490 = sphi 0, %s489
      %s506 = sphi 0, %s490
      %s512 = sphi 0, %s514
      %s515 = sphi 0, %s512
      %s516 = sphi 0, %s515
      %s532 = sphi 0, %s516
      %s538 = sphi 0, %s540
      %s541 = sphi 0, %s538
      %s542 = sphi 0, %s541
      %s558 = sphi 0, %s542
      %s564 = sphi 0, %s566
      %s567 = sphi 0, %s564
      %s568 = sphi 0, %s567
      %s584 = sphi 0, %s568
      %s590 = sphi 0, %s592
      %s593 = sphi 0, %s590
      %s594 = sphi 0, %s593
      %s610 = sphi 0, %s594
      %s616 = sphi 0, %s618
      %s619 = sphi 0, %s616
      %s620 = sphi 0, %s619
      %s636 = sphi 0, %s620
      %s642 = sphi 0, %s644
      %s645 = sphi 0, %s642
      %s646 = sphi 0, %s645
      %s662 = sphi 0, %s646
      %s668 = sphi 0, %s670
      %s671 = sphi 0, %s668
      %s672 = sphi 0, %s671
      %s688 = sphi 0, %s672
    $region4: #{cached_transformer_decoder_forward.1} parent=1 // loop_header_branch
      %56 = sbr.rel (%p54) target = $region8
    $region5: #{cached_transformer_decoder_forward.1} parent=1 // loop_body
      %s58 = ssub.s32 %s53, 1
      %s59 = ssub.s32 %s53, 2
      %s66 = sadd.s32 1, %s61
      %p67 = scmp.ge.s32.totalorder %s66, 2
      %s68 = scalar_select %p67, 0, %s66
      %s69 = sadd.s32 1, %s60
      %s70 = scalar_select %p67, %s69, %s60
      %p71 = scmp.ge.s32.totalorder %s70, 2
      %s72 = scalar_select %p71, 0, %s70
      %s73 = ssub.s32 %s60, %s72
      %p74 = scmp.eq.s32.totalorder %s73, 0
      %s76 = sadd.s32 %s75, 1
      %s77 = scalar_select %p74, %s75, %s76
      %p80 = pneg %p74
      %p81 = scmp.eq.s32.totalorder %s53, 3
      %p82 = por %p80, %p81
      %p83 = scmp.ne.s32.totalorder %s75, %s78
      %p84 = scmp.eq.s32.totalorder %s53, 0
      %p85 = por %p83, %p84
      %p86 = scmp.ne.s32.totalorder %s75, %s78
      %p87 = scmp.eq.s32.totalorder %s58, 3
      %p88 = por %p86, %p87
      %p89 = scmp.ne.s32.totalorder %s78, %s79
      %p90 = scmp.eq.s32.totalorder %s58, 0
      %p91 = por %p89, %p90
      %p92 = scmp.ne.s32.totalorder %s78, %s79
      %p93 = scmp.eq.s32.totalorder %s59, 3
      %p94 = por %p92, %p93
      %p96 = scmp.ne.s32.totalorder %s79, %s95
      %p97 = scmp.eq.s32.totalorder %s59, 0
      %p98 = por %p96, %p97
      %s100 = sadd.s32 %s99, 1
      %p103 = scmp.eq.s32.totalorder %s53, 3
      %p104 = scmp.ne.s32.totalorder %s99, %s101
      %p105 = scmp.eq.s32.totalorder %s53, 0
      %p106 = por %p104, %p105
      %p107 = scmp.ne.s32.totalorder %s99, %s101
      %p108 = scmp.eq.s32.totalorder %s58, 3
      %p109 = por %p107, %p108
      %p110 = scmp.ne.s32.totalorder %s101, %s102
      %p111 = scmp.eq.s32.totalorder %s58, 0
      %p112 = por %p110, %p111
      %p113 = scmp.ne.s32.totalorder %s101, %s102
      %p114 = scmp.eq.s32.totalorder %s59, 3
      %p115 = por %p113, %p114
      %p117 = scmp.ne.s32.totalorder %s102, %s116
      %p118 = scmp.eq.s32.totalorder %s59, 0
      %p119 = por %p117, %p118
      %s120 = ssub.s32 %s60, %s72
      %p121 = scmp.eq.s32.totalorder %s120, 0
      %s123 = sadd.s32 %s122, 1
      %s124 = scalar_select %p121, %s122, %s123
      %p127 = pneg %p121
      %p128 = scmp.eq.s32.totalorder %s53, 3
      %p129 = por %p127, %p128
      %p130 = scmp.ne.s32.totalorder %s122, %s125
      %p131 = scmp.eq.s32.totalorder %s53, 0
      %p132 = por %p130, %p131
      %p133 = scmp.ne.s32.totalorder %s122, %s125
      %p134 = scmp.eq.s32.totalorder %s58, 3
      %p135 = por %p133, %p134
      %p136 = scmp.ne.s32.totalorder %s125, %s126
      %p137 = scmp.eq.s32.totalorder %s58, 0
      %p138 = por %p136, %p137
      %p139 = scmp.ne.s32.totalorder %s125, %s126
      %p140 = scmp.eq.s32.totalorder %s59, 3
      %p141 = por %p139, %p140
      %p143 = scmp.ne.s32.totalorder %s126, %s142
      %p144 = scmp.eq.s32.totalorder %s59, 0
      %p145 = por %p143, %p144
      %s146 = ssub.s32 %s61, %s68
      %p147 = scmp.eq.s32.totalorder %s146, 0
      %s149 = sadd.s32 %s148, 1
      %s150 = scalar_select %p147, %s148, %s149
      %p153 = pneg %p147
      %p154 = scmp.eq.s32.totalorder %s53, 3
      %p155 = por %p153, %p154
      %p156 = scmp.ne.s32.totalorder %s148, %s151
      %p157 = scmp.eq.s32.totalorder %s53, 0
      %p158 = por %p156, %p157
      %p159 = scmp.ne.s32.totalorder %s148, %s151
      %p160 = scmp.eq.s32.totalorder %s58, 3
      %p161 = por %p159, %p160
      %p162 = scmp.ne.s32.totalorder %s151, %s152
      %p163 = scmp.eq.s32.totalorder %s58, 0
      %p164 = por %p162, %p163
      %p165 = scmp.ne.s32.totalorder %s151, %s152
      %p166 = scmp.eq.s32.totalorder %s59, 3
      %p167 = por %p165, %p166
      %p169 = scmp.ne.s32.totalorder %s152, %s168
      %p170 = scmp.eq.s32.totalorder %s59, 0
      %p171 = por %p169, %p170
      %s172 = ssub.s32 %s61, %s68
      %p173 = scmp.eq.s32.totalorder %s172, 0
      %s175 = sadd.s32 %s174, 1
      %s176 = scalar_select %p173, %s174, %s175
      %p179 = pneg %p173
      %p180 = scmp.eq.s32.totalorder %s53, 3
      %p181 = por %p179, %p180
      %p182 = scmp.ne.s32.totalorder %s174, %s177
      %p183 = scmp.eq.s32.totalorder %s53, 0
      %p184 = por %p182, %p183
      %p185 = scmp.ne.s32.totalorder %s174, %s177
      %p186 = scmp.eq.s32.totalorder %s58, 3
      %p187 = por %p185, %p186
      %p188 = scmp.ne.s32.totalorder %s177, %s178
      %p189 = scmp.eq.s32.totalorder %s58, 0
      %p190 = por %p188, %p189
      %p191 = scmp.ne.s32.totalorder %s177, %s178
      %p192 = scmp.eq.s32.totalorder %s59, 3
      %p193 = por %p191, %p192
      %p195 = scmp.ne.s32.totalorder %s178, %s194
      %p196 = scmp.eq.s32.totalorder %s59, 0
      %p197 = por %p195, %p196
      %s198 = ssub.s32 %s61, %s68
      %p199 = scmp.eq.s32.totalorder %s198, 0
      %s201 = sadd.s32 %s200, 1
      %s202 = scalar_select %p199, %s200, %s201
      %p205 = pneg %p199
      %p206 = scmp.eq.s32.totalorder %s53, 3
      %p207 = por %p205, %p206
      %p208 = scmp.ne.s32.totalorder %s200, %s203
      %p209 = scmp.eq.s32.totalorder %s53, 0
      %p210 = por %p208, %p209
      %p211 = scmp.ne.s32.totalorder %s200, %s203
      %p212 = scmp.eq.s32.totalorder %s58, 3
      %p213 = por %p211, %p212
      %p214 = scmp.ne.s32.totalorder %s203, %s204
      %p215 = scmp.eq.s32.totalorder %s58, 0
      %p216 = por %p214, %p215
      %p217 = scmp.ne.s32.totalorder %s203, %s204
      %p218 = scmp.eq.s32.totalorder %s59, 3
      %p219 = por %p217, %p218
      %p221 = scmp.ne.s32.totalorder %s204, %s220
      %p222 = scmp.eq.s32.totalorder %s59, 0
      %p223 = por %p221, %p222
      %s224 = ssub.s32 %s61, %s68
      %p225 = scmp.eq.s32.totalorder %s224, 0
      %s227 = sadd.s32 %s226, 1
      %s228 = scalar_select %p225, %s226, %s227
      %p231 = pneg %p225
      %p232 = scmp.eq.s32.totalorder %s53, 3
      %p233 = por %p231, %p232
      %p234 = scmp.ne.s32.totalorder %s226, %s229
      %p235 = scmp.eq.s32.totalorder %s53, 0
      %p236 = por %p234, %p235
      %p237 = scmp.ne.s32.totalorder %s226, %s229
      %p238 = scmp.eq.s32.totalorder %s58, 3
      %p239 = por %p237, %p238
      %p240 = scmp.ne.s32.totalorder %s229, %s230
      %p241 = scmp.eq.s32.totalorder %s58, 0
      %p242 = por %p240, %p241
      %p243 = scmp.ne.s32.totalorder %s229, %s230
      %p244 = scmp.eq.s32.totalorder %s59, 3
      %p245 = por %p243, %p244
      %p247 = scmp.ne.s32.totalorder %s230, %s246
      %p248 = scmp.eq.s32.totalorder %s59, 0
      %p249 = por %p247, %p248
      %s250 = ssub.s32 %s61, %s68
      %p251 = scmp.eq.s32.totalorder %s250, 0
      %s253 = sadd.s32 %s252, 1
      %s254 = scalar_select %p251, %s252, %s253
      %p257 = pneg %p251
      %p258 = scmp.eq.s32.totalorder %s53, 3
      %p259 = por %p257, %p258
      %p260 = scmp.ne.s32.totalorder %s252, %s255
      %p261 = scmp.eq.s32.totalorder %s53, 0
      %p262 = por %p260, %p261
      %p263 = scmp.ne.s32.totalorder %s252, %s255
      %p264 = scmp.eq.s32.totalorder %s58, 3
      %p265 = por %p263, %p264
      %p266 = scmp.ne.s32.totalorder %s255, %s256
      %p267 = scmp.eq.s32.totalorder %s58, 0
      %p268 = por %p266, %p267
      %p269 = scmp.ne.s32.totalorder %s255, %s256
      %p270 = scmp.eq.s32.totalorder %s59, 3
      %p271 = por %p269, %p270
      %p273 = scmp.ne.s32.totalorder %s256, %s272
      %p274 = scmp.eq.s32.totalorder %s59, 0
      %p275 = por %p273, %p274
      %s276 = ssub.s32 %s61, %s68
      %p277 = scmp.eq.s32.totalorder %s276, 0
      %s279 = sadd.s32 %s278, 1
      %s280 = scalar_select %p277, %s278, %s279
      %p283 = pneg %p277
      %p284 = scmp.eq.s32.totalorder %s53, 3
      %p285 = por %p283, %p284
      %p286 = scmp.ne.s32.totalorder %s278, %s281
      %p287 = scmp.eq.s32.totalorder %s53, 0
      %p288 = por %p286, %p287
      %p289 = scmp.ne.s32.totalorder %s278, %s281
      %p290 = scmp.eq.s32.totalorder %s58, 3
      %p291 = por %p289, %p290
      %p292 = scmp.ne.s32.totalorder %s281, %s282
      %p293 = scmp.eq.s32.totalorder %s58, 0
      %p294 = por %p292, %p293
      %p295 = scmp.ne.s32.totalorder %s281, %s282
      %p296 = scmp.eq.s32.totalorder %s59, 3
      %p297 = por %p295, %p296
      %p299 = scmp.ne.s32.totalorder %s282, %s298
      %p300 = scmp.eq.s32.totalorder %s59, 0
      %p301 = por %p299, %p300
      %s302 = ssub.s32 %s61, %s68
      %p303 = scmp.eq.s32.totalorder %s302, 0
      %s305 = sadd.s32 %s304, 1
      %s306 = scalar_select %p303, %s304, %s305
      %p309 = pneg %p303
      %p310 = scmp.eq.s32.totalorder %s53, 3
      %p311 = por %p309, %p310
      %p312 = scmp.ne.s32.totalorder %s304, %s307
      %p313 = scmp.eq.s32.totalorder %s53, 0
      %p314 = por %p312, %p313
      %p315 = scmp.ne.s32.totalorder %s304, %s307
      %p316 = scmp.eq.s32.totalorder %s58, 3
      %p317 = por %p315, %p316
      %p318 = scmp.ne.s32.totalorder %s307, %s308
      %p319 = scmp.eq.s32.totalorder %s58, 0
      %p320 = por %p318, %p319
      %p321 = scmp.ne.s32.totalorder %s307, %s308
      %p322 = scmp.eq.s32.totalorder %s59, 3
      %p323 = por %p321, %p322
      %p325 = scmp.ne.s32.totalorder %s308, %s324
      %p326 = scmp.eq.s32.totalorder %s59, 0
      %p327 = por %p325, %p326
      %s328 = ssub.s32 %s61, %s68
      %p329 = scmp.eq.s32.totalorder %s328, 0
      %s331 = sadd.s32 %s330, 1
      %s332 = scalar_select %p329, %s330, %s331
      %p335 = pneg %p329
      %p336 = scmp.eq.s32.totalorder %s53, 3
      %p337 = por %p335, %p336
      %p338 = scmp.ne.s32.totalorder %s330, %s333
      %p339 = scmp.eq.s32.totalorder %s53, 0
      %p340 = por %p338, %p339
      %p341 = scmp.ne.s32.totalorder %s330, %s333
      %p342 = scmp.eq.s32.totalorder %s58, 3
      %p343 = por %p341, %p342
      %p344 = scmp.ne.s32.totalorder %s333, %s334
      %p345 = scmp.eq.s32.totalorder %s58, 0
      %p346 = por %p344, %p345
      %p347 = scmp.ne.s32.totalorder %s333, %s334
      %p348 = scmp.eq.s32.totalorder %s59, 3
      %p349 = por %p347, %p348
      %p351 = scmp.ne.s32.totalorder %s334, %s350
      %p352 = scmp.eq.s32.totalorder %s59, 0
      %p353 = por %p351, %p352
      %s354 = ssub.s32 %s61, %s68
      %p355 = scmp.eq.s32.totalorder %s354, 0
      %s357 = sadd.s32 %s356, 1
      %s358 = scalar_select %p355, %s356, %s357
      %p361 = pneg %p355
      %p362 = scmp.eq.s32.totalorder %s53, 3
      %p363 = por %p361, %p362
      %p364 = scmp.ne.s32.totalorder %s356, %s359
      %p365 = scmp.eq.s32.totalorder %s53, 0
      %p366 = por %p364, %p365
      %p367 = scmp.ne.s32.totalorder %s356, %s359
      %p368 = scmp.eq.s32.totalorder %s58, 3
      %p369 = por %p367, %p368
      %p370 = scmp.ne.s32.totalorder %s359, %s360
      %p371 = scmp.eq.s32.totalorder %s58, 0
      %p372 = por %p370, %p371
      %p373 = scmp.ne.s32.totalorder %s359, %s360
      %p374 = scmp.eq.s32.totalorder %s59, 3
      %p375 = por %p373, %p374
      %p377 = scmp.ne.s32.totalorder %s360, %s376
      %p378 = scmp.eq.s32.totalorder %s59, 0
      %p379 = por %p377, %p378
      %s380 = ssub.s32 %s61, %s68
      %p381 = scmp.eq.s32.totalorder %s380, 0
      %s383 = sadd.s32 %s382, 1
      %s384 = scalar_select %p381, %s382, %s383
      %p387 = pneg %p381
      %p388 = scmp.eq.s32.totalorder %s53, 3
      %p389 = por %p387, %p388
      %p390 = scmp.ne.s32.totalorder %s382, %s385
      %p391 = scmp.eq.s32.totalorder %s53, 0
      %p392 = por %p390, %p391
      %p393 = scmp.ne.s32.totalorder %s382, %s385
      %p394 = scmp.eq.s32.totalorder %s58, 3
      %p395 = por %p393, %p394
      %p396 = scmp.ne.s32.totalorder %s385, %s386
      %p397 = scmp.eq.s32.totalorder %s58, 0
      %p398 = por %p396, %p397
      %p399 = scmp.ne.s32.totalorder %s385, %s386
      %p400 = scmp.eq.s32.totalorder %s59, 3
      %p401 = por %p399, %p400
      %p403 = scmp.ne.s32.totalorder %s386, %s402
      %p404 = scmp.eq.s32.totalorder %s59, 0
      %p405 = por %p403, %p404
      %s406 = ssub.s32 %s61, %s68
      %p407 = scmp.eq.s32.totalorder %s406, 0
      %s409 = sadd.s32 %s408, 1
      %s410 = scalar_select %p407, %s408, %s409
      %p413 = pneg %p407
      %p414 = scmp.eq.s32.totalorder %s53, 3
      %p415 = por %p413, %p414
      %p416 = scmp.ne.s32.totalorder %s408, %s411
      %p417 = scmp.eq.s32.totalorder %s53, 0
      %p418 = por %p416, %p417
      %p419 = scmp.ne.s32.totalorder %s408, %s411
      %p420 = scmp.eq.s32.totalorder %s58, 3
      %p421 = por %p419, %p420
      %p422 = scmp.ne.s32.totalorder %s411, %s412
      %p423 = scmp.eq.s32.totalorder %s58, 0
      %p424 = por %p422, %p423
      %p425 = scmp.ne.s32.totalorder %s411, %s412
      %p426 = scmp.eq.s32.totalorder %s59, 3
      %p427 = por %p425, %p426
      %p429 = scmp.ne.s32.totalorder %s412, %s428
      %p430 = scmp.eq.s32.totalorder %s59, 0
      %p431 = por %p429, %p430
      %s432 = ssub.s32 %s61, %s68
      %p433 = scmp.eq.s32.totalorder %s432, 0
      %s435 = sadd.s32 %s434, 1
      %s436 = scalar_select %p433, %s434, %s435
      %p439 = pneg %p433
      %p440 = scmp.eq.s32.totalorder %s53, 3
      %p441 = por %p439, %p440
      %p442 = scmp.ne.s32.totalorder %s434, %s437
      %p443 = scmp.eq.s32.totalorder %s53, 0
      %p444 = por %p442, %p443
      %p445 = scmp.ne.s32.totalorder %s434, %s437
      %p446 = scmp.eq.s32.totalorder %s58, 3
      %p447 = por %p445, %p446
      %p448 = scmp.ne.s32.totalorder %s437, %s438
      %p449 = scmp.eq.s32.totalorder %s58, 0
      %p450 = por %p448, %p449
      %p451 = scmp.ne.s32.totalorder %s437, %s438
      %p452 = scmp.eq.s32.totalorder %s59, 3
      %p453 = por %p451, %p452
      %p455 = scmp.ne.s32.totalorder %s438, %s454
      %p456 = scmp.eq.s32.totalorder %s59, 0
      %p457 = por %p455, %p456
      %s458 = ssub.s32 %s61, %s68
      %p459 = scmp.eq.s32.totalorder %s458, 0
      %s461 = sadd.s32 %s460, 1
      %s462 = scalar_select %p459, %s460, %s461
      %p465 = pneg %p459
      %p466 = scmp.eq.s32.totalorder %s53, 3
      %p467 = por %p465, %p466
      %p468 = scmp.ne.s32.totalorder %s460, %s463
      %p469 = scmp.eq.s32.totalorder %s53, 0
      %p470 = por %p468, %p469
      %p471 = scmp.ne.s32.totalorder %s460, %s463
      %p472 = scmp.eq.s32.totalorder %s58, 3
      %p473 = por %p471, %p472
      %p474 = scmp.ne.s32.totalorder %s463, %s464
      %p475 = scmp.eq.s32.totalorder %s58, 0
      %p476 = por %p474, %p475
      %p477 = scmp.ne.s32.totalorder %s463, %s464
      %p478 = scmp.eq.s32.totalorder %s59, 3
      %p479 = por %p477, %p478
      %p481 = scmp.ne.s32.totalorder %s464, %s480
      %p482 = scmp.eq.s32.totalorder %s59, 0
      %p483 = por %p481, %p482
      %s484 = ssub.s32 %s61, %s68
      %p485 = scmp.eq.s32.totalorder %s484, 0
      %s487 = sadd.s32 %s486, 1
      %s488 = scalar_select %p485, %s486, %s487
      %p491 = pneg %p485
      %p492 = scmp.eq.s32.totalorder %s53, 3
      %p493 = por %p491, %p492
      %p494 = scmp.ne.s32.totalorder %s486, %s489
      %p495 = scmp.eq.s32.totalorder %s53, 0
      %p496 = por %p494, %p495
      %p497 = scmp.ne.s32.totalorder %s486, %s489
      %p498 = scmp.eq.s32.totalorder %s58, 3
      %p499 = por %p497, %p498
      %p500 = scmp.ne.s32.totalorder %s489, %s490
      %p501 = scmp.eq.s32.totalorder %s58, 0
      %p502 = por %p500, %p501
      %p503 = scmp.ne.s32.totalorder %s489, %s490
      %p504 = scmp.eq.s32.totalorder %s59, 3
      %p505 = por %p503, %p504
      %p507 = scmp.ne.s32.totalorder %s490, %s506
      %p508 = scmp.eq.s32.totalorder %s59, 0
      %p509 = por %p507, %p508
      %s510 = ssub.s32 %s61, %s68
      %p511 = scmp.eq.s32.totalorder %s510, 0
      %s513 = sadd.s32 %s512, 1
      %s514 = scalar_select %p511, %s512, %s513
      %p517 = pneg %p511
      %p518 = scmp.eq.s32.totalorder %s53, 3
      %p519 = por %p517, %p518
      %p520 = scmp.ne.s32.totalorder %s512, %s515
      %p521 = scmp.eq.s32.totalorder %s53, 0
      %p522 = por %p520, %p521
      %p523 = scmp.ne.s32.totalorder %s512, %s515
      %p524 = scmp.eq.s32.totalorder %s58, 3
      %p525 = por %p523, %p524
      %p526 = scmp.ne.s32.totalorder %s515, %s516
      %p527 = scmp.eq.s32.totalorder %s58, 0
      %p528 = por %p526, %p527
      %p529 = scmp.ne.s32.totalorder %s515, %s516
      %p530 = scmp.eq.s32.totalorder %s59, 3
      %p531 = por %p529, %p530
      %p533 = scmp.ne.s32.totalorder %s516, %s532
      %p534 = scmp.eq.s32.totalorder %s59, 0
      %p535 = por %p533, %p534
      %s536 = ssub.s32 %s61, %s68
      %p537 = scmp.eq.s32.totalorder %s536, 0
      %s539 = sadd.s32 %s538, 1
      %s540 = scalar_select %p537, %s538, %s539
      %p543 = pneg %p537
      %p544 = scmp.eq.s32.totalorder %s53, 3
      %p545 = por %p543, %p544
      %p546 = scmp.ne.s32.totalorder %s538, %s541
      %p547 = scmp.eq.s32.totalorder %s53, 0
      %p548 = por %p546, %p547
      %p549 = scmp.ne.s32.totalorder %s538, %s541
      %p550 = scmp.eq.s32.totalorder %s58, 3
      %p551 = por %p549, %p550
      %p552 = scmp.ne.s32.totalorder %s541, %s542
      %p553 = scmp.eq.s32.totalorder %s58, 0
      %p554 = por %p552, %p553
      %p555 = scmp.ne.s32.totalorder %s541, %s542
      %p556 = scmp.eq.s32.totalorder %s59, 3
      %p557 = por %p555, %p556
      %p559 = scmp.ne.s32.totalorder %s542, %s558
      %p560 = scmp.eq.s32.totalorder %s59, 0
      %p561 = por %p559, %p560
      %s562 = ssub.s32 %s61, %s68
      %p563 = scmp.eq.s32.totalorder %s562, 0
      %s565 = sadd.s32 %s564, 1
      %s566 = scalar_select %p563, %s564, %s565
      %p569 = pneg %p563
      %p570 = scmp.eq.s32.totalorder %s53, 3
      %p571 = por %p569, %p570
      %p572 = scmp.ne.s32.totalorder %s564, %s567
      %p573 = scmp.eq.s32.totalorder %s53, 0
      %p574 = por %p572, %p573
      %p575 = scmp.ne.s32.totalorder %s564, %s567
      %p576 = scmp.eq.s32.totalorder %s58, 3
      %p577 = por %p575, %p576
      %p578 = scmp.ne.s32.totalorder %s567, %s568
      %p579 = scmp.eq.s32.totalorder %s58, 0
      %p580 = por %p578, %p579
      %p581 = scmp.ne.s32.totalorder %s567, %s568
      %p582 = scmp.eq.s32.totalorder %s59, 3
      %p583 = por %p581, %p582
      %p585 = scmp.ne.s32.totalorder %s568, %s584
      %p586 = scmp.eq.s32.totalorder %s59, 0
      %p587 = por %p585, %p586
      %s588 = ssub.s32 %s61, %s68
      %p589 = scmp.eq.s32.totalorder %s588, 0
      %s591 = sadd.s32 %s590, 1
      %s592 = scalar_select %p589, %s590, %s591
      %p595 = pneg %p589
      %p596 = scmp.eq.s32.totalorder %s53, 3
      %p597 = por %p595, %p596
      %p598 = scmp.ne.s32.totalorder %s590, %s593
      %p599 = scmp.eq.s32.totalorder %s53, 0
      %p600 = por %p598, %p599
      %p601 = scmp.ne.s32.totalorder %s590, %s593
      %p602 = scmp.eq.s32.totalorder %s58, 3
      %p603 = por %p601, %p602
      %p604 = scmp.ne.s32.totalorder %s593, %s594
      %p605 = scmp.eq.s32.totalorder %s58, 0
      %p606 = por %p604, %p605
      %p607 = scmp.ne.s32.totalorder %s593, %s594
      %p608 = scmp.eq.s32.totalorder %s59, 3
      %p609 = por %p607, %p608
      %p611 = scmp.ne.s32.totalorder %s594, %s610
      %p612 = scmp.eq.s32.totalorder %s59, 0
      %p613 = por %p611, %p612
      %s614 = ssub.s32 %s61, %s68
      %p615 = scmp.eq.s32.totalorder %s614, 0
      %s617 = sadd.s32 %s616, 1
      %s618 = scalar_select %p615, %s616, %s617
      %p621 = pneg %p615
      %p622 = scmp.eq.s32.totalorder %s53, 3
      %p623 = por %p621, %p622
      %p624 = scmp.ne.s32.totalorder %s616, %s619
      %p625 = scmp.eq.s32.totalorder %s53, 0
      %p626 = por %p624, %p625
      %p627 = scmp.ne.s32.totalorder %s616, %s619
      %p628 = scmp.eq.s32.totalorder %s58, 3
      %p629 = por %p627, %p628
      %p630 = scmp.ne.s32.totalorder %s619, %s620
      %p631 = scmp.eq.s32.totalorder %s58, 0
      %p632 = por %p630, %p631
      %p633 = scmp.ne.s32.totalorder %s619, %s620
      %p634 = scmp.eq.s32.totalorder %s59, 3
      %p635 = por %p633, %p634
      %p637 = scmp.ne.s32.totalorder %s620, %s636
      %p638 = scmp.eq.s32.totalorder %s59, 0
      %p639 = por %p637, %p638
      %s640 = ssub.s32 %s61, %s68
      %p641 = scmp.eq.s32.totalorder %s640, 0
      %s643 = sadd.s32 %s642, 1
      %s644 = scalar_select %p641, %s642, %s643
      %p647 = pneg %p641
      %p648 = scmp.eq.s32.totalorder %s53, 3
      %p649 = por %p647, %p648
      %p650 = scmp.ne.s32.totalorder %s642, %s645
      %p651 = scmp.eq.s32.totalorder %s53, 0
      %p652 = por %p650, %p651
      %p653 = scmp.ne.s32.totalorder %s642, %s645
      %p654 = scmp.eq.s32.totalorder %s58, 3
      %p655 = por %p653, %p654
      %p656 = scmp.ne.s32.totalorder %s645, %s646
      %p657 = scmp.eq.s32.totalorder %s58, 0
      %p658 = por %p656, %p657
      %p659 = scmp.ne.s32.totalorder %s645, %s646
      %p660 = scmp.eq.s32.totalorder %s59, 3
      %p661 = por %p659, %p660
      %p663 = scmp.ne.s32.totalorder %s646, %s662
      %p664 = scmp.eq.s32.totalorder %s59, 0
      %p665 = por %p663, %p664
      %s666 = ssub.s32 %s60, %s72
      %p667 = scmp.eq.s32.totalorder %s666, 0
      %s669 = sadd.s32 %s668, 1
      %s670 = scalar_select %p667, %s668, %s669
      %p673 = pneg %p667
      %p674 = scmp.eq.s32.totalorder %s53, 3
      %p675 = por %p673, %p674
      %p676 = scmp.ne.s32.totalorder %s668, %s671
      %p677 = scmp.eq.s32.totalorder %s53, 0
      %p678 = por %p676, %p677
      %p679 = scmp.ne.s32.totalorder %s668, %s671
      %p680 = scmp.eq.s32.totalorder %s58, 3
      %p681 = por %p679, %p680
      %p682 = scmp.ne.s32.totalorder %s671, %s672
      %p683 = scmp.eq.s32.totalorder %s58, 0
      %p684 = por %p682, %p683
      %p685 = scmp.ne.s32.totalorder %s671, %s672
      %p686 = scmp.eq.s32.totalorder %s59, 3
      %p687 = por %p685, %p686
      %p689 = scmp.ne.s32.totalorder %s672, %s688
      %p690 = scmp.eq.s32.totalorder %s59, 0
      %p691 = por %p689, %p690
      %p692 = scmp.le.s32.totalorder 1, %s53
      %p693 = scmp.lt.s32.totalorder %s53, 5
      %p694 = pnand %p692, %p693
      %p695 = pneg %p694
      // Predicated region
      $region9: #{cached_transformer_decoder_forward.1} parent=5 // pred_check
        _
      $region10: #{cached_transformer_decoder_forward.1} parent=5 // pred_check_branch
        %697 = sbr.rel (%p694) target = $region12
      $region11: #{cached_transformer_decoder_forward.1} parent=5 // pred_region
        %s698 = ssub.s32 %s53, 1
        // Predicated region
        $region13: #{cached_transformer_decoder_forward.1} parent=11 // pred_check
          %p699 = pneg %p112
        $region14: #{cached_transformer_decoder_forward.1} parent=11 // pred_check_branch
          %701 = sbr.rel (%p699) target = $region16
        $region15: #{cached_transformer_decoder_forward.1} parent=11 // pred_region
          _
        $region16: #{cached_transformer_decoder_forward.1} parent=11 // pred_fallthru
          _
      $region12: #{cached_transformer_decoder_forward.1} parent=5 // pred_fallthru
        _
      %p702 = scmp.lt.s32.totalorder %s53, 4
      // Predicated region
      $region17: #{cached_transformer_decoder_forward.1} parent=5 // pred_check
        %p703 = pneg %p702
      $region18: #{cached_transformer_decoder_forward.1} parent=5 // pred_check_branch
        %705 = sbr.rel (%p703) target = $region20
      $region19: #{cached_transformer_decoder_forward.1} parent=5 // pred_region
        // Predicated region
        $region21: #{cached_transformer_decoder_forward.1} parent=19 // pred_check
          %p706 = pneg %p85
        $region22: #{cached_transformer_decoder_forward.1} parent=19 // pred_check_branch
          %708 = sbr.rel (%p706) target = $region24
        $region23: #{cached_transformer_decoder_forward.1} parent=19 // pred_region
          %p709 = scmp.lt.s32.totalorder %s60, 1
          %s710 = scalar_select %p709, %s60, 1
          %s711 = smul.addr %s710, 8
          %s712 = scalar_lea.vmem %s0, %s711
        $region24: #{cached_transformer_decoder_forward.1} parent=19 // pred_fallthru
          _
        // Predicated region
        $region25: #{cached_transformer_decoder_forward.1} parent=19 // pred_check
          %p713 = pneg %p132
        $region26: #{cached_transformer_decoder_forward.1} parent=19 // pred_check_branch
          %715 = sbr.rel (%p713) target = $region28
        $region27: #{cached_transformer_decoder_forward.1} parent=19 // pred_region
          %s716 = sand.u32 %s122, 1
          %s717 = scalar_lea.sflag [#allocation3], %s716
          %s718 = sand.u32 %s122, 1
          %s719 = smul.addr %s718, 8
          %s720 = scalar_lea.vmem [#allocation2], %s719
          %722 = vsyncadd %s717, 0
          %s723 = smul.addr %s60, 8
          %s724 = scalar_lea.hbm %s2, %s723
          %s726 = sshll.u32 %s724, 4
          %s727 = int_to_ptr.hbm [resolvable:$true] %s726
          %s728 = sshll.u32 %s720, 4
          %s729 = int_to_ptr.vmem [resolvable:$true] %s728
          %731 = dma.hbm_to_vmem [thread:$0]  %s727, 128, %s729, %s717
        $region28: #{cached_transformer_decoder_forward.1} parent=19 // pred_fallthru
          _
        // Predicated region
        $region29: #{cached_transformer_decoder_forward.1} parent=19 // pred_check
          %p732 = pneg %p158
        $region30: #{cached_transformer_decoder_forward.1} parent=19 // pred_check_branch
          %734 = sbr.rel (%p732) target = $region32
        $region31: #{cached_transformer_decoder_forward.1} parent=19 // pred_region
          %p735 = scmp.lt.s32.totalorder %s61, 1
          %s736 = scalar_select %p735, %s61, 1
          %s737 = smul.addr %s736, 4
          %s738 = smul.addr %s737, 4
          %s739 = scalar_lea.vmem %s3, %s738
        $region32: #{cached_transformer_decoder_forward.1} parent=19 // pred_fallthru
          _
        // Predicated region
        $region33: #{cached_transformer_decoder_forward.1} parent=19 // pred_check
          %p740 = pneg %p184
        $region34: #{cached_transformer_decoder_forward.1} parent=19 // pred_check_branch
          %742 = sbr.rel (%p740) target = $region36
        $region35: #{cached_transformer_decoder_forward.1} parent=19 // pred_region
          %p743 = scmp.lt.s32.totalorder %s61, 1
          %s744 = scalar_select %p743, %s61, 1
          %s745 = scalar_lea.vmem %s4, %s744
        $region36: #{cached_transformer_decoder_forward.1} parent=19 // pred_fallthru
          _
        // Predicated region
        $region37: #{cached_transformer_decoder_forward.1} parent=19 // pred_check
          %p746 = pneg %p210
        $region38: #{cached_transformer_decoder_forward.1} parent=19 // pred_check_branch
          %748 = sbr.rel (%p746) target = $region40
        $region39: #{cached_transformer_decoder_forward.1} parent=19 // pred_region
          %p749 = scmp.lt.s32.totalorder %s61, 1
          %s750 = scalar_select %p749, %s61, 1
          %s751 = smul.addr %s750, 4
          %s752 = smul.addr %s751, 4
          %s753 = scalar_lea.vmem %s5, %s752
        $region40: #{cached_transformer_decoder_forward.1} parent=19 // pred_fallthru
          _
        // Predicated region
        $region41: #{cached_transformer_decoder_forward.1} parent=19 // pred_check
          %p754 = pneg %p236
        $region42: #{cached_transformer_decoder_forward.1} parent=19 // pred_check_branch
          %756 = sbr.rel (%p754) target = $region44
        $region43: #{cached_transformer_decoder_forward.1} parent=19 // pred_region
          %p757 = scmp.lt.s32.totalorder %s61, 1
          %s758 = scalar_select %p757, %s61, 1
          %s759 = scalar_lea.vmem %s6, %s758
        $region44: #{cached_transformer_decoder_forward.1} parent=19 // pred_fallthru
          _
        // Predicated region
        $region45: #{cached_transformer_decoder_forward.1} parent=19 // pred_check
          %p760 = pneg %p262
        $region46: #{cached_transformer_decoder_forward.1} parent=19 // pred_check_branch
          %762 = sbr.rel (%p760) target = $region48
        $region47: #{cached_transformer_decoder_forward.1} parent=19 // pred_region
          %p763 = scmp.lt.s32.totalorder %s61, 1
          %s764 = scalar_select %p763, %s61, 1
          %s765 = smul.addr %s764, 4
          %s766 = smul.addr %s765, 4
          %s767 = scalar_lea.vmem %s7, %s766
        $region48: #{cached_transformer_decoder_forward.1} parent=19 // pred_fallthru
          _
        // Predicated region
        $region49: #{cached_transformer_decoder_forward.1} parent=19 // pred_check
          %p768 = pneg %p288
        $region50: #{cached_transformer_decoder_forward.1} parent=19 // pred_check_branch
          %770 = sbr.rel (%p768) target = $region52
        $region51: #{cached_transformer_decoder_forward.1} parent=19 // pred_region
          %p771 = scmp.lt.s32.totalorder %s61, 1
          %s772 = scalar_select %p771, %s61, 1
          %s773 = scalar_lea.vmem %s8, %s772
        $region52: #{cached_transformer_decoder_forward.1} parent=19 // pred_fallthru
          _
        // Predicated region
        $region53: #{cached_transformer_decoder_forward.1} parent=19 // pred_check
          %p774 = pneg %p314
        $region54: #{cached_transformer_decoder_forward.1} parent=19 // pred_check_branch
          %776 = sbr.rel (%p774) target = $region56
        $region55: #{cached_transformer_decoder_forward.1} parent=19 // pred_region
          %s777 = sand.u32 %s53, 1
          %s778 = scalar_lea.sflag [#allocation6], %s777
          %s779 = sand.u32 %s304, 1
          %s780 = smul.addr %s779, 16
          %s781 = scalar_lea.vmem [#allocation5], %s780
          %783 = vsyncadd %s778, 0
          %s784 = smul.addr %s61, 4
          %s785 = smul.addr %s784, 4
          %s786 = scalar_lea.hbm %s9, %s785
          %s787 = sshll.u32 %s786, 4
          %s788 = int_to_ptr.hbm [resolvable:$true] %s787
          %s789 = sshll.u32 %s781, 4
          %s790 = int_to_ptr.vmem [resolvable:$true] %s789
          %795 = dma.hbm_to_vmem [thread:$0]  %s788, 256, %s790, %s778, 64, 64, 4
        $region56: #{cached_transformer_decoder_forward.1} parent=19 // pred_fallthru
          _
        // Predicated region
        $region57: #{cached_transformer_decoder_forward.1} parent=19 // pred_check
          %p796 = pneg %p340
        $region58: #{cached_transformer_decoder_forward.1} parent=19 // pred_check_branch
          %798 = sbr.rel (%p796) target = $region60
        $region59: #{cached_transformer_decoder_forward.1} parent=19 // pred_region
          %p799 = scmp.lt.s32.totalorder %s61, 1
          %s800 = scalar_select %p799, %s61, 1
          %s801 = scalar_lea.vmem %s10, %s800
        $region60: #{cached_transformer_decoder_forward.1} parent=19 // pred_fallthru
          _
        // Predicated region
        $region61: #{cached_transformer_decoder_forward.1} parent=19 // pred_check
          %p802 = pneg %p366
        $region62: #{cached_transformer_decoder_forward.1} parent=19 // pred_check_branch
          %804 = sbr.rel (%p802) target = $region64
        $region63: #{cached_transformer_decoder_forward.1} parent=19 // pred_region
          %s805 = sand.u32 %s53, 1
          %s806 = scalar_lea.sflag [#allocation6], %s805
          %s807 = sand.u32 %s356, 1
          %s808 = smul.addr %s807, 16
          %s809 = scalar_lea.vmem [#allocation7], %s808
          %811 = vsyncadd %s806, 0
          %s812 = smul.addr %s61, 4
          %s813 = smul.addr %s812, 4
          %s814 = scalar_lea.hbm %s11, %s813
          %s815 = sshll.u32 %s814, 4
          %s816 = int_to_ptr.hbm [resolvable:$true] %s815
          %s817 = sshll.u32 %s809, 4
          %s818 = int_to_ptr.vmem [resolvable:$true] %s817
          %823 = dma.hbm_to_vmem [thread:$0]  %s816, 256, %s818, %s806, 64, 64, 4
        $region64: #{cached_transformer_decoder_forward.1} parent=19 // pred_fallthru
          _
        // Predicated region
        $region65: #{cached_transformer_decoder_forward.1} parent=19 // pred_check
          %p824 = pneg %p392
        $region66: #{cached_transformer_decoder_forward.1} parent=19 // pred_check_branch
          %826 = sbr.rel (%p824) target = $region68
        $region67: #{cached_transformer_decoder_forward.1} parent=19 // pred_region
          %s827 = sand.u32 %s53, 1
          %s828 = scalar_lea.sflag [#allocation9], %s827
          %s829 = sand.u32 %s382, 1
          %s830 = scalar_lea.vmem [#allocation8], %s829
          %832 = vsyncadd %s828, 0
          %s833 = scalar_lea.hbm %s12, %s61
          %s835 = sshll.u32 %s833, 4
          %s836 = int_to_ptr.hbm [resolvable:$true] %s835
          %s837 = sshll.u32 %s830, 4
          %s838 = int_to_ptr.vmem [resolvable:$true] %s837
          %840 = dma.hbm_to_vmem [thread:$0]  %s836, 16, %s838, %s828
        $region68: #{cached_transformer_decoder_forward.1} parent=19 // pred_fallthru
          _
        // Predicated region
        $region69: #{cached_transformer_decoder_forward.1} parent=19 // pred_check
          %p841 = pneg %p418
        $region70: #{cached_transformer_decoder_forward.1} parent=19 // pred_check_branch
          %843 = sbr.rel (%p841) target = $region72
        $region71: #{cached_transformer_decoder_forward.1} parent=19 // pred_region
          %s844 = sand.u32 %s53, 1
          %s845 = scalar_lea.sflag [#allocation9], %s844
          %s846 = sand.u32 %s408, 1
          %s847 = smul.addr %s846, 16
          %s848 = scalar_lea.vmem [#allocation10], %s847
          %850 = vsyncadd %s845, 0
          %s851 = smul.addr %s61, 4
          %s852 = smul.addr %s851, 4
          %s853 = scalar_lea.hbm %s13, %s852
          %s854 = sshll.u32 %s853, 4
          %s855 = int_to_ptr.hbm [resolvable:$true] %s854
          %s856 = sshll.u32 %s848, 4
          %s857 = int_to_ptr.vmem [resolvable:$true] %s856
          %862 = dma.hbm_to_vmem [thread:$0]  %s855, 256, %s857, %s845, 64, 64, 4
        $region72: #{cached_transformer_decoder_forward.1} parent=19 // pred_fallthru
          _
        // Predicated region
        $region73: #{cached_transformer_decoder_forward.1} parent=19 // pred_check
          %p863 = pneg %p444
        $region74: #{cached_transformer_decoder_forward.1} parent=19 // pred_check_branch
          %865 = sbr.rel (%p863) target = $region76
        $region75: #{cached_transformer_decoder_forward.1} parent=19 // pred_region
          %s866 = sand.u32 %s53, 1
          %s867 = scalar_lea.sflag [#allocation12], %s866
          %s868 = sand.u32 %s434, 1
          %s869 = scalar_lea.vmem [#allocation11], %s868
          %871 = vsyncadd %s867, 0
          %s872 = scalar_lea.hbm %s14, %s61
          %s874 = sshll.u32 %s872, 4
          %s875 = int_to_ptr.hbm [resolvable:$true] %s874
          %s876 = sshll.u32 %s869, 4
          %s877 = int_to_ptr.vmem [resolvable:$true] %s876
          %879 = dma.hbm_to_vmem [thread:$0]  %s875, 16, %s877, %s867
        $region76: #{cached_transformer_decoder_forward.1} parent=19 // pred_fallthru
          _
        // Predicated region
        $region77: #{cached_transformer_decoder_forward.1} parent=19 // pred_check
          %p880 = pneg %p470
        $region78: #{cached_transformer_decoder_forward.1} parent=19 // pred_check_branch
          %882 = sbr.rel (%p880) target = $region80
        $region79: #{cached_transformer_decoder_forward.1} parent=19 // pred_region
          %p883 = scmp.lt.s32.totalorder %s61, 1
          %s884 = scalar_select %p883, %s61, 1
          %s885 = smul.addr %s884, 8
          %s886 = smul.addr %s885, 4
          %s887 = scalar_lea.vmem %s15, %s886
        $region80: #{cached_transformer_decoder_forward.1} parent=19 // pred_fallthru
          _
        // Predicated region
        $region81: #{cached_transformer_decoder_forward.1} parent=19 // pred_check
          %p888 = pneg %p496
        $region82: #{cached_transformer_decoder_forward.1} parent=19 // pred_check_branch
          %890 = sbr.rel (%p888) target = $region84
        $region83: #{cached_transformer_decoder_forward.1} parent=19 // pred_region
          %s891 = sand.u32 %s53, 1
          %s892 = scalar_lea.sflag [#allocation12], %s891
          %s893 = sand.u32 %s486, 1
          %s894 = scalar_lea.vmem [#allocation13], %s893
          %896 = vsyncadd %s892, 0
          %s897 = scalar_lea.hbm %s16, %s61
          %s899 = sshll.u32 %s897, 4
          %s900 = int_to_ptr.hbm [resolvable:$true] %s899
          %s901 = sshll.u32 %s894, 4
          %s902 = int_to_ptr.vmem [resolvable:$true] %s901
          %904 = dma.hbm_to_vmem [thread:$0]  %s900, 16, %s902, %s892
        $region84: #{cached_transformer_decoder_forward.1} parent=19 // pred_fallthru
          _
        // Predicated region
        $region85: #{cached_transformer_decoder_forward.1} parent=19 // pred_check
          %p905 = pneg %p522
        $region86: #{cached_transformer_decoder_forward.1} parent=19 // pred_check_branch
          %907 = sbr.rel (%p905) target = $region88
        $region87: #{cached_transformer_decoder_forward.1} parent=19 // pred_region
          %s908 = sand.u32 %s53, 1
          %s909 = scalar_lea.sflag [#allocation15], %s908
          %s910 = sand.u32 %s512, 1
          %s911 = scalar_lea.vmem [#allocation14], %s910
          %913 = vsyncadd %s909, 0
          %s914 = scalar_lea.hbm %s17, %s61
          %s916 = sshll.u32 %s914, 4
          %s917 = int_to_ptr.hbm [resolvable:$true] %s916
          %s918 = sshll.u32 %s911, 4
          %s919 = int_to_ptr.vmem [resolvable:$true] %s918
          %921 = dma.hbm_to_vmem [thread:$0]  %s917, 16, %s919, %s909
        $region88: #{cached_transformer_decoder_forward.1} parent=19 // pred_fallthru
          _
        // Predicated region
        $region89: #{cached_transformer_decoder_forward.1} parent=19 // pred_check
          %p922 = pneg %p548
        $region90: #{cached_transformer_decoder_forward.1} parent=19 // pred_check_branch
          %924 = sbr.rel (%p922) target = $region92
        $region91: #{cached_transformer_decoder_forward.1} parent=19 // pred_region
          %s925 = sand.u32 %s53, 1
          %s926 = scalar_lea.sflag [#allocation15], %s925
          %s927 = sand.u32 %s538, 1
          %s928 = scalar_lea.vmem [#allocation16], %s927
          %930 = vsyncadd %s926, 0
          %s931 = scalar_lea.hbm %s18, %s61
          %s933 = sshll.u32 %s931, 4
          %s934 = int_to_ptr.hbm [resolvable:$true] %s933
          %s935 = sshll.u32 %s928, 4
          %s936 = int_to_ptr.vmem [resolvable:$true] %s935
          %938 = dma.hbm_to_vmem [thread:$0]  %s934, 16, %s936, %s926
        $region92: #{cached_transformer_decoder_forward.1} parent=19 // pred_fallthru
          _
        // Predicated region
        $region93: #{cached_transformer_decoder_forward.1} parent=19 // pred_check
          %p939 = pneg %p574
        $region94: #{cached_transformer_decoder_forward.1} parent=19 // pred_check_branch
          %941 = sbr.rel (%p939) target = $region96
        $region95: #{cached_transformer_decoder_forward.1} parent=19 // pred_region
          %s942 = sand.u32 %s53, 1
          %s943 = scalar_lea.sflag [#allocation18], %s942
          %s944 = sand.u32 %s564, 1
          %s945 = scalar_lea.vmem [#allocation17], %s944
          %947 = vsyncadd %s943, 0
          %s948 = scalar_lea.hbm %s19, %s61
          %s950 = sshll.u32 %s948, 4
          %s951 = int_to_ptr.hbm [resolvable:$true] %s950
          %s952 = sshll.u32 %s945, 4
          %s953 = int_to_ptr.vmem [resolvable:$true] %s952
          %955 = dma.hbm_to_vmem [thread:$0]  %s951, 16, %s953, %s943
        $region96: #{cached_transformer_decoder_forward.1} parent=19 // pred_fallthru
          _
        // Predicated region
        $region97: #{cached_transformer_decoder_forward.1} parent=19 // pred_check
          %p956 = pneg %p600
        $region98: #{cached_transformer_decoder_forward.1} parent=19 // pred_check_branch
          %958 = sbr.rel (%p956) target = $region100
        $region99: #{cached_transformer_decoder_forward.1} parent=19 // pred_region
          %s959 = sand.u32 %s53, 1
          %s960 = scalar_lea.sflag [#allocation18], %s959
          %s961 = sand.u32 %s590, 1
          %s962 = scalar_lea.vmem [#allocation19], %s961
          %964 = vsyncadd %s960, 0
          %s965 = scalar_lea.hbm %s20, %s61
          %s967 = sshll.u32 %s965, 4
          %s968 = int_to_ptr.hbm [resolvable:$true] %s967
          %s969 = sshll.u32 %s962, 4
          %s970 = int_to_ptr.vmem [resolvable:$true] %s969
          %972 = dma.hbm_to_vmem [thread:$0]  %s968, 16, %s970, %s960
        $region100: #{cached_transformer_decoder_forward.1} parent=19 // pred_fallthru
          _
        // Predicated region
        $region101: #{cached_transformer_decoder_forward.1} parent=19 // pred_check
          %p973 = pneg %p626
        $region102: #{cached_transformer_decoder_forward.1} parent=19 // pred_check_branch
          %975 = sbr.rel (%p973) target = $region104
        $region103: #{cached_transformer_decoder_forward.1} parent=19 // pred_region
          %s976 = sand.u32 %s53, 1
          %s977 = scalar_lea.sflag [#allocation21], %s976
          %s978 = sand.u32 %s616, 1
          %s979 = scalar_lea.vmem [#allocation20], %s978
          %981 = vsyncadd %s977, 0
          %s982 = scalar_lea.hbm %s21, %s61
          %s984 = sshll.u32 %s982, 4
          %s985 = int_to_ptr.hbm [resolvable:$true] %s984
          %s986 = sshll.u32 %s979, 4
          %s987 = int_to_ptr.vmem [resolvable:$true] %s986
          %989 = dma.hbm_to_vmem [thread:$0]  %s985, 16, %s987, %s977
        $region104: #{cached_transformer_decoder_forward.1} parent=19 // pred_fallthru
          _
        // Predicated region
        $region105: #{cached_transformer_decoder_forward.1} parent=19 // pred_check
          %p990 = pneg %p652
        $region106: #{cached_transformer_decoder_forward.1} parent=19 // pred_check_branch
          %992 = sbr.rel (%p990) target = $region108
        $region107: #{cached_transformer_decoder_forward.1} parent=19 // pred_region
          %s993 = sand.u32 %s53, 1
          %s994 = scalar_lea.sflag [#allocation21], %s993
          %s995 = sand.u32 %s642, 1
          %s996 = scalar_lea.vmem [#allocation22], %s995
          %998 = vsyncadd %s994, 0
          %s999 = scalar_lea.hbm %s22, %s61
          %s1001 = sshll.u32 %s999, 4
          %s1002 = int_to_ptr.hbm [resolvable:$true] %s1001
          %s1003 = sshll.u32 %s996, 4
          %s1004 = int_to_ptr.vmem [resolvable:$true] %s1003
          %1006 = dma.hbm_to_vmem [thread:$0]  %s1002, 16, %s1004, %s994
        $region108: #{cached_transformer_decoder_forward.1} parent=19 // pred_fallthru
          _
      $region20: #{cached_transformer_decoder_forward.1} parent=5 // pred_fallthru
        _
      %p1007 = scmp.le.s32.totalorder 1, %s53
      %p1008 = scmp.lt.s32.totalorder %s53, 5
      %p1009 = pnand %p1007, %p1008
      %p1010 = pneg %p1009
      // Predicated region
      $region109: #{cached_transformer_decoder_forward.1} parent=5 // pred_check
        _
      $region110: #{cached_transformer_decoder_forward.1} parent=5 // pred_check_branch
        %1012 = sbr.rel (%p1009) target = $region112
      $region111: #{cached_transformer_decoder_forward.1} parent=5 // pred_region
        %s1013 = ssub.s32 %s53, 1
        %s1014 = sand.u32 %s125, 1
        %s1015 = scalar_lea.sflag [#allocation3], %s1014
        %s1016 = sand.u32 %s125, 1
        %s1017 = smul.addr %s1016, 8
        %s1018 = scalar_lea.vmem [#allocation2], %s1017
        // Predicated region
        $region113: #{cached_transformer_decoder_forward.1} parent=111 // pred_check
          %p1019 = pneg %p138
        $region114: #{cached_transformer_decoder_forward.1} parent=111 // pred_check_branch
          %1021 = sbr.rel (%p1019) target = $region116
        $region115: #{cached_transformer_decoder_forward.1} parent=111 // pred_region
          %1023 = dma.done %s1015, 128
        $region116: #{cached_transformer_decoder_forward.1} parent=111 // pred_fallthru
          _
        %s1024 = sand.u32 %s58, 1
        %s1025 = scalar_lea.sflag [#allocation6], %s1024
        %s1026 = sand.u32 %s307, 1
        %s1027 = smul.addr %s1026, 16
        %s1028 = scalar_lea.vmem [#allocation5], %s1027
        // Predicated region
        $region117: #{cached_transformer_decoder_forward.1} parent=111 // pred_check
          %p1029 = pneg %p320
        $region118: #{cached_transformer_decoder_forward.1} parent=111 // pred_check_branch
          %1031 = sbr.rel (%p1029) target = $region120
        $region119: #{cached_transformer_decoder_forward.1} parent=111 // pred_region
          %1033 = dma.done %s1025, 256
        $region120: #{cached_transformer_decoder_forward.1} parent=111 // pred_fallthru
          _
        %s1034 = sand.u32 %s58, 1
        %s1035 = scalar_lea.sflag [#allocation6], %s1034
        %s1036 = sand.u32 %s359, 1
        %s1037 = smul.addr %s1036, 16
        %s1038 = scalar_lea.vmem [#allocation7], %s1037
        // Predicated region
        $region121: #{cached_transformer_decoder_forward.1} parent=111 // pred_check
          %p1039 = pneg %p372
        $region122: #{cached_transformer_decoder_forward.1} parent=111 // pred_check_branch
          %1041 = sbr.rel (%p1039) target = $region124
        $region123: #{cached_transformer_decoder_forward.1} parent=111 // pred_region
          %1043 = dma.done %s1035, 256
        $region124: #{cached_transformer_decoder_forward.1} parent=111 // pred_fallthru
          _
        %s1044 = sand.u32 %s58, 1
        %s1045 = scalar_lea.sflag [#allocation9], %s1044
        %s1046 = sand.u32 %s385, 1
        %s1047 = scalar_lea.vmem [#allocation8], %s1046
        // Predicated region
        $region125: #{cached_transformer_decoder_forward.1} parent=111 // pred_check
          %p1048 = pneg %p398
        $region126: #{cached_transformer_decoder_forward.1} parent=111 // pred_check_branch
          %1050 = sbr.rel (%p1048) target = $region128
        $region127: #{cached_transformer_decoder_forward.1} parent=111 // pred_region
          %1052 = dma.done %s1045, 16
        $region128: #{cached_transformer_decoder_forward.1} parent=111 // pred_fallthru
          _
        %s1053 = sand.u32 %s58, 1
        %s1054 = scalar_lea.sflag [#allocation9], %s1053
        %s1055 = sand.u32 %s411, 1
        %s1056 = smul.addr %s1055, 16
        %s1057 = scalar_lea.vmem [#allocation10], %s1056
        // Predicated region
        $region129: #{cached_transformer_decoder_forward.1} parent=111 // pred_check
          %p1058 = pneg %p424
        $region130: #{cached_transformer_decoder_forward.1} parent=111 // pred_check_branch
          %1060 = sbr.rel (%p1058) target = $region132
        $region131: #{cached_transformer_decoder_forward.1} parent=111 // pred_region
          %1062 = dma.done %s1054, 256
        $region132: #{cached_transformer_decoder_forward.1} parent=111 // pred_fallthru
          _
        %s1063 = sand.u32 %s58, 1
        %s1064 = scalar_lea.sflag [#allocation12], %s1063
        %s1065 = sand.u32 %s437, 1
        %s1066 = scalar_lea.vmem [#allocation11], %s1065
        // Predicated region
        $region133: #{cached_transformer_decoder_forward.1} parent=111 // pred_check
          %p1067 = pneg %p450
        $region134: #{cached_transformer_decoder_forward.1} parent=111 // pred_check_branch
          %1069 = sbr.rel (%p1067) target = $region136
        $region135: #{cached_transformer_decoder_forward.1} parent=111 // pred_region
          %1071 = dma.done %s1064, 16
        $region136: #{cached_transformer_decoder_forward.1} parent=111 // pred_fallthru
          _
        %s1072 = sand.u32 %s58, 1
        %s1073 = scalar_lea.sflag [#allocation12], %s1072
        %s1074 = sand.u32 %s489, 1
        %s1075 = scalar_lea.vmem [#allocation13], %s1074
        // Predicated region
        $region137: #{cached_transformer_decoder_forward.1} parent=111 // pred_check
          %p1076 = pneg %p502
        $region138: #{cached_transformer_decoder_forward.1} parent=111 // pred_check_branch
          %1078 = sbr.rel (%p1076) target = $region140
        $region139: #{cached_transformer_decoder_forward.1} parent=111 // pred_region
          %1080 = dma.done %s1073, 16
        $region140: #{cached_transformer_decoder_forward.1} parent=111 // pred_fallthru
          _
        %s1081 = sand.u32 %s58, 1
        %s1082 = scalar_lea.sflag [#allocation15], %s1081
        %s1083 = sand.u32 %s515, 1
        %s1084 = scalar_lea.vmem [#allocation14], %s1083
        // Predicated region
        $region141: #{cached_transformer_decoder_forward.1} parent=111 // pred_check
          %p1085 = pneg %p528
        $region142: #{cached_transformer_decoder_forward.1} parent=111 // pred_check_branch
          %1087 = sbr.rel (%p1085) target = $region144
        $region143: #{cached_transformer_decoder_forward.1} parent=111 // pred_region
          %1089 = dma.done %s1082, 16
        $region144: #{cached_transformer_decoder_forward.1} parent=111 // pred_fallthru
          _
        %s1090 = sand.u32 %s58, 1
        %s1091 = scalar_lea.sflag [#allocation15], %s1090
        %s1092 = sand.u32 %s541, 1
        %s1093 = scalar_lea.vmem [#allocation16], %s1092
        // Predicated region
        $region145: #{cached_transformer_decoder_forward.1} parent=111 // pred_check
          %p1094 = pneg %p554
        $region146: #{cached_transformer_decoder_forward.1} parent=111 // pred_check_branch
          %1096 = sbr.rel (%p1094) target = $region148
        $region147: #{cached_transformer_decoder_forward.1} parent=111 // pred_region
          %1098 = dma.done %s1091, 16
        $region148: #{cached_transformer_decoder_forward.1} parent=111 // pred_fallthru
          _
        %s1099 = sand.u32 %s58, 1
        %s1100 = scalar_lea.sflag [#allocation18], %s1099
        %s1101 = sand.u32 %s567, 1
        %s1102 = scalar_lea.vmem [#allocation17], %s1101
        // Predicated region
        $region149: #{cached_transformer_decoder_forward.1} parent=111 // pred_check
          %p1103 = pneg %p580
        $region150: #{cached_transformer_decoder_forward.1} parent=111 // pred_check_branch
          %1105 = sbr.rel (%p1103) target = $region152
        $region151: #{cached_transformer_decoder_forward.1} parent=111 // pred_region
          %1107 = dma.done %s1100, 16
        $region152: #{cached_transformer_decoder_forward.1} parent=111 // pred_fallthru
          _
        %s1108 = sand.u32 %s58, 1
        %s1109 = scalar_lea.sflag [#allocation18], %s1108
        %s1110 = sand.u32 %s593, 1
        %s1111 = scalar_lea.vmem [#allocation19], %s1110
        // Predicated region
        $region153: #{cached_transformer_decoder_forward.1} parent=111 // pred_check
          %p1112 = pneg %p606
        $region154: #{cached_transformer_decoder_forward.1} parent=111 // pred_check_branch
          %1114 = sbr.rel (%p1112) target = $region156
        $region155: #{cached_transformer_decoder_forward.1} parent=111 // pred_region
          %1116 = dma.done %s1109, 16
        $region156: #{cached_transformer_decoder_forward.1} parent=111 // pred_fallthru
          _
        %s1117 = sand.u32 %s58, 1
        %s1118 = scalar_lea.sflag [#allocation21], %s1117
        %s1119 = sand.u32 %s619, 1
        %s1120 = scalar_lea.vmem [#allocation20], %s1119
        // Predicated region
        $region157: #{cached_transformer_decoder_forward.1} parent=111 // pred_check
          %p1121 = pneg %p632
        $region158: #{cached_transformer_decoder_forward.1} parent=111 // pred_check_branch
          %1123 = sbr.rel (%p1121) target = $region160
        $region159: #{cached_transformer_decoder_forward.1} parent=111 // pred_region
          %1125 = dma.done %s1118, 16
        $region160: #{cached_transformer_decoder_forward.1} parent=111 // pred_fallthru
          _
        %s1126 = sand.u32 %s58, 1
        %s1127 = scalar_lea.sflag [#allocation21], %s1126
        %s1128 = sand.u32 %s645, 1
        %s1129 = scalar_lea.vmem [#allocation22], %s1128
        // Predicated region
        $region161: #{cached_transformer_decoder_forward.1} parent=111 // pred_check
          %p1130 = pneg %p658
        $region162: #{cached_transformer_decoder_forward.1} parent=111 // pred_check_branch
          %1132 = sbr.rel (%p1130) target = $region164
        $region163: #{cached_transformer_decoder_forward.1} parent=111 // pred_region
          %1134 = dma.done %s1127, 16
        $region164: #{cached_transformer_decoder_forward.1} parent=111 // pred_fallthru
          _
        %p1135 = scmp.lt.s32.totalorder %s62, 1
        %s1136 = scalar_select %p1135, %s62, 1
        %s1137 = smul.addr %s1136, 8
        %s1138 = scalar_lea.vmem %s0, %s1137
        %p1139 = pneg %p91
        %p1140 = pneg %p88
        %p1141 = pneg %p112
        %p1142 = pneg %p109
        %s1143 = sand.u32 %s125, 1
        %s1144 = scalar_lea.sflag [#allocation3], %s1143
        %s1145 = sand.u32 %s125, 1
        %s1146 = smul.addr %s1145, 8
        %s1147 = scalar_lea.vmem [#allocation2], %s1146
        %p1148 = pneg %p138
        %p1149 = pneg %p135
        %p1150 = scmp.lt.s32.totalorder %s63, 1
        %s1151 = scalar_select %p1150, %s63, 1
        %s1152 = smul.addr %s1151, 4
        %s1153 = smul.addr %s1152, 4
        %s1154 = scalar_lea.vmem %s3, %s1153
        %p1155 = pneg %p164
        %p1156 = pneg %p161
        %p1157 = scmp.lt.s32.totalorder %s63, 1
        %s1158 = scalar_select %p1157, %s63, 1
        %s1159 = scalar_lea.vmem %s4, %s1158
        %p1160 = pneg %p190
        %p1161 = pneg %p187
        %p1162 = scmp.lt.s32.totalorder %s63, 1
        %s1163 = scalar_select %p1162, %s63, 1
        %s1164 = smul.addr %s1163, 4
        %s1165 = smul.addr %s1164, 4
        %s1166 = scalar_lea.vmem %s5, %s1165
        %p1167 = pneg %p216
        %p1168 = pneg %p213
        %p1169 = scmp.lt.s32.totalorder %s63, 1
        %s1170 = scalar_select %p1169, %s63, 1
        %s1171 = scalar_lea.vmem %s6, %s1170
        %p1172 = pneg %p242
        %p1173 = pneg %p239
        %p1174 = scmp.lt.s32.totalorder %s63, 1
        %s1175 = scalar_select %p1174, %s63, 1
        %s1176 = smul.addr %s1175, 4
        %s1177 = smul.addr %s1176, 4
        %s1178 = scalar_lea.vmem %s7, %s1177
        %p1179 = pneg %p268
        %p1180 = pneg %p265
        %p1181 = scmp.lt.s32.totalorder %s63, 1
        %s1182 = scalar_select %p1181, %s63, 1
        %s1183 = scalar_lea.vmem %s8, %s1182
        %p1184 = pneg %p294
        %p1185 = pneg %p291
        %s1186 = sand.u32 %s58, 1
        %s1187 = scalar_lea.sflag [#allocation6], %s1186
        %s1188 = sand.u32 %s307, 1
        %s1189 = smul.addr %s1188, 16
        %s1190 = scalar_lea.vmem [#allocation5], %s1189
        %p1191 = pneg %p320
        %p1192 = pneg %p317
        %p1193 = scmp.lt.s32.totalorder %s63, 1
        %s1194 = scalar_select %p1193, %s63, 1
        %s1195 = scalar_lea.vmem %s10, %s1194
        %p1196 = pneg %p346
        %p1197 = pneg %p343
        %s1198 = sand.u32 %s58, 1
        %s1199 = scalar_lea.sflag [#allocation6], %s1198
        %s1200 = sand.u32 %s359, 1
        %s1201 = smul.addr %s1200, 16
        %s1202 = scalar_lea.vmem [#allocation7], %s1201
        %p1203 = pneg %p372
        %p1204 = pneg %p369
        %s1205 = sand.u32 %s58, 1
        %s1206 = scalar_lea.sflag [#allocation9], %s1205
        %s1207 = sand.u32 %s385, 1
        %s1208 = scalar_lea.vmem [#allocation8], %s1207
        %p1209 = pneg %p398
        %p1210 = pneg %p395
        %s1211 = sand.u32 %s58, 1
        %s1212 = scalar_lea.sflag [#allocation9], %s1211
        %s1213 = sand.u32 %s411, 1
        %s1214 = smul.addr %s1213, 16
        %s1215 = scalar_lea.vmem [#allocation10], %s1214
        %p1216 = pneg %p424
        %p1217 = pneg %p421
        %s1218 = sand.u32 %s58, 1
        %s1219 = scalar_lea.sflag [#allocation12], %s1218
        %s1220 = sand.u32 %s437, 1
        %s1221 = scalar_lea.vmem [#allocation11], %s1220
        %p1222 = pneg %p450
        %p1223 = pneg %p447
        %p1224 = scmp.lt.s32.totalorder %s63, 1
        %s1225 = scalar_select %p1224, %s63, 1
        %s1226 = smul.addr %s1225, 8
        %s1227 = smul.addr %s1226, 4
        %s1228 = scalar_lea.vmem %s15, %s1227
        %p1229 = pneg %p476
        %p1230 = pneg %p473
        %s1231 = sand.u32 %s58, 1
        %s1232 = scalar_lea.sflag [#allocation12], %s1231
        %s1233 = sand.u32 %s489, 1
        %s1234 = scalar_lea.vmem [#allocation13], %s1233
        %p1235 = pneg %p502
        %p1236 = pneg %p499
        %s1237 = sand.u32 %s58, 1
        %s1238 = scalar_lea.sflag [#allocation15], %s1237
        %s1239 = sand.u32 %s515, 1
        %s1240 = scalar_lea.vmem [#allocation14], %s1239
        %p1241 = pneg %p528
        %p1242 = pneg %p525
        %s1243 = sand.u32 %s58, 1
        %s1244 = scalar_lea.sflag [#allocation15], %s1243
        %s1245 = sand.u32 %s541, 1
        %s1246 = scalar_lea.vmem [#allocation16], %s1245
        %p1247 = pneg %p554
        %p1248 = pneg %p551
        %s1249 = sand.u32 %s58, 1
        %s1250 = scalar_lea.sflag [#allocation18], %s1249
        %s1251 = sand.u32 %s567, 1
        %s1252 = scalar_lea.vmem [#allocation17], %s1251
        %p1253 = pneg %p580
        %p1254 = pneg %p577
        %s1255 = sand.u32 %s58, 1
        %s1256 = scalar_lea.sflag [#allocation18], %s1255
        %s1257 = sand.u32 %s593, 1
        %s1258 = scalar_lea.vmem [#allocation19], %s1257
        %p1259 = pneg %p606
        %p1260 = pneg %p603
        %s1261 = sand.u32 %s58, 1
        %s1262 = scalar_lea.sflag [#allocation21], %s1261
        %s1263 = sand.u32 %s619, 1
        %s1264 = scalar_lea.vmem [#allocation20], %s1263
        %p1265 = pneg %p632
        %p1266 = pneg %p629
        %s1267 = sand.u32 %s58, 1
        %s1268 = scalar_lea.sflag [#allocation21], %s1267
        %s1269 = sand.u32 %s645, 1
        %s1270 = scalar_lea.vmem [#allocation22], %s1269
        %p1271 = pneg %p658
        %p1272 = pneg %p655
        %p1273 = pneg %p684
        %p1274 = pneg %p681
        %s1275 = sand.u32 %s671, 1
        %s1276 = scalar_lea.sflag [#allocation4], %s1275
        %s1277 = sand.u32 %s671, 1
        %s1278 = smul.addr %s1277, 8
        %s1279 = scalar_lea.vmem [#allocation23], %s1278
        %p1280 = scmp.lt.s32.totalorder %s62, 1
        %s1281 = scalar_select %p1280, %s62, 1
        %s1282 = smul.addr %s1281, 8
        %s1283 = scalar_lea.vmem %s0, %s1282
        %p1284 = scmp.lt.s32.totalorder %s63, 1
        %s1285 = scalar_select %p1284, %s63, 1
        %s1286 = smul.addr %s1285, 4
        %s1287 = smul.addr %s1286, 4
        %s1288 = scalar_lea.vmem %s3, %s1287
        %p1289 = scmp.lt.s32.totalorder %s63, 1
        %s1290 = scalar_select %p1289, %s63, 1
        %s1291 = scalar_lea.vmem %s4, %s1290
        %p1292 = scmp.lt.s32.totalorder %s63, 1
        %s1293 = scalar_select %p1292, %s63, 1
        %s1294 = smul.addr %s1293, 4
        %s1295 = smul.addr %s1294, 4
        %s1296 = scalar_lea.vmem %s5, %s1295
        %p1297 = scmp.lt.s32.totalorder %s63, 1
        %s1298 = scalar_select %p1297, %s63, 1
        %s1299 = scalar_lea.vmem %s6, %s1298
        %p1300 = scmp.lt.s32.totalorder %s63, 1
        %s1301 = scalar_select %p1300, %s63, 1
        %s1302 = smul.addr %s1301, 4
        %s1303 = smul.addr %s1302, 4
        %s1304 = scalar_lea.vmem %s7, %s1303
        %p1305 = scmp.lt.s32.totalorder %s63, 1
        %s1306 = scalar_select %p1305, %s63, 1
        %s1307 = scalar_lea.vmem %s8, %s1306
        %p1308 = scmp.lt.s32.totalorder %s63, 1
        %s1309 = scalar_select %p1308, %s63, 1
        %s1310 = scalar_lea.vmem %s10, %s1309
        %p1311 = scmp.lt.s32.totalorder %s63, 1
        %s1312 = scalar_select %p1311, %s63, 1
        %s1313 = smul.addr %s1312, 8
        %s1314 = smul.addr %s1313, 4
        %s1315 = scalar_lea.vmem %s15, %s1314
        %p1317 = scmp.eq.s32.totalorder %s63, 0
        // Predicated region
        $region165: #{cached_transformer_decoder_forward.1} parent=111 // pred_check
          %p1318 = pneg %p1317
        $region166: #{cached_transformer_decoder_forward.1} parent=111 // pred_check_branch
          %1320 = sbr.rel (%p1318) target = $region168
        $region167: #{cached_transformer_decoder_forward.1} parent=111 // pred_region
          %v1321 = vld [vmem:[%s1283] sm:$0xff]
          %v1322 = vld [vmem:[%s1] sm:$0xff]
          %v1323 = vadd.f32 %v1321, %v1322
          %vm1324 = vcmask 261120
          %1325 = vst.msk [vmem:[%s1279] sm:$0xff] %vm1324, %v1323
        $region168: #{cached_transformer_decoder_forward.1} parent=111 // pred_fallthru
          _
        %v1326 = vld [vmem:[%s1279] sm:$0xff]
        %v1327 = vld [vmem:[%s1288] sm:$0xf]
        %v1328 = vld [vmem:[%s1288 + $0x4] sm:$0xf]
        %v1329 = vld [vmem:[%s1288 + $0x8] sm:$0xf]
        %v1330 = vld [vmem:[%s1288 + $0xc] sm:$0xf]
        %v1331 = vld [vmem:[%s1291] sm:$0x1]
        %v1332 = vpack.c.bf16 %v1326, %v1326
        %v1334 = vperm.slane %v1331, 0
        %v1340 = vunpack.c.l.b16 %v1327
        %v1341 = vunpack.c.l.b16 %v1328
        %v1342 = vunpack.c.l.b16 %v1329
        %v1343 = vunpack.c.l.b16 %v1330
        %v1344 = vpack.c.b16 %v1341, %v1340
        %v1345 = vpack.c.b16 %v1343, %v1342
        %vm1348 = vcmask 261120
        %v1350 = vsel %vm1348, %v1332, 0
        %1352 = vmatpush.bf16.msra.mxu0 0
        %1353 = vmatpush.bf16.msra.mxu0 0
        %1354 = vmatpush.bf16.msra.mxu0 0
        %1355 = vmatpush.bf16.msra.mxu0 0
        %1356 = vmatpush.bf16.msra.mxu0 0
        %1357 = vmatpush.bf16.msra.mxu0 0
        %1358 = vmatpush.bf16.msra.mxu0 %v1345
        %1359 = vmatpush.bf16.msra.mxu0 %v1344
        %1360 = vmatmul.bf16.gmra.mxu0 %v1350
        %v1361 = vpop.f32.mrf.mxu0
        %v1362 = vadd.f32 %v1334, %v1361
        %v1363 = vpop.f32.mrf.mxu0
        %1364 = vdwg.mxu0
        %v1365 = vpack.c.bf16 %v1362, %v1362
        %1367 = vrot.lane.b32.xlu0 %v1365, 96
        %v1368 = vpop.permute.xlu0 %1367
        %vm1369 = vcmask 64512
        %v1371 = vsel %vm1369, %v1365, 0
        %v1374 = vsel %vm1369, %v1368, 0
        %1376 = vmatpush.bf16.xpose.msra.mxu0 0
        %1377 = vmatpush.bf16.xpose.msra.mxu0 0
        %1378 = vmatpush.bf16.xpose.msra.mxu0 0
        %1379 = vmatpush.bf16.xpose.msra.mxu0 0
        %1380 = vmatpush.bf16.xpose.msra.mxu0 0
        %1381 = vmatpush.bf16.xpose.msra.mxu0 0
        %1382 = vmatpush.bf16.xpose.msra.mxu0 0
        %1383 = vmatpush.bf16.xpose.msra.mxu0 %v1374
        %1384 = vmatmul.bf16.gmra.mxu0 %v1371
        %v1385 = vpop.f32.mrf.mxu0
        %v1386 = vadd.f32 0.0, %v1385
        %v1387 = vpop.f32.mrf.mxu0
        %1388 = vdwg.mxu0
        %v1389 = vmul.f32 %v1386, 0.35355338
        %v1390 = vsel %vm1369, %v1389, -inf
        %1391 = vmax.xlane.f32.xlu0 %v1390
        %v1392 = vpop.xlane.xlu0 %1391
        %v1393 = vsub.f32 %v1389, %v1392
        %v1394 = vmul.f32 %v1393, 1.442695
        %v1395 = vpow.pop %v1394
        %v1396 = vsel %vm1369, %v1395, 0.0
        %1397 = vadd.xlane.f32.xlu0 %v1396
        %v1398 = vpop.xlane.xlu0 %1397
        %v1399 = vrcp.pop %v1398
        %v1400 = vmul.f32 %v1395, %v1399
        %v1401 = vpack.c.bf16 %v1400, %v1400
        %1402 = vrot.lane.b32.xlu0 %v1365, 64
        %v1403 = vpop.permute.xlu0 %1402
        %v1405 = vsel %vm1369, %v1401, 0
        %vm1407 = vcmask 1043456
        %v1409 = vsel %vm1407, %v1403, 0
        %1411 = vmatpush.bf16.msra.mxu0 0
        %1412 = vmatpush.bf16.msra.mxu0 0
        %1413 = vmatpush.bf16.msra.mxu0 0
        %1414 = vmatpush.bf16.msra.mxu0 0
        %1415 = vmatpush.bf16.msra.mxu0 0
        %1416 = vmatpush.bf16.msra.mxu0 0
        %1417 = vmatpush.bf16.msra.mxu0 0
        %1418 = vmatpush.bf16.msra.mxu0 %v1409
        %1419 = vmatmul.bf16.gmra.mxu0 %v1405
        %v1420 = vpop.f32.mrf.mxu0
        %v1421 = vadd.f32 0.0, %v1420
        %v1422 = vpop.f32.mrf.mxu0
        %1423 = vdwg.mxu0
        %1424 = vrot.lane.b32.xlu0 %v1365, 120
        %v1425 = vpop.permute.xlu0 %1424
        %1426 = vrot.lane.b32.xlu0 %v1365, 88
        %v1427 = vpop.permute.xlu0 %1426
        %v1429 = vsel %vm1369, %v1425, 0
        %v1432 = vsel %vm1369, %v1427, 0
        %1434 = vmatpush.bf16.xpose.msra.mxu0 0
        %1435 = vmatpush.bf16.xpose.msra.mxu0 0
        %1436 = vmatpush.bf16.xpose.msra.mxu0 0
        %1437 = vmatpush.bf16.xpose.msra.mxu0 0
        %1438 = vmatpush.bf16.xpose.msra.mxu0 0
        %1439 = vmatpush.bf16.xpose.msra.mxu0 0
        %1440 = vmatpush.bf16.xpose.msra.mxu0 0
        %1441 = vmatpush.bf16.xpose.msra.mxu0 %v1432
        %1442 = vmatmul.bf16.gmra.mxu0 %v1429
        %v1443 = vpop.f32.mrf.mxu0
        %v1444 = vadd.f32 0.0, %v1443
        %v1445 = vpop.f32.mrf.mxu0
        %1446 = vdwg.mxu0
        %v1447 = vmul.f32 %v1444, 0.35355338
        %v1448 = vsel %vm1369, %v1447, -inf
        %1449 = vmax.xlane.f32.xlu0 %v1448
        %v1450 = vpop.xlane.xlu0 %1449
        %v1451 = vsub.f32 %v1447, %v1450
        %v1452 = vmul.f32 %v1451, 1.442695
        %v1453 = vpow.pop %v1452
        %v1454 = vsel %vm1369, %v1453, 0.0
        %1455 = vadd.xlane.f32.xlu0 %v1454
        %v1456 = vpop.xlane.xlu0 %1455
        %v1457 = vrcp.pop %v1456
        %v1458 = vmul.f32 %v1453, %v1457
        %v1459 = vpack.c.bf16 %v1458, %v1458
        %1460 = vrot.lane.b32.xlu0 %v1365, 56
        %v1461 = vpop.permute.xlu0 %1460
        %v1463 = vsel %vm1369, %v1459, 0
        %v1466 = vsel %vm1407, %v1461, 0
        %1468 = vmatpush.bf16.msra.mxu0 0
        %1469 = vmatpush.bf16.msra.mxu0 0
        %1470 = vmatpush.bf16.msra.mxu0 0
        %1471 = vmatpush.bf16.msra.mxu0 0
        %1472 = vmatpush.bf16.msra.mxu0 0
        %1473 = vmatpush.bf16.msra.mxu0 0
        %1474 = vmatpush.bf16.msra.mxu0 0
        %1475 = vmatpush.bf16.msra.mxu0 %v1466
        %1476 = vmatmul.bf16.gmra.mxu0 %v1463
        %v1477 = vpop.f32.mrf.mxu0
        %v1478 = vadd.f32 0.0, %v1477
        %v1479 = vpop.f32.mrf.mxu0
        %1480 = vdwg.mxu0
        %1481 = vrot.lane.b32.xlu0 %v1365, 112
        %v1482 = vpop.permute.xlu0 %1481
        %1483 = vrot.lane.b32.xlu0 %v1365, 80
        %v1484 = vpop.permute.xlu0 %1483
        %v1486 = vsel %vm1369, %v1482, 0
        %v1489 = vsel %vm1369, %v1484, 0
        %1491 = vmatpush.bf16.xpose.msra.mxu0 0
        %1492 = vmatpush.bf16.xpose.msra.mxu0 0
        %1493 = vmatpush.bf16.xpose.msra.mxu0 0
        %1494 = vmatpush.bf16.xpose.msra.mxu0 0
        %1495 = vmatpush.bf16.xpose.msra.mxu0 0
        %1496 = vmatpush.bf16.xpose.msra.mxu0 0
        %1497 = vmatpush.bf16.xpose.msra.mxu0 0
        %1498 = vmatpush.bf16.xpose.msra.mxu0 %v1489
        %1499 = vmatmul.bf16.gmra.mxu0 %v1486
        %v1500 = vpop.f32.mrf.mxu0
        %v1501 = vadd.f32 0.0, %v1500
        %v1502 = vpop.f32.mrf.mxu0
        %1503 = vdwg.mxu0
        %v1504 = vmul.f32 %v1501, 0.35355338
        %v1505 = vsel %vm1369, %v1504, -inf
        %1506 = vmax.xlane.f32.xlu0 %v1505
        %v1507 = vpop.xlane.xlu0 %1506
        %v1508 = vsub.f32 %v1504, %v1507
        %v1509 = vmul.f32 %v1508, 1.442695
        %v1510 = vpow.pop %v1509
        %v1511 = vsel %vm1369, %v1510, 0.0
        %1512 = vadd.xlane.f32.xlu0 %v1511
        %v1513 = vpop.xlane.xlu0 %1512
        %v1514 = vrcp.pop %v1513
        %v1515 = vmul.f32 %v1510, %v1514
        %v1516 = vpack.c.bf16 %v1515, %v1515
        %1517 = vrot.lane.b32.xlu0 %v1365, 48
        %v1518 = vpop.permute.xlu0 %1517
        %v1520 = vsel %vm1369, %v1516, 0
        %v1523 = vsel %vm1407, %v1518, 0
        %1525 = vmatpush.bf16.msra.mxu0 0
        %1526 = vmatpush.bf16.msra.mxu0 0
        %1527 = vmatpush.bf16.msra.mxu0 0
        %1528 = vmatpush.bf16.msra.mxu0 0
        %1529 = vmatpush.bf16.msra.mxu0 0
        %1530 = vmatpush.bf16.msra.mxu0 0
        %1531 = vmatpush.bf16.msra.mxu0 0
        %1532 = vmatpush.bf16.msra.mxu0 %v1523
        %1533 = vmatmul.bf16.gmra.mxu0 %v1520
        %v1534 = vpop.f32.mrf.mxu0
        %v1535 = vadd.f32 0.0, %v1534
        %v1536 = vpop.f32.mrf.mxu0
        %1537 = vdwg.mxu0
        %1538 = vrot.lane.b32.xlu0 %v1365, 104
        %v1539 = vpop.permute.xlu0 %1538
        %1540 = vrot.lane.b32.xlu0 %v1365, 72
        %v1541 = vpop.permute.xlu0 %1540
        %v1543 = vsel %vm1369, %v1539, 0
        %v1546 = vsel %vm1369, %v1541, 0
        %1548 = vmatpush.bf16.xpose.msra.mxu0 0
        %1549 = vmatpush.bf16.xpose.msra.mxu0 0
        %1550 = vmatpush.bf16.xpose.msra.mxu0 0
        %1551 = vmatpush.bf16.xpose.msra.mxu0 0
        %1552 = vmatpush.bf16.xpose.msra.mxu0 0
        %1553 = vmatpush.bf16.xpose.msra.mxu0 0
        %1554 = vmatpush.bf16.xpose.msra.mxu0 0
        %1555 = vmatpush.bf16.xpose.msra.mxu0 %v1546
        %1556 = vmatmul.bf16.gmra.mxu0 %v1543
        %v1557 = vpop.f32.mrf.mxu0
        %v1558 = vadd.f32 0.0, %v1557
        %v1559 = vpop.f32.mrf.mxu0
        %1560 = vdwg.mxu0
        %v1561 = vmul.f32 %v1558, 0.35355338
        %v1562 = vsel %vm1369, %v1561, -inf
        %1563 = vmax.xlane.f32.xlu0 %v1562
        %v1564 = vpop.xlane.xlu0 %1563
        %v1565 = vsub.f32 %v1561, %v1564
        %v1566 = vmul.f32 %v1565, 1.442695
        %v1567 = vpow.pop %v1566
        %v1568 = vsel %vm1369, %v1567, 0.0
        %1569 = vadd.xlane.f32.xlu0 %v1568
        %v1570 = vpop.xlane.xlu0 %1569
        %v1571 = vrcp.pop %v1570
        %v1572 = vmul.f32 %v1567, %v1571
        %v1573 = vpack.c.bf16 %v1572, %v1572
        %1574 = vrot.lane.b32.xlu0 %v1365, 40
        %v1575 = vpop.permute.xlu0 %1574
        %v1577 = vsel %vm1369, %v1573, 0
        %v1580 = vsel %vm1407, %v1575, 0
        %1582 = vmatpush.bf16.msra.mxu0 0
        %1583 = vmatpush.bf16.msra.mxu0 0
        %1584 = vmatpush.bf16.msra.mxu0 0
        %1585 = vmatpush.bf16.msra.mxu0 0
        %1586 = vmatpush.bf16.msra.mxu0 0
        %1587 = vmatpush.bf16.msra.mxu0 0
        %1588 = vmatpush.bf16.msra.mxu0 0
        %1589 = vmatpush.bf16.msra.mxu0 %v1580
        %1590 = vmatmul.bf16.gmra.mxu0 %v1577
        %v1591 = vpop.f32.mrf.mxu0
        %v1592 = vadd.f32 0.0, %v1591
        %v1593 = vpop.f32.mrf.mxu0
        %1594 = vdwg.mxu0
        %1596 = vrot.lane.b32.xlu0 %v1478, 8
        %v1597 = vpop.permute.xlu0 %1596
        %1600 = vrot.lane.b32.xlu0 %v1535, 16
        %v1601 = vpop.permute.xlu0 %1600
        %1604 = vrot.lane.b32.xlu0 %v1592, 24
        %v1605 = vpop.permute.xlu0 %1604
        %v1607 = vsel %vm1369, %v1421, %v1597
        %vm1608 = vcmask 130048
        %v1609 = vsel %vm1608, %v1607, %v1601
        %vm1610 = vcmask 195584
        %v1611 = vsel %vm1610, %v1609, %v1605
        %v1612 = vld [vmem:[%s1296] sm:$0xf]
        %v1613 = vld [vmem:[%s1296 + $0x4] sm:$0xf]
        %v1614 = vld [vmem:[%s1296 + $0x8] sm:$0xf]
        %v1615 = vld [vmem:[%s1296 + $0xc] sm:$0xf]
        %v1616 = vld [vmem:[%s1299] sm:$0x1]
        %v1617 = vpack.c.bf16 %v1611, %v1611
        %v1619 = vperm.slane %v1616, 0
        %v1625 = vunpack.c.l.b16 %v1612
        %v1626 = vunpack.c.l.b16 %v1613
        %v1627 = vunpack.c.l.b16 %v1614
        %v1628 = vunpack.c.l.b16 %v1615
        %v1629 = vpack.c.b16 %v1626, %v1625
        %v1630 = vpack.c.b16 %v1628, %v1627
        %v1634 = vsel %vm1348, %v1617, 0
        %1636 = vmatpush.bf16.msra.mxu0 0
        %1637 = vmatpush.bf16.msra.mxu0 0
        %1638 = vmatpush.bf16.msra.mxu0 0
        %1639 = vmatpush.bf16.msra.mxu0 0
        %1640 = vmatpush.bf16.msra.mxu0 0
        %1641 = vmatpush.bf16.msra.mxu0 0
        %1642 = vmatpush.bf16.msra.mxu0 %v1630
        %1643 = vmatpush.bf16.msra.mxu0 %v1629
        %1644 = vmatmul.bf16.gmra.mxu0 %v1634
        %v1645 = vpop.f32.mrf.mxu0
        %v1646 = vadd.f32 %v1619, %v1645
        %v1647 = vpop.f32.mrf.mxu0
        %1648 = vdwg.mxu0
        %v1649 = vadd.f32 %v1326, %v1646
        %v1650 = vld [vmem:[%s1084] sm:$0x1]
        %v1651 = vld [vmem:[%s1093] sm:$0x1]
        %v1652 = vsel %vm1348, %v1649, 0.0
        %1653 = vadd.xlane.f32.xlu0 %v1652
        %v1654 = vpop.xlane.xlu0 %1653
        %v1655 = vrcp.pop 32.0
        %v1656 = vmul.f32 32.0, %v1655
        %v1657 = vsub.f32 1.0, %v1656
        %v1658 = vmul.f32 %v1655, %v1657
        %v1659 = vadd.f32 %v1655, %v1658
        %vm1660 = vweird.f32 %v1655
        %v1661 = vsel %vm1660, %v1655, %v1659
        %v1662 = vmul.f32 %v1654, %v1661
        %v1663 = vsub.f32 %v1649, %v1662
        %v1664 = vmul.f32 %v1663, %v1663
        %v1665 = vsel %vm1348, %v1664, 0.0
        %1666 = vadd.xlane.f32.xlu0 %v1665
        %v1667 = vpop.xlane.xlu0 %1666
        %v1668 = vmul.f32 %v1667, %v1661
        %v1669 = vadd.f32 %v1668, 1e-05
        %v1670 = vrsqrt.pop %v1669
        %v1671 = vmul.f32 %v1670, %v1669
        %v1672 = vmul.f32 %v1671, %v1670
        %v1673 = vmul.f32 0.5, %v1672
        %v1674 = vsub.f32 1.5, %v1673
        %v1675 = vmul.f32 %v1670, %v1674
        %vm1676 = vweird.f32 %v1669
        %vm1677 = vweird.f32 %v1670
        %vm1678 = vmor %vm1676, %vm1677
        %v1679 = vsel %vm1678, %v1670, %v1675
        %v1680 = vmul.f32 %v1663, %v1679
        %v1682 = vperm.slane %v1650, 0
        %v1684 = vmul.f32 %v1680, %v1682
        %v1686 = vperm.slane %v1651, 0
        %v1688 = vadd.f32 %v1684, %v1686
        %v1689 = vld [vmem:[%s1018] sm:$0xff]
        %v1690 = vld [vmem:[%s1304] sm:$0xf]
        %v1691 = vld [vmem:[%s1304 + $0x4] sm:$0xf]
        %v1692 = vld [vmem:[%s1304 + $0x8] sm:$0xf]
        %v1693 = vld [vmem:[%s1304 + $0xc] sm:$0xf]
        %v1694 = vld [vmem:[%s1307] sm:$0x1]
        %v1695 = vpack.c.bf16 %v1688, %v1688
        %v1697 = vperm.slane %v1694, 0
        %v1703 = vunpack.c.l.b16 %v1690
        %v1704 = vunpack.c.l.b16 %v1691
        %v1705 = vunpack.c.l.b16 %v1692
        %v1706 = vunpack.c.l.b16 %v1693
        %v1707 = vpack.c.b16 %v1704, %v1703
        %v1708 = vpack.c.b16 %v1706, %v1705
        %v1712 = vsel %vm1348, %v1695, 0
        %1714 = vmatpush.bf16.msra.mxu0 0
        %1715 = vmatpush.bf16.msra.mxu0 0
        %1716 = vmatpush.bf16.msra.mxu0 0
        %1717 = vmatpush.bf16.msra.mxu0 0
        %1718 = vmatpush.bf16.msra.mxu0 0
        %1719 = vmatpush.bf16.msra.mxu0 0
        %1720 = vmatpush.bf16.msra.mxu0 %v1708
        %1721 = vmatpush.bf16.msra.mxu0 %v1707
        %1722 = vmatmul.bf16.gmra.mxu0 %v1712
        %v1723 = vpop.f32.mrf.mxu0
        %v1724 = vadd.f32 %v1697, %v1723
        %v1725 = vpop.f32.mrf.mxu0
        %1726 = vdwg.mxu0
        %v1727 = vld [vmem:[%s1028] sm:$0xf]
        %v1728 = vld [vmem:[%s1028 + $0x4] sm:$0xf]
        %v1729 = vld [vmem:[%s1028 + $0x8] sm:$0xf]
        %v1730 = vld [vmem:[%s1028 + $0xc] sm:$0xf]
        %v1731 = vld [vmem:[%s1310] sm:$0x1]
        %v1732 = vpack.c.bf16 %v1689, %v1689
        %v1734 = vperm.slane %v1731, 0
        %v1740 = vunpack.c.l.b16 %v1727
        %v1741 = vunpack.c.l.b16 %v1728
        %v1742 = vunpack.c.l.b16 %v1729
        %v1743 = vunpack.c.l.b16 %v1730
        %v1744 = vpack.c.b16 %v1741, %v1740
        %v1745 = vpack.c.b16 %v1743, %v1742
        %v1749 = vsel %vm1348, %v1732, 0
        %1751 = vmatpush.bf16.msra.mxu0 0
        %1752 = vmatpush.bf16.msra.mxu0 0
        %1753 = vmatpush.bf16.msra.mxu0 0
        %1754 = vmatpush.bf16.msra.mxu0 0
        %1755 = vmatpush.bf16.msra.mxu0 0
        %1756 = vmatpush.bf16.msra.mxu0 0
        %1757 = vmatpush.bf16.msra.mxu0 %v1745
        %1758 = vmatpush.bf16.msra.mxu0 %v1744
        %1759 = vmatmul.bf16.gmra.mxu0 %v1749
        %v1760 = vpop.f32.mrf.mxu0
        %v1761 = vadd.f32 %v1734, %v1760
        %v1762 = vpop.f32.mrf.mxu0
        %1763 = vdwg.mxu0
        %v1764 = vpack.c.bf16 %v1724, %v1724
        %v1765 = vpack.c.bf16 %v1761, %v1761
        %v1767 = vsel %vm1369, %v1764, 0
        %v1770 = vsel %vm1369, %v1765, 0
        %1772 = vmatpush.bf16.xpose.msra.mxu0 0
        %1773 = vmatpush.bf16.xpose.msra.mxu0 0
        %1774 = vmatpush.bf16.xpose.msra.mxu0 0
        %1775 = vmatpush.bf16.xpose.msra.mxu0 0
        %1776 = vmatpush.bf16.xpose.msra.mxu0 0
        %1777 = vmatpush.bf16.xpose.msra.mxu0 0
        %1778 = vmatpush.bf16.xpose.msra.mxu0 0
        %1779 = vmatpush.bf16.xpose.msra.mxu0 %v1770
        %1780 = vmatmul.bf16.gmra.mxu0 %v1767
        %v1781 = vpop.f32.mrf.mxu0
        %v1782 = vadd.f32 0.0, %v1781
        %v1783 = vpop.f32.mrf.mxu0
        %1784 = vdwg.mxu0
        %v1785 = vmul.f32 %v1782, 0.35355338
        %v1786 = vsel %vm1369, %v1785, -inf
        %1787 = vmax.xlane.f32.xlu0 %v1786
        %v1788 = vpop.xlane.xlu0 %1787
        %v1789 = vsub.f32 %v1785, %v1788
        %v1790 = vmul.f32 %v1789, 1.442695
        %v1791 = vpow.pop %v1790
        %v1792 = vsel %vm1369, %v1791, 0.0
        %1793 = vadd.xlane.f32.xlu0 %v1792
        %v1794 = vpop.xlane.xlu0 %1793
        %v1795 = vrcp.pop %v1794
        %v1796 = vmul.f32 %v1791, %v1795
        %v1797 = vpack.c.bf16 %v1796, %v1796
        %1799 = vrot.lane.b32.xlu0 %v1765, 96
        %v1800 = vpop.permute.xlu0 %1799
        %v1802 = vsel %vm1369, %v1797, 0
        %v1805 = vsel %vm1407, %v1800, 0
        %1807 = vmatpush.bf16.msra.mxu0 0
        %1808 = vmatpush.bf16.msra.mxu0 0
        %1809 = vmatpush.bf16.msra.mxu0 0
        %1810 = vmatpush.bf16.msra.mxu0 0
        %1811 = vmatpush.bf16.msra.mxu0 0
        %1812 = vmatpush.bf16.msra.mxu0 0
        %1813 = vmatpush.bf16.msra.mxu0 0
        %1814 = vmatpush.bf16.msra.mxu0 %v1805
        %1815 = vmatmul.bf16.gmra.mxu0 %v1802
        %v1816 = vpop.f32.mrf.mxu0
        %v1817 = vadd.f32 0.0, %v1816
        %v1818 = vpop.f32.mrf.mxu0
        %1819 = vdwg.mxu0
        %1821 = vrot.lane.b32.xlu0 %v1764, 120
        %v1822 = vpop.permute.xlu0 %1821
        %1823 = vrot.lane.b32.xlu0 %v1765, 120
        %v1824 = vpop.permute.xlu0 %1823
        %v1826 = vsel %vm1369, %v1822, 0
        %v1829 = vsel %vm1369, %v1824, 0
        %1831 = vmatpush.bf16.xpose.msra.mxu0 0
        %1832 = vmatpush.bf16.xpose.msra.mxu0 0
        %1833 = vmatpush.bf16.xpose.msra.mxu0 0
        %1834 = vmatpush.bf16.xpose.msra.mxu0 0
        %1835 = vmatpush.bf16.xpose.msra.mxu0 0
        %1836 = vmatpush.bf16.xpose.msra.mxu0 0
        %1837 = vmatpush.bf16.xpose.msra.mxu0 0
        %1838 = vmatpush.bf16.xpose.msra.mxu0 %v1829
        %1839 = vmatmul.bf16.gmra.mxu0 %v1826
        %v1840 = vpop.f32.mrf.mxu0
        %v1841 = vadd.f32 0.0, %v1840
        %v1842 = vpop.f32.mrf.mxu0
        %1843 = vdwg.mxu0
        %v1844 = vmul.f32 %v1841, 0.35355338
        %v1845 = vsel %vm1369, %v1844, -inf
        %1846 = vmax.xlane.f32.xlu0 %v1845
        %v1847 = vpop.xlane.xlu0 %1846
        %v1848 = vsub.f32 %v1844, %v1847
        %v1849 = vmul.f32 %v1848, 1.442695
        %v1850 = vpow.pop %v1849
        %v1851 = vsel %vm1369, %v1850, 0.0
        %1852 = vadd.xlane.f32.xlu0 %v1851
        %v1853 = vpop.xlane.xlu0 %1852
        %v1854 = vrcp.pop %v1853
        %v1855 = vmul.f32 %v1850, %v1854
        %v1856 = vpack.c.bf16 %v1855, %v1855
        %1857 = vrot.lane.b32.xlu0 %v1765, 88
        %v1858 = vpop.permute.xlu0 %1857
        %v1860 = vsel %vm1369, %v1856, 0
        %v1863 = vsel %vm1407, %v1858, 0
        %1865 = vmatpush.bf16.msra.mxu0 0
        %1866 = vmatpush.bf16.msra.mxu0 0
        %1867 = vmatpush.bf16.msra.mxu0 0
        %1868 = vmatpush.bf16.msra.mxu0 0
        %1869 = vmatpush.bf16.msra.mxu0 0
        %1870 = vmatpush.bf16.msra.mxu0 0
        %1871 = vmatpush.bf16.msra.mxu0 0
        %1872 = vmatpush.bf16.msra.mxu0 %v1863
        %1873 = vmatmul.bf16.gmra.mxu0 %v1860
        %v1874 = vpop.f32.mrf.mxu0
        %v1875 = vadd.f32 0.0, %v1874
        %v1876 = vpop.f32.mrf.mxu0
        %1877 = vdwg.mxu0
        %1878 = vrot.lane.b32.xlu0 %v1764, 112
        %v1879 = vpop.permute.xlu0 %1878
        %1880 = vrot.lane.b32.xlu0 %v1765, 112
        %v1881 = vpop.permute.xlu0 %1880
        %v1883 = vsel %vm1369, %v1879, 0
        %v1886 = vsel %vm1369, %v1881, 0
        %1888 = vmatpush.bf16.xpose.msra.mxu0 0
        %1889 = vmatpush.bf16.xpose.msra.mxu0 0
        %1890 = vmatpush.bf16.xpose.msra.mxu0 0
        %1891 = vmatpush.bf16.xpose.msra.mxu0 0
        %1892 = vmatpush.bf16.xpose.msra.mxu0 0
        %1893 = vmatpush.bf16.xpose.msra.mxu0 0
        %1894 = vmatpush.bf16.xpose.msra.mxu0 0
        %1895 = vmatpush.bf16.xpose.msra.mxu0 %v1886
        %1896 = vmatmul.bf16.gmra.mxu0 %v1883
        %v1897 = vpop.f32.mrf.mxu0
        %v1898 = vadd.f32 0.0, %v1897
        %v1899 = vpop.f32.mrf.mxu0
        %1900 = vdwg.mxu0
        %v1901 = vmul.f32 %v1898, 0.35355338
        %v1902 = vsel %vm1369, %v1901, -inf
        %1903 = vmax.xlane.f32.xlu0 %v1902
        %v1904 = vpop.xlane.xlu0 %1903
        %v1905 = vsub.f32 %v1901, %v1904
        %v1906 = vmul.f32 %v1905, 1.442695
        %v1907 = vpow.pop %v1906
        %v1908 = vsel %vm1369, %v1907, 0.0
        %1909 = vadd.xlane.f32.xlu0 %v1908
        %v1910 = vpop.xlane.xlu0 %1909
        %v1911 = vrcp.pop %v1910
        %v1912 = vmul.f32 %v1907, %v1911
        %v1913 = vpack.c.bf16 %v1912, %v1912
        %1914 = vrot.lane.b32.xlu0 %v1765, 80
        %v1915 = vpop.permute.xlu0 %1914
        %v1917 = vsel %vm1369, %v1913, 0
        %v1920 = vsel %vm1407, %v1915, 0
        %1922 = vmatpush.bf16.msra.mxu0 0
        %1923 = vmatpush.bf16.msra.mxu0 0
        %1924 = vmatpush.bf16.msra.mxu0 0
        %1925 = vmatpush.bf16.msra.mxu0 0
        %1926 = vmatpush.bf16.msra.mxu0 0
        %1927 = vmatpush.bf16.msra.mxu0 0
        %1928 = vmatpush.bf16.msra.mxu0 0
        %1929 = vmatpush.bf16.msra.mxu0 %v1920
        %1930 = vmatmul.bf16.gmra.mxu0 %v1917
        %v1931 = vpop.f32.mrf.mxu0
        %v1932 = vadd.f32 0.0, %v1931
        %v1933 = vpop.f32.mrf.mxu0
        %1934 = vdwg.mxu0
        %1935 = vrot.lane.b32.xlu0 %v1764, 104
        %v1936 = vpop.permute.xlu0 %1935
        %1937 = vrot.lane.b32.xlu0 %v1765, 104
        %v1938 = vpop.permute.xlu0 %1937
        %v1940 = vsel %vm1369, %v1936, 0
        %v1943 = vsel %vm1369, %v1938, 0
        %1945 = vmatpush.bf16.xpose.msra.mxu0 0
        %1946 = vmatpush.bf16.xpose.msra.mxu0 0
        %1947 = vmatpush.bf16.xpose.msra.mxu0 0
        %1948 = vmatpush.bf16.xpose.msra.mxu0 0
        %1949 = vmatpush.bf16.xpose.msra.mxu0 0
        %1950 = vmatpush.bf16.xpose.msra.mxu0 0
        %1951 = vmatpush.bf16.xpose.msra.mxu0 0
        %1952 = vmatpush.bf16.xpose.msra.mxu0 %v1943
        %1953 = vmatmul.bf16.gmra.mxu0 %v1940
        %v1954 = vpop.f32.mrf.mxu0
        %v1955 = vadd.f32 0.0, %v1954
        %v1956 = vpop.f32.mrf.mxu0
        %1957 = vdwg.mxu0
        %v1958 = vmul.f32 %v1955, 0.35355338
        %v1959 = vsel %vm1369, %v1958, -inf
        %1960 = vmax.xlane.f32.xlu0 %v1959
        %v1961 = vpop.xlane.xlu0 %1960
        %v1962 = vsub.f32 %v1958, %v1961
        %v1963 = vmul.f32 %v1962, 1.442695
        %v1964 = vpow.pop %v1963
        %v1965 = vsel %vm1369, %v1964, 0.0
        %1966 = vadd.xlane.f32.xlu0 %v1965
        %v1967 = vpop.xlane.xlu0 %1966
        %v1968 = vrcp.pop %v1967
        %v1969 = vmul.f32 %v1964, %v1968
        %v1970 = vpack.c.bf16 %v1969, %v1969
        %1971 = vrot.lane.b32.xlu0 %v1765, 72
        %v1972 = vpop.permute.xlu0 %1971
        %v1974 = vsel %vm1369, %v1970, 0
        %v1977 = vsel %vm1407, %v1972, 0
        %1979 = vmatpush.bf16.msra.mxu0 0
        %1980 = vmatpush.bf16.msra.mxu0 0
        %1981 = vmatpush.bf16.msra.mxu0 0
        %1982 = vmatpush.bf16.msra.mxu0 0
        %1983 = vmatpush.bf16.msra.mxu0 0
        %1984 = vmatpush.bf16.msra.mxu0 0
        %1985 = vmatpush.bf16.msra.mxu0 0
        %1986 = vmatpush.bf16.msra.mxu0 %v1977
        %1987 = vmatmul.bf16.gmra.mxu0 %v1974
        %v1988 = vpop.f32.mrf.mxu0
        %v1989 = vadd.f32 0.0, %v1988
        %v1990 = vpop.f32.mrf.mxu0
        %1991 = vdwg.mxu0
        %1993 = vrot.lane.b32.xlu0 %v1875, 8
        %v1994 = vpop.permute.xlu0 %1993
        %1997 = vrot.lane.b32.xlu0 %v1932, 16
        %v1998 = vpop.permute.xlu0 %1997
        %2001 = vrot.lane.b32.xlu0 %v1989, 24
        %v2002 = vpop.permute.xlu0 %2001
        %v2004 = vsel %vm1369, %v1817, %v1994
        %v2005 = vsel %vm1608, %v2004, %v1998
        %v2006 = vsel %vm1610, %v2005, %v2002
        %v2007 = vld [vmem:[%s1038] sm:$0xf]
        %v2008 = vld [vmem:[%s1038 + $0x4] sm:$0xf]
        %v2009 = vld [vmem:[%s1038 + $0x8] sm:$0xf]
        %v2010 = vld [vmem:[%s1038 + $0xc] sm:$0xf]
        %v2011 = vld [vmem:[%s1047] sm:$0x1]
        %v2012 = vpack.c.bf16 %v2006, %v2006
        %v2014 = vperm.slane %v2011, 0
        %v2020 = vunpack.c.l.b16 %v2007
        %v2021 = vunpack.c.l.b16 %v2008
        %v2022 = vunpack.c.l.b16 %v2009
        %v2023 = vunpack.c.l.b16 %v2010
        %v2024 = vpack.c.b16 %v2021, %v2020
        %v2025 = vpack.c.b16 %v2023, %v2022
        %v2029 = vsel %vm1348, %v2012, 0
        %2031 = vmatpush.bf16.msra.mxu0 0
        %2032 = vmatpush.bf16.msra.mxu0 0
        %2033 = vmatpush.bf16.msra.mxu0 0
        %2034 = vmatpush.bf16.msra.mxu0 0
        %2035 = vmatpush.bf16.msra.mxu0 0
        %2036 = vmatpush.bf16.msra.mxu0 0
        %2037 = vmatpush.bf16.msra.mxu0 %v2025
        %2038 = vmatpush.bf16.msra.mxu0 %v2024
        %2039 = vmatmul.bf16.gmra.mxu0 %v2029
        %v2040 = vpop.f32.mrf.mxu0
        %v2041 = vadd.f32 %v2014, %v2040
        %v2042 = vpop.f32.mrf.mxu0
        %2043 = vdwg.mxu0
        %v2044 = vadd.f32 %v1688, %v2041
        %v2045 = vld [vmem:[%s1102] sm:$0x1]
        %v2046 = vld [vmem:[%s1111] sm:$0x1]
        %v2047 = vsel %vm1348, %v2044, 0.0
        %2048 = vadd.xlane.f32.xlu0 %v2047
        %v2049 = vpop.xlane.xlu0 %2048
        %v2050 = vmul.f32 %v2049, %v1661
        %v2051 = vsub.f32 %v2044, %v2050
        %v2052 = vmul.f32 %v2051, %v2051
        %v2053 = vsel %vm1348, %v2052, 0.0
        %2054 = vadd.xlane.f32.xlu0 %v2053
        %v2055 = vpop.xlane.xlu0 %2054
        %v2056 = vmul.f32 %v2055, %v1661
        %v2057 = vadd.f32 %v2056, 1e-05
        %v2058 = vrsqrt.pop %v2057
        %v2059 = vmul.f32 %v2058, %v2057
        %v2060 = vmul.f32 %v2059, %v2058
        %v2061 = vmul.f32 0.5, %v2060
        %v2062 = vsub.f32 1.5, %v2061
        %v2063 = vmul.f32 %v2058, %v2062
        %vm2064 = vweird.f32 %v2057
        %vm2065 = vweird.f32 %v2058
        %vm2066 = vmor %vm2064, %vm2065
        %v2067 = vsel %vm2066, %v2058, %v2063
        %v2068 = vmul.f32 %v2051, %v2067
        %v2070 = vperm.slane %v2045, 0
        %v2072 = vmul.f32 %v2068, %v2070
        %v2074 = vperm.slane %v2046, 0
        %v2076 = vadd.f32 %v2072, %v2074
        %v2077 = vld [vmem:[%s1057] sm:$0xf]
        %v2078 = vld [vmem:[%s1057 + $0x4] sm:$0xf]
        %v2079 = vld [vmem:[%s1057 + $0x8] sm:$0xf]
        %v2080 = vld [vmem:[%s1057 + $0xc] sm:$0xf]
        %v2081 = vld [vmem:[%s1066] sm:$0x1]
        %v2082 = vpack.c.bf16 %v2076, %v2076
        %v2084 = vperm.slane %v2081, 0
        %v2090 = vunpack.c.l.b16 %v2077
        %v2091 = vunpack.c.l.b16 %v2078
        %v2092 = vunpack.c.l.b16 %v2079
        %v2093 = vunpack.c.l.b16 %v2080
        %v2094 = vpack.c.b16 %v2091, %v2090
        %v2095 = vpack.c.b16 %v2093, %v2092
        %v2099 = vsel %vm1348, %v2082, 0
        %2101 = vmatpush.bf16.msra.mxu0 0
        %2102 = vmatpush.bf16.msra.mxu0 0
        %2103 = vmatpush.bf16.msra.mxu0 0
        %2104 = vmatpush.bf16.msra.mxu0 0
        %2105 = vmatpush.bf16.msra.mxu0 0
        %2106 = vmatpush.bf16.msra.mxu0 0
        %2107 = vmatpush.bf16.msra.mxu0 %v2095
        %2108 = vmatpush.bf16.msra.mxu0 %v2094
        %2109 = vmatmul.bf16.gmra.mxu0 %v2099
        %v2110 = vpop.f32.mrf.mxu0
        %v2111 = vadd.f32 %v2084, %v2110
        %v2112 = vpop.f32.mrf.mxu0
        %2113 = vdwg.mxu0
        %v2114 = vmax.f32 %v2111, 0.0
        %v2115 = vld [vmem:[%s1315] sm:$0xf]
        %v2116 = vld [vmem:[%s1315 + $0x4] sm:$0xf]
        %v2117 = vld [vmem:[%s1315 + $0x8] sm:$0xf]
        %v2118 = vld [vmem:[%s1315 + $0xc] sm:$0xf]
        %v2119 = vld [vmem:[%s1315 + $0x10] sm:$0xf]
        %v2120 = vld [vmem:[%s1315 + $0x14] sm:$0xf]
        %v2121 = vld [vmem:[%s1315 + $0x18] sm:$0xf]
        %v2122 = vld [vmem:[%s1315 + $0x1c] sm:$0xf]
        %v2123 = vld [vmem:[%s1075] sm:$0x1]
        %v2124 = vpack.c.bf16 %v2114, %v2114
        %v2126 = vperm.slane %v2123, 0
        %v2136 = vunpack.c.l.b16 %v2115
        %v2137 = vunpack.c.l.b16 %v2116
        %v2138 = vunpack.c.l.b16 %v2117
        %v2139 = vunpack.c.l.b16 %v2118
        %v2140 = vunpack.c.l.b16 %v2119
        %v2141 = vunpack.c.l.b16 %v2120
        %v2142 = vunpack.c.l.b16 %v2121
        %v2143 = vunpack.c.l.b16 %v2122
        %v2144 = vpack.c.b16 %v2137, %v2136
        %v2145 = vpack.c.b16 %v2139, %v2138
        %v2146 = vpack.c.b16 %v2141, %v2140
        %v2147 = vpack.c.b16 %v2143, %v2142
        %vm2152 = vcmask 523264
        %v2154 = vsel %vm2152, %v2124, 0
        %2156 = vmatpush.bf16.msra.mxu0 0
        %2157 = vmatpush.bf16.msra.mxu0 0
        %2158 = vmatpush.bf16.msra.mxu0 0
        %2159 = vmatpush.bf16.msra.mxu0 0
        %2160 = vmatpush.bf16.msra.mxu0 %v2147
        %2161 = vmatpush.bf16.msra.mxu0 %v2146
        %2162 = vmatpush.bf16.msra.mxu0 %v2145
        %2163 = vmatpush.bf16.msra.mxu0 %v2144
        %2164 = vmatmul.bf16.gmra.mxu0 %v2154
        %v2165 = vpop.f32.mrf.mxu0
        %v2166 = vadd.f32 %v2126, %v2165
        %v2167 = vpop.f32.mrf.mxu0
        %2168 = vdwg.mxu0
        %v2169 = vadd.f32 %v2076, %v2166
        %v2170 = vld [vmem:[%s1120] sm:$0x1]
        %v2171 = vld [vmem:[%s1129] sm:$0x1]
        %v2172 = vsel %vm1348, %v2169, 0.0
        %2173 = vadd.xlane.f32.xlu0 %v2172
        %v2174 = vpop.xlane.xlu0 %2173
        %v2175 = vmul.f32 %v2174, %v1661
        %v2176 = vsub.f32 %v2169, %v2175
        %v2177 = vmul.f32 %v2176, %v2176
        %v2178 = vsel %vm1348, %v2177, 0.0
        %2179 = vadd.xlane.f32.xlu0 %v2178
        %v2180 = vpop.xlane.xlu0 %2179
        %v2181 = vmul.f32 %v2180, %v1661
        %v2182 = vadd.f32 %v2181, 1e-05
        %v2183 = vrsqrt.pop %v2182
        %v2184 = vmul.f32 %v2183, %v2182
        %v2185 = vmul.f32 %v2184, %v2183
        %v2186 = vmul.f32 0.5, %v2185
        %v2187 = vsub.f32 1.5, %v2186
        %v2188 = vmul.f32 %v2183, %v2187
        %vm2189 = vweird.f32 %v2182
        %vm2190 = vweird.f32 %v2183
        %vm2191 = vmor %vm2189, %vm2190
        %v2192 = vsel %vm2191, %v2183, %v2188
        %v2193 = vmul.f32 %v2176, %v2192
        %v2195 = vperm.slane %v2170, 0
        %v2197 = vmul.f32 %v2193, %v2195
        %v2199 = vperm.slane %v2171, 0
        %v2201 = vadd.f32 %v2197, %v2199
        %2202 = vst.msk [vmem:[%s1279] sm:$0xff] %vm1348, %v2201
        %s2203 = sand.u32 %s671, 1
        %s2204 = scalar_lea.sflag [#allocation4], %s2203
        %s2205 = sand.u32 %s671, 1
        %s2206 = smul.addr %s2205, 8
        %s2207 = scalar_lea.vmem [#allocation23], %s2206
        // Predicated region
        $region169: #{cached_transformer_decoder_forward.1} parent=111 // pred_check
          %p2208 = pneg %p681
        $region170: #{cached_transformer_decoder_forward.1} parent=111 // pred_check_branch
          %2210 = sbr.rel (%p2208) target = $region172
        $region171: #{cached_transformer_decoder_forward.1} parent=111 // pred_region
          %2212 = vsyncadd %s2204, 0
          %s2213 = smul.addr %s62, 8
          %s2214 = scalar_lea.hbm %s23, %s2213
          %s2216 = sshll.u32 %s2207, 4
          %s2217 = int_to_ptr.vmem [resolvable:$true] %s2216
          %s2218 = sshll.u32 %s2214, 4
          %s2219 = int_to_ptr.hbm [resolvable:$true] %s2218
          %2221 = dma.vmem_to_hbm [thread:$0]  %s2217, 128, %s2219, %s2204
        $region172: #{cached_transformer_decoder_forward.1} parent=111 // pred_fallthru
          _
      $region112: #{cached_transformer_decoder_forward.1} parent=5 // pred_fallthru
        _
      %p2222 = scmp.le.s32.totalorder 2, %s53
      // Predicated region
      $region173: #{cached_transformer_decoder_forward.1} parent=5 // pred_check
        %p2223 = pneg %p2222
      $region174: #{cached_transformer_decoder_forward.1} parent=5 // pred_check_branch
        %2225 = sbr.rel (%p2223) target = $region176
      $region175: #{cached_transformer_decoder_forward.1} parent=5 // pred_region
        %s2226 = ssub.s32 %s53, 2
        // Predicated region
        $region177: #{cached_transformer_decoder_forward.1} parent=175 // pred_check
          %p2227 = pneg %p687
        $region178: #{cached_transformer_decoder_forward.1} parent=175 // pred_check_branch
          %2229 = sbr.rel (%p2227) target = $region180
        $region179: #{cached_transformer_decoder_forward.1} parent=175 // pred_region
          %s2230 = sand.u32 %s672, 1
          %s2231 = scalar_lea.sflag [#allocation4], %s2230
          %s2232 = sand.u32 %s672, 1
          %s2233 = smul.addr %s2232, 8
          %s2234 = scalar_lea.vmem [#allocation23], %s2233
          %2236 = dma.done %s2231, 128
        $region180: #{cached_transformer_decoder_forward.1} parent=175 // pred_fallthru
          _
      $region176: #{cached_transformer_decoder_forward.1} parent=5 // pred_fallthru
        _
    $region6: #{cached_transformer_decoder_forward.1} parent=1 // loop_footer
      %s57 = sadd.s32 1, %s53
    $region7: #{cached_transformer_decoder_forward.1} parent=1 // loop_footer_branch
      %52 = sbr.rel target = $region3
    $region8: #{cached_transformer_decoder_forward.1} parent=1 // loop_exit
      _
    %2237 = vsyncpa [#allocation3], 1
    %s2238 = scalar_lea.sflag [#allocation3], 1
    %2239 = vsyncpa %s2238, 1
    %2240 = vsyncpa [#allocation6], 1
    %s2241 = scalar_lea.sflag [#allocation6], 1
    %2242 = vsyncpa %s2241, 1
    %2243 = vsyncpa [#allocation9], 1
    %s2244 = scalar_lea.sflag [#allocation9], 1
    %2245 = vsyncpa %s2244, 1
    %2246 = vsyncpa [#allocation12], 1
    %s2247 = scalar_lea.sflag [#allocation12], 1
    %2248 = vsyncpa %s2247, 1
    %2249 = vsyncpa [#allocation15], 1
    %s2250 = scalar_lea.sflag [#allocation15], 1
    %2251 = vsyncpa %s2250, 1
    %2252 = vsyncpa [#allocation18], 1
    %s2253 = scalar_lea.sflag [#allocation18], 1
    %2254 = vsyncpa %s2253, 1
    %2255 = vsyncpa [#allocation21], 1
    %s2256 = scalar_lea.sflag [#allocation21], 1
    %2257 = vsyncpa %s2256, 1
    %2258 = vsyncpa [#allocation4], 1
    %s2259 = scalar_lea.sflag [#allocation4], 1
    %2260 = vsyncpa %s2259, 1

</llo_original>
